<compile_context>
chip_gen: v6e
topology: v6e:2x2x1
jax: 0.10.0
libtpu: 0.0.40
codegen_flags: <defaults>
</compile_context>

<pallas_src>
import math

import numpy as np
import jax
import jax.numpy as jnp
from jax.experimental import pallas as pl
from jax.experimental.pallas import tpu as pltpu


def _cdiv(a, b):
    return -(-a // b)


def mlp_diff_kernel(data_ref, w_ref, b_ref, out_ref):
    """One grid step: a (TB, LANE) batch tile through the whole network.

    data_ref : (TB, LANE)       packed rows [time | x | state | zeros]
    w_ref    : (7, LANE, LANE)  zero-padded weights:
               0: time-MLP L1 (sin rows)   1: time-MLP L1 (cos rows)   2: time-MLP L2
               3: fc1 rows for the packed data slab (row 0 == 0 -> time column ignored)
               4: fc1 rows for the time embedding   5: fc2   6: fc3
    b_ref    : (8, LANE)        rows: bt1, bt2, b1, b2, b3, freqs, 0, 0
    """
    f32 = jnp.float32

    def wmat(k):
        return w_ref[k]                      # (LANE, LANE), static first-axis index

    def brow(k):
        return b_ref[k:k + 1, :]             # (1, LANE), static sublane slice

    data = data_ref[...]                     # (TB, LANE), single full-lane load

    # ---- sinusoidal time embedding: arg[b, j] = time[b] * freqs[j] (exact f32 VPU) ----
    # Padded lanes have freqs == 0 -> sin == 0, cos == 1; the corresponding weight rows
    # are zero so the padding never contributes.
    t_col = data[:, 0:1]                     # (TB, 1), lane-0-aligned slice
    arg = t_col * brow(5)                    # (TB, LANE)
    sin_e = jnp.sin(arg)
    cos_e = jnp.cos(arg)

    # ---- time MLP: Linear(t_dim, 2*t_dim) + ReLU + Linear(2*t_dim, t_dim) ----
    th = (jnp.dot(sin_e, wmat(0), preferred_element_type=f32)
          + jnp.dot(cos_e, wmat(1), preferred_element_type=f32)
          + brow(0))
    th = jnp.maximum(th, 0.0)
    temb = jnp.dot(th, wmat(2), preferred_element_type=f32) + brow(1)

    # ---- fc1 on concat([x, t, state]) via zero-padded row blocks (no in-kernel concat) ----
    h = (jnp.dot(data, wmat(3), preferred_element_type=f32)
         + jnp.dot(temb, wmat(4), preferred_element_type=f32)
         + brow(2))
    h = jnp.maximum(h, 0.0)

    # ---- fc2 + ReLU, fc3 ----
    h = jnp.maximum(jnp.dot(h, wmat(5), preferred_element_type=f32) + brow(3), 0.0)
    q = jnp.dot(h, wmat(6), preferred_element_type=f32) + brow(4)

    out_ref[...] = q.astype(out_ref.dtype)   # single lane-dense (TB, LANE) store


def pack_params(p, state_dim, action_dim, hidden_dim, t_dim):
    """Host-side prep: zero-pad every K/N dim to a multiple of 128, stack the 7 weight
    matrices into one (7, LANE, LANE) slab and {biases, freqs} into one (8, LANE) slab."""
    half_dim = t_dim // 2
    A, S, H = action_dim, state_dim, hidden_dim
    lane = 128 * _cdiv(max(1 + A + S, 2 * t_dim, t_dim, H, A, half_dim), 128)

    wt1 = np.asarray(p["wt1"], np.float32)
    w1 = np.asarray(p["w1"], np.float32)

    W = np.zeros((7, lane, lane), np.float32)
    W[0, :half_dim, :2 * t_dim] = wt1[:half_dim]            # time-MLP L1, sin rows
    W[1, :half_dim, :2 * t_dim] = wt1[half_dim:]            # time-MLP L1, cos rows
    W[2, :2 * t_dim, :t_dim] = np.asarray(p["wt2"])         # time-MLP L2
    W[3, 1:1 + A, :H] = w1[:A]                              # fc1: x rows (row 0 stays 0)
    W[3, 1 + A:1 + A + S, :H] = w1[A + t_dim:]              # fc1: state rows
    W[4, :t_dim, :H] = w1[A:A + t_dim]                      # fc1: t rows
    W[5, :H, :H] = np.asarray(p["w2"])                      # fc2
    W[6, :H, :A] = np.asarray(p["w3"])                      # fc3

    Bv = np.zeros((8, lane), np.float32)
    Bv[0, :2 * t_dim] = np.asarray(p["bt1"])
    Bv[1, :t_dim] = np.asarray(p["bt2"])
    Bv[2, :H] = np.asarray(p["b1"])
    Bv[3, :H] = np.asarray(p["b2"])
    Bv[4, :A] = np.asarray(p["b3"])
    Bv[5, :half_dim] = np.asarray(p["freqs"])

    return jnp.asarray(W), jnp.asarray(Bv), lane


def mlp_diff(x, time, state, packed, *, block_b=None):
    """x: (B, action_dim), time: (B,), state: (B, state_dim) -> (B, action_dim)."""
    W, Bv, lane = packed
    B, A = x.shape
    S = state.shape[1]

    # Batch tiling: sublane-aligned blocks; for B >= 16 cap block_b so the grid has >= 2
    # steps and the "parallel" axis can span both TensorCores on v7x.  For large B this
    # still gives tall-M MXU dots (v5e-friendly) while the per-block VMEM stays tiny.
    if block_b is None:
        block_b = 8 if B < 16 else min(2048, 8 * _cdiv(_cdiv(B, 2), 8))
    block_b = max(8, 8 * _cdiv(int(block_b), 8))
    n_blocks = _cdiv(B, block_b)
    Bp = n_blocks * block_b

    # One lane-dense (Bp, lane) f32 input slab: col 0 = time, 1..1+A = x, 1+A..1+A+S = state.
    data = jnp.zeros((Bp, lane), jnp.float32)
    data = data.at[:B, 0].set(time.astype(jnp.float32))
    data = data.at[:B, 1:1 + A].set(x.astype(jnp.float32))
    data = data.at[:B, 1 + A:1 + A + S].set(state.astype(jnp.float32))

    # VMEM guard (only matters when hidden_dim pushes lane well past 128, e.g. on v7x).
    compiler_kwargs = dict(dimension_semantics=("parallel",))
    vmem_est = 8 * (W.size + Bv.size + 2 * block_b * lane)     # f32, double-buffered
    if vmem_est > (28 << 20):
        compiler_kwargs["vmem_limit_bytes"] = int(min(vmem_est + (8 << 20), 112 << 20))

    out = pl.pallas_call(
        mlp_diff_kernel,
        out_shape=jax.ShapeDtypeStruct((Bp, lane), x.dtype),
        grid_spec=pltpu.PrefetchScalarGridSpec(
            num_scalar_prefetch=0,
            grid=(n_blocks,),
            in_specs=[pl.BlockSpec((block_b, lane), lambda i: (i, 0)),
                      pl.BlockSpec(W.shape, lambda i: (0, 0, 0)),
                      pl.BlockSpec(Bv.shape, lambda i: (0, 0))],
            out_specs=pl.BlockSpec((block_b, lane), lambda i: (i, 0)),
        ),
        compiler_params=pltpu.CompilerParams(**compiler_kwargs),
    )(data, W, Bv)
    return out[:B, :A]


def init_params(key, state_dim, action_dim, hidden_dim, t_dim=16):
    """Logical (PyTorch-equivalent) params; linear weights stored pre-transposed (in, out)."""
    half_dim = t_dim // 2
    ks = jax.random.split(key, 10)
    s = 0.1
    p = {}
    p["freqs"] = jnp.exp(
        -jnp.arange(half_dim, dtype=jnp.float32)
        * (math.log(10000.0) / max(half_dim - 1, 1)))
    p["wt1"] = jax.random.normal(ks[0], (t_dim, 2 * t_dim), jnp.float32) * s
    p["bt1"] = jax.random.normal(ks[1], (2 * t_dim,), jnp.float32) * s
    p["wt2"] = jax.random.normal(ks[2], (2 * t_dim, t_dim), jnp.float32) * s
    p["bt2"] = jax.random.normal(ks[3], (t_dim,), jnp.float32) * s
    p["w1"] = jax.random.normal(
        ks[4], (action_dim + t_dim + state_dim, hidden_dim), jnp.float32) * s
    p["b1"] = jax.random.normal(ks[5], (hidden_dim,), jnp.float32) * s
    p["w2"] = jax.random.normal(ks[6], (hidden_dim, hidden_dim), jnp.float32) * s
    p["b2"] = jax.random.normal(ks[7], (hidden_dim,), jnp.float32) * s
    p["w3"] = jax.random.normal(ks[8], (hidden_dim, action_dim), jnp.float32) * s
    p["b3"] = jax.random.normal(ks[9], (action_dim,), jnp.float32) * s
    return p


def reference(x, time, state, p):
    """Pure-JAX mirror of the PyTorch MLP_diff forward."""
    arg = time.reshape(-1, 1).astype(jnp.float32) * p["freqs"].reshape(1, -1)
    emb = jnp.concatenate([jnp.sin(arg), jnp.cos(arg)], axis=-1)
    th = jax.nn.relu(emb @ p["wt1"] + p["bt1"])
    t = th @ p["wt2"] + p["bt2"]
    obs = jnp.concatenate([x, t, state], axis=1)
    h = jax.nn.relu(obs @ p["w1"] + p["b1"])
    h = jax.nn.relu(h @ p["w2"] + p["b2"])
    return h @ p["w3"] + p["b3"]


if __name__ == "__main__":
    # Full-f32 matmul precision everywhere so the in-kernel MXU dots and the pure-JAX
    # reference agree to tight tolerance.
    jax.config.update("jax_default_matmul_precision", "highest")

    # batch=4, state_dim=16, action_dim=8, hidden_dim=32, t_dim=16
    B, state_dim, action_dim, hidden_dim, t_dim = 4, 16, 8, 32, 16
    key = jax.random.PRNGKey(0)
    kx, kt, ks, kp = jax.random.split(key, 4)
    x = jax.random.normal(kx, (B, action_dim), jnp.float32)
    state = jax.random.normal(ks, (B, state_dim), jnp.float32)
    time = jax.random.uniform(kt, (B,), jnp.float32, 0.0, 100.0)

    params = init_params(kp, state_dim, action_dim, hidden_dim, t_dim)
    packed = pack_params(params, state_dim, action_dim, hidden_dim, t_dim)

    # Whole-batch-in-one-step path.
    out = jax.block_until_ready(mlp_diff(x, time, state, packed))
    ref = reference(x, time, state, params)
    assert out.shape == (B, action_dim)
    np.testing.assert_allclose(np.asarray(out), np.asarray(ref), rtol=1e-4, atol=1e-4)

    # Multi-block (tiled + padded) path, exercising grid > 1 with "parallel" semantics.
    B2 = 20
    k2x, k2t, k2s = jax.random.split(jax.random.PRNGKey(1), 3)
    x2 = jax.random.normal(k2x, (B2, action_dim), jnp.float32)
    state2 = jax.random.normal(k2s, (B2, state_dim), jnp.float32)
    time2 = jax.random.uniform(k2t, (B2,), jnp.float32, 0.0, 100.0)
    out2 = jax.block_until_ready(mlp_diff(x2, time2, state2, packed, block_b=8))
    ref2 = reference(x2, time2, state2, params)
    np.testing.assert_allclose(np.asarray(out2), np.asarray(ref2), rtol=1e-4, atol=1e-4)

    print("KERNEL_OK")
</pallas_src>

<mosaic_0001>
module attributes {stable_mosaic.version = 11 : i64} {
  func.func @mlp_diff_kernel(%arg0: i32, %arg1: memref<8x128xf32, #tpu.memory_space<vmem>>, %arg2: memref<7x128x128xf32, #tpu.memory_space<vmem>>, %arg3: memref<8x128xf32, #tpu.memory_space<vmem>>, %arg4: memref<8x128xf32, #tpu.memory_space<vmem>>) attributes {dimension_semantics = [#tpu.dimension_semantics<parallel>], iteration_bounds = array<i64: 1>, scalar_prefetch = 0 : i64, scratch_operands = 0 : i64, tpu.core_type = #tpu.core_type<tc>, window_params = [{transform_indices = @transform_0, window_bounds = array<i64: 8, 128>}, {pipeline_mode = #tpu.pipeline_mode<synchronous>, transform_indices = @transform_1, window_bounds = array<i64: 7, 128, 128>}, {pipeline_mode = #tpu.pipeline_mode<synchronous>, transform_indices = @transform_2, window_bounds = array<i64: 8, 128>}, {transform_indices = @transform_3, window_bounds = array<i64: 8, 128>}]} {
    %c0 = arith.constant 0 : index
    %c0_0 = arith.constant 0 : index
    %0 = vector.load %arg1[%c0, %c0_0] : memref<8x128xf32, #tpu.memory_space<vmem>>, vector<8x128xf32>
    %1 = vector.extract_strided_slice %0 {offsets = [0, 0], sizes = [8, 1], strides = [1, 1]} : vector<8x128xf32> to vector<8x1xf32>
    %c5 = arith.constant 5 : index
    %c0_1 = arith.constant 0 : index
    %2 = vector.load %arg3[%c5, %c0_1] : memref<8x128xf32, #tpu.memory_space<vmem>>, vector<1x128xf32>
    %3 = vector.broadcast %1 : vector<8x1xf32> to vector<8x128xf32>
    %4 = vector.broadcast %2 : vector<1x128xf32> to vector<8x128xf32>
    %5 = arith.mulf %3, %4 : vector<8x128xf32>
    %6 = math.sin %5 : vector<8x128xf32>
    %7 = math.cos %5 : vector<8x128xf32>
    %c0_2 = arith.constant 0 : index
    %c0_3 = arith.constant 0 : index
    %c0_4 = arith.constant 0 : index
    %8 = vector.load %arg2[%c0_2, %c0_3, %c0_4] : memref<7x128x128xf32, #tpu.memory_space<vmem>>, vector<1x128x128xf32>
    %9 = vector.shape_cast %8 : vector<1x128x128xf32> to vector<128x128xf32>
    %cst = arith.constant dense<0.000000e+00> : vector<8x128xf32>
    %10 = tpu.matmul %6, %9, %cst {dimension_numbers = #tpu.dot_dimension_numbers<[1], [0], [0], [1], [0, 0, 1, 1], [], []>, precision = #tpu.contract_precision<fp32>} : vector<8x128xf32>, vector<128x128xf32>, vector<8x128xf32> -> vector<8x128xf32>
    %c1 = arith.constant 1 : index
    %c0_5 = arith.constant 0 : index
    %c0_6 = arith.constant 0 : index
    %11 = vector.load %arg2[%c1, %c0_5, %c0_6] : memref<7x128x128xf32, #tpu.memory_space<vmem>>, vector<1x128x128xf32>
    %12 = vector.shape_cast %11 : vector<1x128x128xf32> to vector<128x128xf32>
    %cst_7 = arith.constant dense<0.000000e+00> : vector<8x128xf32>
    %13 = tpu.matmul %7, %12, %cst_7 {dimension_numbers = #tpu.dot_dimension_numbers<[1], [0], [0], [1], [0, 0, 1, 1], [], []>, precision = #tpu.contract_precision<fp32>} : vector<8x128xf32>, vector<128x128xf32>, vector<8x128xf32> -> vector<8x128xf32>
    %14 = arith.addf %10, %13 : vector<8x128xf32>
    %c0_8 = arith.constant 0 : index
    %c0_9 = arith.constant 0 : index
    %15 = vector.load %arg3[%c0_8, %c0_9] : memref<8x128xf32, #tpu.memory_space<vmem>>, vector<1x128xf32>
    %16 = vector.broadcast %15 : vector<1x128xf32> to vector<8x128xf32>
    %17 = arith.addf %14, %16 : vector<8x128xf32>
    %cst_10 = arith.constant 0.000000e+00 : f32
    %18 = vector.broadcast %cst_10 : f32 to vector<8x128xf32>
    %19 = arith.maximumf %17, %18 : vector<8x128xf32>
    %c2 = arith.constant 2 : index
    %c0_11 = arith.constant 0 : index
    %c0_12 = arith.constant 0 : index
    %20 = vector.load %arg2[%c2, %c0_11, %c0_12] : memref<7x128x128xf32, #tpu.memory_space<vmem>>, vector<1x128x128xf32>
    %21 = vector.shape_cast %20 : vector<1x128x128xf32> to vector<128x128xf32>
    %cst_13 = arith.constant dense<0.000000e+00> : vector<8x128xf32>
    %22 = tpu.matmul %19, %21, %cst_13 {dimension_numbers = #tpu.dot_dimension_numbers<[1], [0], [0], [1], [0, 0, 1, 1], [], []>, precision = #tpu.contract_precision<fp32>} : vector<8x128xf32>, vector<128x128xf32>, vector<8x128xf32> -> vector<8x128xf32>
    %c1_14 = arith.constant 1 : index
    %c0_15 = arith.constant 0 : index
    %23 = vector.load %arg3[%c1_14, %c0_15] : memref<8x128xf32, #tpu.memory_space<vmem>>, vector<1x128xf32>
    %24 = vector.broadcast %23 : vector<1x128xf32> to vector<8x128xf32>
    %25 = arith.addf %22, %24 : vector<8x128xf32>
    %c3 = arith.constant 3 : index
    %c0_16 = arith.constant 0 : index
    %c0_17 = arith.constant 0 : index
    %26 = vector.load %arg2[%c3, %c0_16, %c0_17] : memref<7x128x128xf32, #tpu.memory_space<vmem>>, vector<1x128x128xf32>
    %27 = vector.shape_cast %26 : vector<1x128x128xf32> to vector<128x128xf32>
    %cst_18 = arith.constant dense<0.000000e+00> : vector<8x128xf32>
    %28 = tpu.matmul %0, %27, %cst_18 {dimension_numbers = #tpu.dot_dimension_numbers<[1], [0], [0], [1], [0, 0, 1, 1], [], []>, precision = #tpu.contract_precision<fp32>} : vector<8x128xf32>, vector<128x128xf32>, vector<8x128xf32> -> vector<8x128xf32>
    %c4 = arith.constant 4 : index
    %c0_19 = arith.constant 0 : index
    %c0_20 = arith.constant 0 : index
    %29 = vector.load %arg2[%c4, %c0_19, %c0_20] : memref<7x128x128xf32, #tpu.memory_space<vmem>>, vector<1x128x128xf32>
    %30 = vector.shape_cast %29 : vector<1x128x128xf32> to vector<128x128xf32>
    %cst_21 = arith.constant dense<0.000000e+00> : vector<8x128xf32>
    %31 = tpu.matmul %25, %30, %cst_21 {dimension_numbers = #tpu.dot_dimension_numbers<[1], [0], [0], [1], [0, 0, 1, 1], [], []>, precision = #tpu.contract_precision<fp32>} : vector<8x128xf32>, vector<128x128xf32>, vector<8x128xf32> -> vector<8x128xf32>
    %32 = arith.addf %28, %31 : vector<8x128xf32>
    %c2_22 = arith.constant 2 : index
    %c0_23 = arith.constant 0 : index
    %33 = vector.load %arg3[%c2_22, %c0_23] : memref<8x128xf32, #tpu.memory_space<vmem>>, vector<1x128xf32>
    %34 = vector.broadcast %33 : vector<1x128xf32> to vector<8x128xf32>
    %35 = arith.addf %32, %34 : vector<8x128xf32>
    %cst_24 = arith.constant 0.000000e+00 : f32
    %36 = vector.broadcast %cst_24 : f32 to vector<8x128xf32>
    %37 = arith.maximumf %35, %36 : vector<8x128xf32>
    %c5_25 = arith.constant 5 : index
    %c0_26 = arith.constant 0 : index
    %c0_27 = arith.constant 0 : index
    %38 = vector.load %arg2[%c5_25, %c0_26, %c0_27] : memref<7x128x128xf32, #tpu.memory_space<vmem>>, vector<1x128x128xf32>
    %39 = vector.shape_cast %38 : vector<1x128x128xf32> to vector<128x128xf32>
    %cst_28 = arith.constant dense<0.000000e+00> : vector<8x128xf32>
    %40 = tpu.matmul %37, %39, %cst_28 {dimension_numbers = #tpu.dot_dimension_numbers<[1], [0], [0], [1], [0, 0, 1, 1], [], []>, precision = #tpu.contract_precision<fp32>} : vector<8x128xf32>, vector<128x128xf32>, vector<8x128xf32> -> vector<8x128xf32>
    %c3_29 = arith.constant 3 : index
    %c0_30 = arith.constant 0 : index
    %41 = vector.load %arg3[%c3_29, %c0_30] : memref<8x128xf32, #tpu.memory_space<vmem>>, vector<1x128xf32>
    %42 = vector.broadcast %41 : vector<1x128xf32> to vector<8x128xf32>
    %43 = arith.addf %40, %42 : vector<8x128xf32>
    %cst_31 = arith.constant 0.000000e+00 : f32
    %44 = vector.broadcast %cst_31 : f32 to vector<8x128xf32>
    %45 = arith.maximumf %43, %44 : vector<8x128xf32>
    %c6 = arith.constant 6 : index
    %c0_32 = arith.constant 0 : index
    %c0_33 = arith.constant 0 : index
    %46 = vector.load %arg2[%c6, %c0_32, %c0_33] : memref<7x128x128xf32, #tpu.memory_space<vmem>>, vector<1x128x128xf32>
    %47 = vector.shape_cast %46 : vector<1x128x128xf32> to vector<128x128xf32>
    %cst_34 = arith.constant dense<0.000000e+00> : vector<8x128xf32>
    %48 = tpu.matmul %45, %47, %cst_34 {dimension_numbers = #tpu.dot_dimension_numbers<[1], [0], [0], [1], [0, 0, 1, 1], [], []>, precision = #tpu.contract_precision<fp32>} : vector<8x128xf32>, vector<128x128xf32>, vector<8x128xf32> -> vector<8x128xf32>
    %c4_35 = arith.constant 4 : index
    %c0_36 = arith.constant 0 : index
    %49 = vector.load %arg3[%c4_35, %c0_36] : memref<8x128xf32, #tpu.memory_space<vmem>>, vector<1x128xf32>
    %50 = vector.broadcast %49 : vector<1x128xf32> to vector<8x128xf32>
    %51 = arith.addf %48, %50 : vector<8x128xf32>
    %c0_37 = arith.constant 0 : index
    %c0_38 = arith.constant 0 : index
    %52 = vector.load %arg4[%c0_37, %c0_38] : memref<8x128xf32, #tpu.memory_space<vmem>>, vector<8x128xf32>
    tpu.vector_store %arg4[%c0_37, %c0_38], %51 {strides = array<i32>} : memref<8x128xf32, #tpu.memory_space<vmem>>, vector<8x128xf32>,
    return
  }
  func.func @transform_0(%arg0: i32) -> (i32, i32) {
    %c0_i32 = arith.constant 0 : i32
    %c0_i32_0 = arith.constant 0 : i32
    return %arg0, %c0_i32 : i32, i32
  }
  func.func @transform_1(%arg0: i32) -> (i32, i32, i32) {
    %c0_i32 = arith.constant 0 : i32
    %c0_i32_0 = arith.constant 0 : i32
    %c0_i32_1 = arith.constant 0 : i32
    %c0_i32_2 = arith.constant 0 : i32
    return %c0_i32, %c0_i32_0, %c0_i32_1 : i32, i32, i32
  }
  func.func @transform_2(%arg0: i32) -> (i32, i32) {
    %c0_i32 = arith.constant 0 : i32
    %c0_i32_0 = arith.constant 0 : i32
    %c0_i32_1 = arith.constant 0 : i32
    return %c0_i32, %c0_i32_0 : i32, i32
  }
  func.func @transform_3(%arg0: i32) -> (i32, i32) {
    %c0_i32 = arith.constant 0 : i32
    %c0_i32_0 = arith.constant 0 : i32
    return %arg0, %c0_i32 : i32, i32
  }
}

</mosaic_0001>

<llo_original>
// kernel: tpu_custom_call.1
$region0: #{tpu_custom_call.1}
  #allocation0 [shape = 'u32[]', space=smem, size = 0x4, offset = 0x4, fixed_abs, tag = 'smem constant byte address 0x4 - core index']
  #allocation1 [shape = 'u32[144,128]{1,0:T(1,128)}', space=vmem, size = 0x12000, scoped, tag = 'internal scratch']
  %s0 = inlined_call_operand.hbm [shape: f32[8,128], index: 0, kind: input, shape index: {}]
  %s1 = inlined_call_operand.hbm [shape: f32[7,128,128], index: 1, kind: input, shape index: {}]
  %s2 = inlined_call_operand.hbm [shape: f32[8,128], index: 2, kind: input, shape index: {}]
  %s3 = inlined_call_operand.hbm [shape: f32[8,128], index: 3, kind: output, shape index: {}]
  %s4 = sld [smem:[#allocation0]]
  $region34: #{tpu_custom_call.1} parent=0
    _
  %s6 = ssub.s32 1, %s4
  %s7 = scalar_select 0, %s6, %s4
  $region1: #{tpu_custom_call.1} parent=0
    #allocation2 [shape = 'u8[4096]{0}', space=vmem, size = 0x1000, scoped, tag = 'input window, operand 0, single buffered']
    #allocation3 [shape = 's32[1]{0}', space=sflag, size = 0x4, scoped, tag = 'scoped memory for tpu_custom_call.1']
    #allocation4 [shape = 's32[1]{0}', space=sflag, size = 0x4, scoped, tag = 'scoped memory for tpu_custom_call.1']
    #allocation5 [shape = 'u8[458752]{0}', space=vmem, size = 0x70000, scoped, tag = 'input window, operand 1, single buffered']
    #allocation6 [shape = 's32[1]{0}', space=sflag, size = 0x4, scoped, tag = 'scoped memory for tpu_custom_call.1']
    #allocation7 [shape = 'u8[4096]{0}', space=vmem, size = 0x1000, scoped, tag = 'input window, operand 2, single buffered']
    #allocation8 [shape = 'u8[4096]{0}', space=vmem, size = 0x1000, scoped, tag = 'output window, operand 0, single buffered']
    %8 = vsyncpa [#allocation3], 0
    %9 = vsyncpa [#allocation6], 0
    %10 = vsyncpa [#allocation4], 0
    // Predicated region
    $region2: #{tpu_custom_call.1} parent=1 // pred_check
      _
    $region3: #{tpu_custom_call.1} parent=1 // pred_check_branch
      %12 = sbr.rel (0) target = $region5
    $region4: #{tpu_custom_call.1} parent=1 // pred_region
      %s14 = ssub.s32 128, 128
      %15 = vsyncadd [#allocation3], %s14
      %s17 = sshll.u32 [#allocation2], 4
      %s18 = int_to_ptr.vmem [resolvable:$true] %s17
      %20 = dma.hbm_to_vmem [thread:$0]  %s0, 128, %s18, [#allocation3]
    $region5: #{tpu_custom_call.1} parent=1 // pred_fallthru
      _
    // Predicated region
    $region6: #{tpu_custom_call.1} parent=1 // pred_check
      _
    $region7: #{tpu_custom_call.1} parent=1 // pred_check_branch
      %22 = sbr.rel (0) target = $region9
    $region8: #{tpu_custom_call.1} parent=1 // pred_region
      %s24 = ssub.s32 14336, 14336
      %25 = vsyncadd [#allocation6], %s24
      %s26 = sshll.u32 [#allocation5], 4
      %s27 = int_to_ptr.vmem [resolvable:$true] %s26
      %32 = dma.hbm_to_vmem [thread:$0]  %s1, 14336, %s27, [#allocation6], 128, 128, 8
    $region9: #{tpu_custom_call.1} parent=1 // pred_fallthru
      _
    // Predicated region
    $region10: #{tpu_custom_call.1} parent=1 // pred_check
      _
    $region11: #{tpu_custom_call.1} parent=1 // pred_check_branch
      %34 = sbr.rel (0) target = $region13
    $region12: #{tpu_custom_call.1} parent=1 // pred_region
      %s36 = ssub.s32 128, 128
      %37 = vsyncadd [#allocation6], %s36
      %s39 = sshll.u32 [#allocation7], 4
      %s40 = int_to_ptr.vmem [resolvable:$true] %s39
      %42 = dma.hbm_to_vmem [thread:$0]  %s2, 128, %s40, [#allocation6]
    $region13: #{tpu_custom_call.1} parent=1 // pred_fallthru
      _
    // Predicated region
    $region14: #{tpu_custom_call.1} parent=1 // pred_check
      _
    $region15: #{tpu_custom_call.1} parent=1 // pred_check_branch
      %44 = sbr.rel (0) target = $region17
    $region16: #{tpu_custom_call.1} parent=1 // pred_region
      %45 = dma.done [#allocation3], 128
    $region17: #{tpu_custom_call.1} parent=1 // pred_fallthru
      _
    // Predicated region
    $region18: #{tpu_custom_call.1} parent=1 // pred_check
      _
    $region19: #{tpu_custom_call.1} parent=1 // pred_check_branch
      %47 = sbr.rel (0) target = $region21
    $region20: #{tpu_custom_call.1} parent=1 // pred_region
      %48 = dma.done [#allocation6], 14336
    $region21: #{tpu_custom_call.1} parent=1 // pred_fallthru
      _
    // Predicated region
    $region22: #{tpu_custom_call.1} parent=1 // pred_check
      _
    $region23: #{tpu_custom_call.1} parent=1 // pred_check_branch
      %50 = sbr.rel (0) target = $region25
    $region24: #{tpu_custom_call.1} parent=1 // pred_region
      %51 = dma.done [#allocation6], 128
    $region25: #{tpu_custom_call.1} parent=1 // pred_fallthru
      _
    %v52 = vld [vmem:[#allocation2] sm:$0xff]
    %v53 = vld [vmem:[#allocation7 + $0x5] sm:$0x1]
    %55 = vset.pattern.permute.xlu0 0
    %56 = vperm.xlu0 %55, %v52
    %v57 = vpop.permute.xlu0 %56
    %v59 = vlaneseq
    %v60 = vshrl.u32 %v59, 7
    %v61 = vsub.s32 0, %v60
    %v62 = vrot.slane %v53, %v61
    %v63 = vmul.f32 %v57, %v62
    %v64 = vand.u32 2147483647, %v63
    %vm65 = vcmp.le.f32.partialorder %v64, 0.7853982
    %vm66 = vcmp.lt.s32.totalorder %v63, 0
    %v67 = vand.u32 %v63, 2139095040
    %v68 = vshrl.u32 %v67, 23
    %v69 = vsub.s32 %v68, 127
    %v70 = vand.u32 2147483647, %v63
    %v71 = vand.u32 %v70, 8388607
    %v72 = vor.u32 %v71, 8388608
    %v73 = vsub.s32 0, %v72
    %v74 = vadd.s32 %v69, 1
    %vm75 = vcmp.gt.s32.totalorder %v74, 0
    %v76 = vsel %vm75, %v74, 0
    %v77 = vshrl.u32 %v76, 5
    %v78 = vand.u32 %v76, 31
    %v79 = vsub.s32 32, %v78
    %v80 = vshrl.u32 683565275, %v79
    %v81 = vshll.u32 683565275, %v78
    %v82 = vshrl.u32 2475754826, %v79
    %v83 = vor.u32 %v81, %v82
    %v84 = vshll.u32 2475754826, %v78
    %v85 = vshrl.u32 2131351028, %v79
    %v86 = vor.u32 %v84, %v85
    %v87 = vshll.u32 2131351028, %v78
    %v88 = vshrl.u32 2102212464, %v79
    %v89 = vor.u32 %v87, %v88
    %v90 = vshll.u32 2102212464, %v78
    %v91 = vshrl.u32 920167782, %v79
    %v92 = vor.u32 %v90, %v91
    %v93 = vshll.u32 920167782, %v78
    %v94 = vshrl.u32 1326507024, %v79
    %v95 = vor.u32 %v93, %v94
    %vm96 = vcmp.lt.s32.totalorder %v77, 1
    %vm97 = vcmp.lt.s32.totalorder %v77, 2
    %vm98 = vcmp.lt.s32.totalorder %v77, 3
    %vm99 = vcmp.lt.s32.totalorder %v77, 4
    %v100 = vsel %vm96, %v80, %v83
    %v101 = vsel %vm99, %v89, 2102212464
    %v102 = vsel %vm98, %v86, %v101
    %v103 = vsel %vm97, %v100, %v102
    %v104 = vsel %vm96, %v83, %v86
    %v105 = vsel %vm99, %v92, 920167782
    %v106 = vsel %vm98, %v89, %v105
    %v107 = vsel %vm97, %v104, %v106
    %v108 = vsel %vm96, %v86, %v89
    %v109 = vsel %vm99, %v95, 1326507024
    %v110 = vsel %vm98, %v92, %v109
    %v111 = vsel %vm97, %v108, %v110
    %v112 = vshll.u32 %v72, 8
    %v113 = vmul.u32.u64.compose %v112, %v111
    %v114 = vextract.low.u32 %v113
    %v115 = vextract.high.u32 %v113
    %v116 = vmul.u32.u64.compose %v112, %v107
    %v117 = vextract.low.u32 %v116
    %v118 = vextract.high.u32 %v116
    %v119 = vmul.u32 %v112, %v103
    %v120 = vadd.s32 %v115, %v117
    %vm121 = vc.u32 %v115, %v117
    %v122 = vadd.s32 %v118, 1
    %v123 = vsel %vm121, %v122, %v118
    %v124 = vadd.s32 %v119, %v123
    %v125 = vadd.s32 %v124, 536870912
    %v126 = vshrl.u32 %v125, 30
    %v127 = vshll.u32 %v126, 30
    %v128 = vsub.s32 %v124, %v127
    %vm129 = vcmp.lt.s32.totalorder %v128, 0
    %v130 = vsub.s32 0, %v128
    %v131 = vsel %vm129, %v130, %v128
    %v132 = vclz %v131
    %v133 = vsub.s32 %v132, 2
    %vm134 = vcmp.gt.s32.totalorder 0, %v133
    %v135 = vsel %vm134, 0, %v133
    %v136 = vsub.s32 32, %v135
    %v137 = vshll.u32 %v128, %v135
    %v138 = vshrl.u32 %v120, %v136
    %v139 = vor.u32 %v137, %v138
    %v140 = vsub.s32 4294967266, %v135
    %v141 = vadd.s32 %v140, 127
    %v142 = vshll.u32 %v141, 23
    %v143 = vor.u32 4788187, %v142
    %v144 = vand.u32 2147483647, %v143
    %v146 = vcvt.s32.f32 %v139
    %v147 = vmul.f32 %v146, %v144
    %v148 = vxor.u32 %v147, 2147483648
    %v149 = vsel %vm66, %v148, %v147
    %v150 = vsub.s32 4, %v126
    %v151 = vsel %vm66, %v150, %v126
    %v152 = vsel %vm65, %v63, %v149
    %v153 = vsel %vm65, 0, %v151
    %v154 = vcosq.f32.pop %v152
    %v155 = vsinq.f32.pop %v152
    %vm156 = vweird.f32 %v63
    %v157 = vadd.s32 %v153, 3
    %v158 = vand.u32 %v157, 3
    %vm159 = vcmp.lt.s32.totalorder %v158, 2
    %vm160 = vcmp.eq.s32.totalorder %v158, 0
    %v161 = vxor.u32 %v155, 2147483648
    %v162 = vsel %vm160, %v154, %v161
    %vm163 = vcmp.eq.s32.totalorder %v158, 2
    %v164 = vxor.u32 %v154, 2147483648
    %v165 = vsel %vm163, %v164, %v155
    %v166 = vsel %vm159, %v162, %v165
    %v167 = vsel %vm156, nan, %v166
    %v168 = vand.u32 2147483647, %v63
    %vm169 = vcmp.le.f32.partialorder %v168, 0.7853982
    %vm170 = vcmp.lt.s32.totalorder %v63, 0
    %v171 = vand.u32 %v63, 2139095040
    %v172 = vshrl.u32 %v171, 23
    %v173 = vsub.s32 %v172, 127
    %v174 = vand.u32 2147483647, %v63
    %v175 = vand.u32 %v174, 8388607
    %v176 = vor.u32 %v175, 8388608
    %v177 = vsub.s32 0, %v176
    %v178 = vadd.s32 %v173, 1
    %vm179 = vcmp.gt.s32.totalorder %v178, 0
    %v180 = vsel %vm179, %v178, 0
    %v181 = vshrl.u32 %v180, 5
    %v182 = vand.u32 %v180, 31
    %v183 = vsub.s32 32, %v182
    %v184 = vshrl.u32 683565275, %v183
    %v185 = vshll.u32 683565275, %v182
    %v186 = vshrl.u32 2475754826, %v183
    %v187 = vor.u32 %v185, %v186
    %v188 = vshll.u32 2475754826, %v182
    %v189 = vshrl.u32 2131351028, %v183
    %v190 = vor.u32 %v188, %v189
    %v191 = vshll.u32 2131351028, %v182
    %v192 = vshrl.u32 2102212464, %v183
    %v193 = vor.u32 %v191, %v192
    %v194 = vshll.u32 2102212464, %v182
    %v195 = vshrl.u32 920167782, %v183
    %v196 = vor.u32 %v194, %v195
    %v197 = vshll.u32 920167782, %v182
    %v198 = vshrl.u32 1326507024, %v183
    %v199 = vor.u32 %v197, %v198
    %vm200 = vcmp.lt.s32.totalorder %v181, 1
    %vm201 = vcmp.lt.s32.totalorder %v181, 2
    %vm202 = vcmp.lt.s32.totalorder %v181, 3
    %vm203 = vcmp.lt.s32.totalorder %v181, 4
    %v204 = vsel %vm200, %v184, %v187
    %v205 = vsel %vm203, %v193, 2102212464
    %v206 = vsel %vm202, %v190, %v205
    %v207 = vsel %vm201, %v204, %v206
    %v208 = vsel %vm200, %v187, %v190
    %v209 = vsel %vm203, %v196, 920167782
    %v210 = vsel %vm202, %v193, %v209
    %v211 = vsel %vm201, %v208, %v210
    %v212 = vsel %vm200, %v190, %v193
    %v213 = vsel %vm203, %v199, 1326507024
    %v214 = vsel %vm202, %v196, %v213
    %v215 = vsel %vm201, %v212, %v214
    %v216 = vshll.u32 %v176, 8
    %v217 = vmul.u32.u64.compose %v216, %v215
    %v218 = vextract.low.u32 %v217
    %v219 = vextract.high.u32 %v217
    %v220 = vmul.u32.u64.compose %v216, %v211
    %v221 = vextract.low.u32 %v220
    %v222 = vextract.high.u32 %v220
    %v223 = vmul.u32 %v216, %v207
    %v224 = vadd.s32 %v219, %v221
    %vm225 = vc.u32 %v219, %v221
    %v226 = vadd.s32 %v222, 1
    %v227 = vsel %vm225, %v226, %v222
    %v228 = vadd.s32 %v223, %v227
    %v229 = vadd.s32 %v228, 536870912
    %v230 = vshrl.u32 %v229, 30
    %v231 = vshll.u32 %v230, 30
    %v232 = vsub.s32 %v228, %v231
    %vm233 = vcmp.lt.s32.totalorder %v232, 0
    %v234 = vsub.s32 0, %v232
    %v235 = vsel %vm233, %v234, %v232
    %v236 = vclz %v235
    %v237 = vsub.s32 %v236, 2
    %vm238 = vcmp.gt.s32.totalorder 0, %v237
    %v239 = vsel %vm238, 0, %v237
    %v240 = vsub.s32 32, %v239
    %v241 = vshll.u32 %v232, %v239
    %v242 = vshrl.u32 %v224, %v240
    %v243 = vor.u32 %v241, %v242
    %v244 = vsub.s32 4294967266, %v239
    %v245 = vadd.s32 %v244, 127
    %v246 = vshll.u32 %v245, 23
    %v247 = vor.u32 4788187, %v246
    %v248 = vand.u32 2147483647, %v247
    %v250 = vcvt.s32.f32 %v243
    %v251 = vmul.f32 %v250, %v248
    %v252 = vxor.u32 %v251, 2147483648
    %v253 = vsel %vm170, %v252, %v251
    %v254 = vsub.s32 4, %v230
    %v255 = vsel %vm170, %v254, %v230
    %v256 = vsel %vm169, %v63, %v253
    %v257 = vsel %vm169, 0, %v255
    %v258 = vcosq.f32.pop %v256
    %v259 = vsinq.f32.pop %v256
    %vm260 = vweird.f32 %v63
    %v261 = vand.u32 %v257, 3
    %vm262 = vcmp.lt.s32.totalorder %v261, 2
    %vm263 = vcmp.eq.s32.totalorder %v261, 0
    %v264 = vxor.u32 %v259, 2147483648
    %v265 = vsel %vm263, %v258, %v264
    %vm266 = vcmp.eq.s32.totalorder %v261, 2
    %v267 = vxor.u32 %v258, 2147483648
    %v268 = vsel %vm266, %v267, %v259
    %v269 = vsel %vm262, %v265, %v268
    %v270 = vsel %vm260, nan, %v269
    %v271 = vld [vmem:[#allocation5] sm:$0xff]
    %v272 = vld [vmem:[#allocation5 + $0x8] sm:$0xff]
    %v273 = vld [vmem:[#allocation5 + $0x10] sm:$0xff]
    %v274 = vld [vmem:[#allocation5 + $0x18] sm:$0xff]
    %v275 = vld [vmem:[#allocation5 + $0x20] sm:$0xff]
    %v276 = vld [vmem:[#allocation5 + $0x28] sm:$0xff]
    %v277 = vld [vmem:[#allocation5 + $0x30] sm:$0xff]
    %v278 = vld [vmem:[#allocation5 + $0x38] sm:$0xff]
    %v279 = vld [vmem:[#allocation5 + $0x40] sm:$0xff]
    %v280 = vld [vmem:[#allocation5 + $0x48] sm:$0xff]
    %v281 = vld [vmem:[#allocation5 + $0x50] sm:$0xff]
    %v282 = vld [vmem:[#allocation5 + $0x58] sm:$0xff]
    %v283 = vld [vmem:[#allocation5 + $0x60] sm:$0xff]
    %v284 = vld [vmem:[#allocation5 + $0x68] sm:$0xff]
    %v285 = vld [vmem:[#allocation5 + $0x70] sm:$0xff]
    %v286 = vld [vmem:[#allocation5 + $0x78] sm:$0xff]
    %s287 = scalar_lea.vmem [#allocation5], 128
    %v288 = vld [vmem:[%s287] sm:$0xff]
    %v289 = vld [vmem:[%s287 + $0x8] sm:$0xff]
    %v290 = vld [vmem:[%s287 + $0x10] sm:$0xff]
    %v291 = vld [vmem:[%s287 + $0x18] sm:$0xff]
    %v292 = vld [vmem:[%s287 + $0x20] sm:$0xff]
    %v293 = vld [vmem:[%s287 + $0x28] sm:$0xff]
    %v294 = vld [vmem:[%s287 + $0x30] sm:$0xff]
    %v295 = vld [vmem:[%s287 + $0x38] sm:$0xff]
    %v296 = vld [vmem:[%s287 + $0x40] sm:$0xff]
    %v297 = vld [vmem:[%s287 + $0x48] sm:$0xff]
    %v298 = vld [vmem:[%s287 + $0x50] sm:$0xff]
    %v299 = vld [vmem:[%s287 + $0x58] sm:$0xff]
    %v300 = vld [vmem:[%s287 + $0x60] sm:$0xff]
    %v301 = vld [vmem:[%s287 + $0x68] sm:$0xff]
    %v302 = vld [vmem:[%s287 + $0x70] sm:$0xff]
    %v303 = vld [vmem:[%s287 + $0x78] sm:$0xff]
    %304 = vmatprep.subr.mxu0 0.0
    %v305 = vand.u32 %v303, 4294901760
    %306 = vmatpush1.msra.mxu0 %v305
    %307 = vmatprep.subr.mxu0 0.0
    %v308 = vand.u32 %v302, 4294901760
    %309 = vmatpush1.msra.mxu0 %v308
    %310 = vmatprep.subr.mxu0 0.0
    %v311 = vand.u32 %v301, 4294901760
    %312 = vmatpush1.msra.mxu0 %v311
    %313 = vmatprep.subr.mxu0 0.0
    %v314 = vand.u32 %v300, 4294901760
    %315 = vmatpush1.msra.mxu0 %v314
    %316 = vmatprep.subr.mxu0 0.0
    %v317 = vand.u32 %v299, 4294901760
    %318 = vmatpush1.msra.mxu0 %v317
    %319 = vmatprep.subr.mxu0 0.0
    %v320 = vand.u32 %v298, 4294901760
    %321 = vmatpush1.msra.mxu0 %v320
    %322 = vmatprep.subr.mxu0 0.0
    %v323 = vand.u32 %v297, 4294901760
    %324 = vmatpush1.msra.mxu0 %v323
    %325 = vmatprep.subr.mxu0 0.0
    %v326 = vand.u32 %v296, 4294901760
    %327 = vmatpush1.msra.mxu0 %v326
    %328 = vmatprep.subr.mxu0 0.0
    %v329 = vand.u32 %v295, 4294901760
    %330 = vmatpush1.msra.mxu0 %v329
    %331 = vmatprep.subr.mxu0 0.0
    %v332 = vand.u32 %v294, 4294901760
    %333 = vmatpush1.msra.mxu0 %v332
    %334 = vmatprep.subr.mxu0 0.0
    %v335 = vand.u32 %v293, 4294901760
    %336 = vmatpush1.msra.mxu0 %v335
    %337 = vmatprep.subr.mxu0 0.0
    %v338 = vand.u32 %v292, 4294901760
    %339 = vmatpush1.msra.mxu0 %v338
    %340 = vmatprep.subr.mxu0 0.0
    %v341 = vand.u32 %v291, 4294901760
    %342 = vmatpush1.msra.mxu0 %v341
    %343 = vmatprep.subr.mxu0 0.0
    %v344 = vand.u32 %v290, 4294901760
    %345 = vmatpush1.msra.mxu0 %v344
    %346 = vmatprep.subr.mxu0 0.0
    %v347 = vand.u32 %v289, 4294901760
    %348 = vmatpush1.msra.mxu0 %v347
    %349 = vmatprep.subr.mxu0 0.0
    %v350 = vand.u32 %v288, 4294901760
    %351 = vmatpush1.msra.mxu0 %v350
    %352 = vmatprep.subr.mxu0 0.0
    %353 = vmatpush2.msra.mxu0 0.0
    %354 = vmatprep.subr.mxu0 0.0
    %355 = vmatpush2.msra.mxu0 0.0
    %356 = vmatprep.subr.mxu0 0.0
    %357 = vmatpush2.msra.mxu0 0.0
    %358 = vmatprep.subr.mxu0 0.0
    %359 = vmatpush2.msra.mxu0 0.0
    %360 = vmatprep.subr.mxu0 0.0
    %361 = vmatpush2.msra.mxu0 0.0
    %362 = vmatprep.subr.mxu0 0.0
    %363 = vmatpush2.msra.mxu0 0.0
    %364 = vmatprep.subr.mxu0 0.0
    %365 = vmatpush2.msra.mxu0 0.0
    %366 = vmatprep.subr.mxu0 0.0
    %367 = vmatpush2.msra.mxu0 0.0
    %368 = vmatprep.subr.mxu0 0.0
    %369 = vmatpush2.msra.mxu0 0.0
    %370 = vmatprep.subr.mxu0 0.0
    %371 = vmatpush2.msra.mxu0 0.0
    %372 = vmatprep.subr.mxu0 0.0
    %373 = vmatpush2.msra.mxu0 0.0
    %374 = vmatprep.subr.mxu0 0.0
    %375 = vmatpush2.msra.mxu0 0.0
    %376 = vmatprep.subr.mxu0 0.0
    %377 = vmatpush2.msra.mxu0 0.0
    %378 = vmatprep.subr.mxu0 0.0
    %379 = vmatpush2.msra.mxu0 0.0
    %380 = vmatprep.subr.mxu0 0.0
    %381 = vmatpush2.msra.mxu0 0.0
    %382 = vmatprep.subr.mxu0 0.0
    %383 = vmatpush2.msra.mxu0 0.0
    %384 = vmatprep.mubr.f32.mxu0 0.0
    %v385 = vand.u32 %v270, 4294901760
    %v386 = vsub.f32 %v270, %v385
    %v387 = vand.u32 %v386, 4294901760
    %v388 = vsub.f32 %v386, %v387
    %v389 = vand.u32 %v388, 4294901760
    %390 = vmatmul.mubr.f32.gmra.mxu0 %v389
    %v391 = vpop.f32.mrf.mxu0
    %v392 = vadd.f32 0.0, %v391
    %v393 = vpop.f32.mrf.mxu0
    %394 = vdwg.mxu0
    %395 = vmatprep.subr.mxu0 0.0
    %v396 = vand.u32 %v303, 4294901760
    %v397 = vsub.f32 %v303, %v396
    %v398 = vand.u32 %v397, 4294901760
    %v399 = vsub.f32 %v397, %v398
    %v400 = vand.u32 %v399, 4294901760
    %401 = vmatpush1.msra.mxu0 %v400
    %402 = vmatprep.subr.mxu0 0.0
    %v403 = vand.u32 %v302, 4294901760
    %v404 = vsub.f32 %v302, %v403
    %v405 = vand.u32 %v404, 4294901760
    %v406 = vsub.f32 %v404, %v405
    %v407 = vand.u32 %v406, 4294901760
    %408 = vmatpush1.msra.mxu0 %v407
    %409 = vmatprep.subr.mxu0 0.0
    %v410 = vand.u32 %v301, 4294901760
    %v411 = vsub.f32 %v301, %v410
    %v412 = vand.u32 %v411, 4294901760
    %v413 = vsub.f32 %v411, %v412
    %v414 = vand.u32 %v413, 4294901760
    %415 = vmatpush1.msra.mxu0 %v414
    %416 = vmatprep.subr.mxu0 0.0
    %v417 = vand.u32 %v300, 4294901760
    %v418 = vsub.f32 %v300, %v417
    %v419 = vand.u32 %v418, 4294901760
    %v420 = vsub.f32 %v418, %v419
    %v421 = vand.u32 %v420, 4294901760
    %422 = vmatpush1.msra.mxu0 %v421
    %423 = vmatprep.subr.mxu0 0.0
    %v424 = vand.u32 %v299, 4294901760
    %v425 = vsub.f32 %v299, %v424
    %v426 = vand.u32 %v425, 4294901760
    %v427 = vsub.f32 %v425, %v426
    %v428 = vand.u32 %v427, 4294901760
    %429 = vmatpush1.msra.mxu0 %v428
    %430 = vmatprep.subr.mxu0 0.0
    %v431 = vand.u32 %v298, 4294901760
    %v432 = vsub.f32 %v298, %v431
    %v433 = vand.u32 %v432, 4294901760
    %v434 = vsub.f32 %v432, %v433
    %v435 = vand.u32 %v434, 4294901760
    %436 = vmatpush1.msra.mxu0 %v435
    %437 = vmatprep.subr.mxu0 0.0
    %v438 = vand.u32 %v297, 4294901760
    %v439 = vsub.f32 %v297, %v438
    %v440 = vand.u32 %v439, 4294901760
    %v441 = vsub.f32 %v439, %v440
    %v442 = vand.u32 %v441, 4294901760
    %443 = vmatpush1.msra.mxu0 %v442
    %444 = vmatprep.subr.mxu0 0.0
    %v445 = vand.u32 %v296, 4294901760
    %v446 = vsub.f32 %v296, %v445
    %v447 = vand.u32 %v446, 4294901760
    %v448 = vsub.f32 %v446, %v447
    %v449 = vand.u32 %v448, 4294901760
    %450 = vmatpush1.msra.mxu0 %v449
    %451 = vmatprep.subr.mxu0 0.0
    %v452 = vand.u32 %v295, 4294901760
    %v453 = vsub.f32 %v295, %v452
    %v454 = vand.u32 %v453, 4294901760
    %v455 = vsub.f32 %v453, %v454
    %v456 = vand.u32 %v455, 4294901760
    %457 = vmatpush1.msra.mxu0 %v456
    %458 = vmatprep.subr.mxu0 0.0
    %v459 = vand.u32 %v294, 4294901760
    %v460 = vsub.f32 %v294, %v459
    %v461 = vand.u32 %v460, 4294901760
    %v462 = vsub.f32 %v460, %v461
    %v463 = vand.u32 %v462, 4294901760
    %464 = vmatpush1.msra.mxu0 %v463
    %465 = vmatprep.subr.mxu0 0.0
    %v466 = vand.u32 %v293, 4294901760
    %v467 = vsub.f32 %v293, %v466
    %v468 = vand.u32 %v467, 4294901760
    %v469 = vsub.f32 %v467, %v468
    %v470 = vand.u32 %v469, 4294901760
    %471 = vmatpush1.msra.mxu0 %v470
    %472 = vmatprep.subr.mxu0 0.0
    %v473 = vand.u32 %v292, 4294901760
    %v474 = vsub.f32 %v292, %v473
    %v475 = vand.u32 %v474, 4294901760
    %v476 = vsub.f32 %v474, %v475
    %v477 = vand.u32 %v476, 4294901760
    %478 = vmatpush1.msra.mxu0 %v477
    %479 = vmatprep.subr.mxu0 0.0
    %v480 = vand.u32 %v291, 4294901760
    %v481 = vsub.f32 %v291, %v480
    %v482 = vand.u32 %v481, 4294901760
    %v483 = vsub.f32 %v481, %v482
    %v484 = vand.u32 %v483, 4294901760
    %485 = vmatpush1.msra.mxu0 %v484
    %486 = vmatprep.subr.mxu0 0.0
    %v487 = vand.u32 %v290, 4294901760
    %v488 = vsub.f32 %v290, %v487
    %v489 = vand.u32 %v488, 4294901760
    %v490 = vsub.f32 %v488, %v489
    %v491 = vand.u32 %v490, 4294901760
    %492 = vmatpush1.msra.mxu0 %v491
    %493 = vmatprep.subr.mxu0 0.0
    %v494 = vand.u32 %v289, 4294901760
    %v495 = vsub.f32 %v289, %v494
    %v496 = vand.u32 %v495, 4294901760
    %v497 = vsub.f32 %v495, %v496
    %v498 = vand.u32 %v497, 4294901760
    %499 = vmatpush1.msra.mxu0 %v498
    %500 = vmatprep.subr.mxu0 0.0
    %v501 = vand.u32 %v288, 4294901760
    %v502 = vsub.f32 %v288, %v501
    %v503 = vand.u32 %v502, 4294901760
    %v504 = vsub.f32 %v502, %v503
    %v505 = vand.u32 %v504, 4294901760
    %506 = vmatpush1.msra.mxu0 %v505
    %507 = vmatprep.subr.mxu0 0.0
    %508 = vmatpush2.msra.mxu0 0.0
    %509 = vmatprep.subr.mxu0 0.0
    %510 = vmatpush2.msra.mxu0 0.0
    %511 = vmatprep.subr.mxu0 0.0
    %512 = vmatpush2.msra.mxu0 0.0
    %513 = vmatprep.subr.mxu0 0.0
    %514 = vmatpush2.msra.mxu0 0.0
    %515 = vmatprep.subr.mxu0 0.0
    %516 = vmatpush2.msra.mxu0 0.0
    %517 = vmatprep.subr.mxu0 0.0
    %518 = vmatpush2.msra.mxu0 0.0
    %519 = vmatprep.subr.mxu0 0.0
    %520 = vmatpush2.msra.mxu0 0.0
    %521 = vmatprep.subr.mxu0 0.0
    %522 = vmatpush2.msra.mxu0 0.0
    %523 = vmatprep.subr.mxu0 0.0
    %524 = vmatpush2.msra.mxu0 0.0
    %525 = vmatprep.subr.mxu0 0.0
    %526 = vmatpush2.msra.mxu0 0.0
    %527 = vmatprep.subr.mxu0 0.0
    %528 = vmatpush2.msra.mxu0 0.0
    %529 = vmatprep.subr.mxu0 0.0
    %530 = vmatpush2.msra.mxu0 0.0
    %531 = vmatprep.subr.mxu0 0.0
    %532 = vmatpush2.msra.mxu0 0.0
    %533 = vmatprep.subr.mxu0 0.0
    %534 = vmatpush2.msra.mxu0 0.0
    %535 = vmatprep.subr.mxu0 0.0
    %536 = vmatpush2.msra.mxu0 0.0
    %537 = vmatprep.subr.mxu0 0.0
    %538 = vmatpush2.msra.mxu0 0.0
    %539 = vmatprep.mubr.f32.mxu0 0.0
    %v540 = vand.u32 %v270, 4294901760
    %541 = vmatmul.mubr.f32.gmra.mxu0 %v540
    %v542 = vpop.f32.mrf.mxu0
    %v543 = vadd.f32 %v392, %v542
    %v544 = vpop.f32.mrf.mxu0
    %545 = vdwg.mxu0
    %546 = vmatprep.subr.mxu0 0.0
    %v547 = vand.u32 %v303, 4294901760
    %v548 = vsub.f32 %v303, %v547
    %549 = vmatpush1.msra.mxu0 %v548
    %550 = vmatprep.subr.mxu0 0.0
    %v551 = vand.u32 %v302, 4294901760
    %v552 = vsub.f32 %v302, %v551
    %553 = vmatpush1.msra.mxu0 %v552
    %554 = vmatprep.subr.mxu0 0.0
    %v555 = vand.u32 %v301, 4294901760
    %v556 = vsub.f32 %v301, %v555
    %557 = vmatpush1.msra.mxu0 %v556
    %558 = vmatprep.subr.mxu0 0.0
    %v559 = vand.u32 %v300, 4294901760
    %v560 = vsub.f32 %v300, %v559
    %561 = vmatpush1.msra.mxu0 %v560
    %562 = vmatprep.subr.mxu0 0.0
    %v563 = vand.u32 %v299, 4294901760
    %v564 = vsub.f32 %v299, %v563
    %565 = vmatpush1.msra.mxu0 %v564
    %566 = vmatprep.subr.mxu0 0.0
    %v567 = vand.u32 %v298, 4294901760
    %v568 = vsub.f32 %v298, %v567
    %569 = vmatpush1.msra.mxu0 %v568
    %570 = vmatprep.subr.mxu0 0.0
    %v571 = vand.u32 %v297, 4294901760
    %v572 = vsub.f32 %v297, %v571
    %573 = vmatpush1.msra.mxu0 %v572
    %574 = vmatprep.subr.mxu0 0.0
    %v575 = vand.u32 %v296, 4294901760
    %v576 = vsub.f32 %v296, %v575
    %577 = vmatpush1.msra.mxu0 %v576
    %578 = vmatprep.subr.mxu0 0.0
    %v579 = vand.u32 %v295, 4294901760
    %v580 = vsub.f32 %v295, %v579
    %581 = vmatpush1.msra.mxu0 %v580
    %582 = vmatprep.subr.mxu0 0.0
    %v583 = vand.u32 %v294, 4294901760
    %v584 = vsub.f32 %v294, %v583
    %585 = vmatpush1.msra.mxu0 %v584
    %586 = vmatprep.subr.mxu0 0.0
    %v587 = vand.u32 %v293, 4294901760
    %v588 = vsub.f32 %v293, %v587
    %589 = vmatpush1.msra.mxu0 %v588
    %590 = vmatprep.subr.mxu0 0.0
    %v591 = vand.u32 %v292, 4294901760
    %v592 = vsub.f32 %v292, %v591
    %593 = vmatpush1.msra.mxu0 %v592
    %594 = vmatprep.subr.mxu0 0.0
    %v595 = vand.u32 %v291, 4294901760
    %v596 = vsub.f32 %v291, %v595
    %597 = vmatpush1.msra.mxu0 %v596
    %598 = vmatprep.subr.mxu0 0.0
    %v599 = vand.u32 %v290, 4294901760
    %v600 = vsub.f32 %v290, %v599
    %601 = vmatpush1.msra.mxu0 %v600
    %602 = vmatprep.subr.mxu0 0.0
    %v603 = vand.u32 %v289, 4294901760
    %v604 = vsub.f32 %v289, %v603
    %605 = vmatpush1.msra.mxu0 %v604
    %606 = vmatprep.subr.mxu0 0.0
    %v607 = vand.u32 %v288, 4294901760
    %v608 = vsub.f32 %v288, %v607
    %609 = vmatpush1.msra.mxu0 %v608
    %610 = vmatprep.subr.mxu0 0.0
    %611 = vmatpush2.msra.mxu0 0.0
    %612 = vmatprep.subr.mxu0 0.0
    %613 = vmatpush2.msra.mxu0 0.0
    %614 = vmatprep.subr.mxu0 0.0
    %615 = vmatpush2.msra.mxu0 0.0
    %616 = vmatprep.subr.mxu0 0.0
    %617 = vmatpush2.msra.mxu0 0.0
    %618 = vmatprep.subr.mxu0 0.0
    %619 = vmatpush2.msra.mxu0 0.0
    %620 = vmatprep.subr.mxu0 0.0
    %621 = vmatpush2.msra.mxu0 0.0
    %622 = vmatprep.subr.mxu0 0.0
    %623 = vmatpush2.msra.mxu0 0.0
    %624 = vmatprep.subr.mxu0 0.0
    %625 = vmatpush2.msra.mxu0 0.0
    %626 = vmatprep.subr.mxu0 0.0
    %627 = vmatpush2.msra.mxu0 0.0
    %628 = vmatprep.subr.mxu0 0.0
    %629 = vmatpush2.msra.mxu0 0.0
    %630 = vmatprep.subr.mxu0 0.0
    %631 = vmatpush2.msra.mxu0 0.0
    %632 = vmatprep.subr.mxu0 0.0
    %633 = vmatpush2.msra.mxu0 0.0
    %634 = vmatprep.subr.mxu0 0.0
    %635 = vmatpush2.msra.mxu0 0.0
    %636 = vmatprep.subr.mxu0 0.0
    %637 = vmatpush2.msra.mxu0 0.0
    %638 = vmatprep.subr.mxu0 0.0
    %639 = vmatpush2.msra.mxu0 0.0
    %640 = vmatprep.subr.mxu0 0.0
    %641 = vmatpush2.msra.mxu0 0.0
    %642 = vmatprep.mubr.f32.mxu0 0.0
    %v643 = vand.u32 %v270, 4294901760
    %v644 = vsub.f32 %v270, %v643
    %645 = vmatmul.mubr.f32.gmra.mxu0 %v644
    %v646 = vpop.f32.mrf.mxu0
    %v647 = vadd.f32 %v543, %v646
    %v648 = vpop.f32.mrf.mxu0
    %649 = vdwg.mxu0
    %650 = vmatprep.subr.mxu0 0.0
    %v651 = vand.u32 %v303, 4294901760
    %652 = vmatpush1.msra.mxu0 %v651
    %653 = vmatprep.subr.mxu0 0.0
    %v654 = vand.u32 %v302, 4294901760
    %655 = vmatpush1.msra.mxu0 %v654
    %656 = vmatprep.subr.mxu0 0.0
    %v657 = vand.u32 %v301, 4294901760
    %658 = vmatpush1.msra.mxu0 %v657
    %659 = vmatprep.subr.mxu0 0.0
    %v660 = vand.u32 %v300, 4294901760
    %661 = vmatpush1.msra.mxu0 %v660
    %662 = vmatprep.subr.mxu0 0.0
    %v663 = vand.u32 %v299, 4294901760
    %664 = vmatpush1.msra.mxu0 %v663
    %665 = vmatprep.subr.mxu0 0.0
    %v666 = vand.u32 %v298, 4294901760
    %667 = vmatpush1.msra.mxu0 %v666
    %668 = vmatprep.subr.mxu0 0.0
    %v669 = vand.u32 %v297, 4294901760
    %670 = vmatpush1.msra.mxu0 %v669
    %671 = vmatprep.subr.mxu0 0.0
    %v672 = vand.u32 %v296, 4294901760
    %673 = vmatpush1.msra.mxu0 %v672
    %674 = vmatprep.subr.mxu0 0.0
    %v675 = vand.u32 %v295, 4294901760
    %676 = vmatpush1.msra.mxu0 %v675
    %677 = vmatprep.subr.mxu0 0.0
    %v678 = vand.u32 %v294, 4294901760
    %679 = vmatpush1.msra.mxu0 %v678
    %680 = vmatprep.subr.mxu0 0.0
    %v681 = vand.u32 %v293, 4294901760
    %682 = vmatpush1.msra.mxu0 %v681
    %683 = vmatprep.subr.mxu0 0.0
    %v684 = vand.u32 %v292, 4294901760
    %685 = vmatpush1.msra.mxu0 %v684
    %686 = vmatprep.subr.mxu0 0.0
    %v687 = vand.u32 %v291, 4294901760
    %688 = vmatpush1.msra.mxu0 %v687
    %689 = vmatprep.subr.mxu0 0.0
    %v690 = vand.u32 %v290, 4294901760
    %691 = vmatpush1.msra.mxu0 %v690
    %692 = vmatprep.subr.mxu0 0.0
    %v693 = vand.u32 %v289, 4294901760
    %694 = vmatpush1.msra.mxu0 %v693
    %695 = vmatprep.subr.mxu0 0.0
    %v696 = vand.u32 %v288, 4294901760
    %697 = vmatpush1.msra.mxu0 %v696
    %698 = vmatprep.subr.mxu0 0.0
    %699 = vmatpush2.msra.mxu0 0.0
    %700 = vmatprep.subr.mxu0 0.0
    %701 = vmatpush2.msra.mxu0 0.0
    %702 = vmatprep.subr.mxu0 0.0
    %703 = vmatpush2.msra.mxu0 0.0
    %704 = vmatprep.subr.mxu0 0.0
    %705 = vmatpush2.msra.mxu0 0.0
    %706 = vmatprep.subr.mxu0 0.0
    %707 = vmatpush2.msra.mxu0 0.0
    %708 = vmatprep.subr.mxu0 0.0
    %709 = vmatpush2.msra.mxu0 0.0
    %710 = vmatprep.subr.mxu0 0.0
    %711 = vmatpush2.msra.mxu0 0.0
    %712 = vmatprep.subr.mxu0 0.0
    %713 = vmatpush2.msra.mxu0 0.0
    %714 = vmatprep.subr.mxu0 0.0
    %715 = vmatpush2.msra.mxu0 0.0
    %716 = vmatprep.subr.mxu0 0.0
    %717 = vmatpush2.msra.mxu0 0.0
    %718 = vmatprep.subr.mxu0 0.0
    %719 = vmatpush2.msra.mxu0 0.0
    %720 = vmatprep.subr.mxu0 0.0
    %721 = vmatpush2.msra.mxu0 0.0
    %722 = vmatprep.subr.mxu0 0.0
    %723 = vmatpush2.msra.mxu0 0.0
    %724 = vmatprep.subr.mxu0 0.0
    %725 = vmatpush2.msra.mxu0 0.0
    %726 = vmatprep.subr.mxu0 0.0
    %727 = vmatpush2.msra.mxu0 0.0
    %728 = vmatprep.subr.mxu0 0.0
    %729 = vmatpush2.msra.mxu0 0.0
    %730 = vmatprep.mubr.f32.mxu0 0.0
    %v731 = vand.u32 %v270, 4294901760
    %v732 = vsub.f32 %v270, %v731
    %v733 = vand.u32 %v732, 4294901760
    %734 = vmatmul.mubr.f32.gmra.mxu0 %v733
    %v735 = vpop.f32.mrf.mxu0
    %v736 = vadd.f32 %v647, %v735
    %v737 = vpop.f32.mrf.mxu0
    %738 = vdwg.mxu0
    %739 = vmatprep.subr.mxu0 0.0
    %v740 = vand.u32 %v303, 4294901760
    %v741 = vsub.f32 %v303, %v740
    %v742 = vand.u32 %v741, 4294901760
    %743 = vmatpush1.msra.mxu0 %v742
    %744 = vmatprep.subr.mxu0 0.0
    %v745 = vand.u32 %v302, 4294901760
    %v746 = vsub.f32 %v302, %v745
    %v747 = vand.u32 %v746, 4294901760
    %748 = vmatpush1.msra.mxu0 %v747
    %749 = vmatprep.subr.mxu0 0.0
    %v750 = vand.u32 %v301, 4294901760
    %v751 = vsub.f32 %v301, %v750
    %v752 = vand.u32 %v751, 4294901760
    %753 = vmatpush1.msra.mxu0 %v752
    %754 = vmatprep.subr.mxu0 0.0
    %v755 = vand.u32 %v300, 4294901760
    %v756 = vsub.f32 %v300, %v755
    %v757 = vand.u32 %v756, 4294901760
    %758 = vmatpush1.msra.mxu0 %v757
    %759 = vmatprep.subr.mxu0 0.0
    %v760 = vand.u32 %v299, 4294901760
    %v761 = vsub.f32 %v299, %v760
    %v762 = vand.u32 %v761, 4294901760
    %763 = vmatpush1.msra.mxu0 %v762
    %764 = vmatprep.subr.mxu0 0.0
    %v765 = vand.u32 %v298, 4294901760
    %v766 = vsub.f32 %v298, %v765
    %v767 = vand.u32 %v766, 4294901760
    %768 = vmatpush1.msra.mxu0 %v767
    %769 = vmatprep.subr.mxu0 0.0
    %v770 = vand.u32 %v297, 4294901760
    %v771 = vsub.f32 %v297, %v770
    %v772 = vand.u32 %v771, 4294901760
    %773 = vmatpush1.msra.mxu0 %v772
    %774 = vmatprep.subr.mxu0 0.0
    %v775 = vand.u32 %v296, 4294901760
    %v776 = vsub.f32 %v296, %v775
    %v777 = vand.u32 %v776, 4294901760
    %778 = vmatpush1.msra.mxu0 %v777
    %779 = vmatprep.subr.mxu0 0.0
    %v780 = vand.u32 %v295, 4294901760
    %v781 = vsub.f32 %v295, %v780
    %v782 = vand.u32 %v781, 4294901760
    %783 = vmatpush1.msra.mxu0 %v782
    %784 = vmatprep.subr.mxu0 0.0
    %v785 = vand.u32 %v294, 4294901760
    %v786 = vsub.f32 %v294, %v785
    %v787 = vand.u32 %v786, 4294901760
    %788 = vmatpush1.msra.mxu0 %v787
    %789 = vmatprep.subr.mxu0 0.0
    %v790 = vand.u32 %v293, 4294901760
    %v791 = vsub.f32 %v293, %v790
    %v792 = vand.u32 %v791, 4294901760
    %793 = vmatpush1.msra.mxu0 %v792
    %794 = vmatprep.subr.mxu0 0.0
    %v795 = vand.u32 %v292, 4294901760
    %v796 = vsub.f32 %v292, %v795
    %v797 = vand.u32 %v796, 4294901760
    %798 = vmatpush1.msra.mxu0 %v797
    %799 = vmatprep.subr.mxu0 0.0
    %v800 = vand.u32 %v291, 4294901760
    %v801 = vsub.f32 %v291, %v800
    %v802 = vand.u32 %v801, 4294901760
    %803 = vmatpush1.msra.mxu0 %v802
    %804 = vmatprep.subr.mxu0 0.0
    %v805 = vand.u32 %v290, 4294901760
    %v806 = vsub.f32 %v290, %v805
    %v807 = vand.u32 %v806, 4294901760
    %808 = vmatpush1.msra.mxu0 %v807
    %809 = vmatprep.subr.mxu0 0.0
    %v810 = vand.u32 %v289, 4294901760
    %v811 = vsub.f32 %v289, %v810
    %v812 = vand.u32 %v811, 4294901760
    %813 = vmatpush1.msra.mxu0 %v812
    %814 = vmatprep.subr.mxu0 0.0
    %v815 = vand.u32 %v288, 4294901760
    %v816 = vsub.f32 %v288, %v815
    %v817 = vand.u32 %v816, 4294901760
    %818 = vmatpush1.msra.mxu0 %v817
    %819 = vmatprep.subr.mxu0 0.0
    %820 = vmatpush2.msra.mxu0 0.0
    %821 = vmatprep.subr.mxu0 0.0
    %822 = vmatpush2.msra.mxu0 0.0
    %823 = vmatprep.subr.mxu0 0.0
    %824 = vmatpush2.msra.mxu0 0.0
    %825 = vmatprep.subr.mxu0 0.0
    %826 = vmatpush2.msra.mxu0 0.0
    %827 = vmatprep.subr.mxu0 0.0
    %828 = vmatpush2.msra.mxu0 0.0
    %829 = vmatprep.subr.mxu0 0.0
    %830 = vmatpush2.msra.mxu0 0.0
    %831 = vmatprep.subr.mxu0 0.0
    %832 = vmatpush2.msra.mxu0 0.0
    %833 = vmatprep.subr.mxu0 0.0
    %834 = vmatpush2.msra.mxu0 0.0
    %835 = vmatprep.subr.mxu0 0.0
    %836 = vmatpush2.msra.mxu0 0.0
    %837 = vmatprep.subr.mxu0 0.0
    %838 = vmatpush2.msra.mxu0 0.0
    %839 = vmatprep.subr.mxu0 0.0
    %840 = vmatpush2.msra.mxu0 0.0
    %841 = vmatprep.subr.mxu0 0.0
    %842 = vmatpush2.msra.mxu0 0.0
    %843 = vmatprep.subr.mxu0 0.0
    %844 = vmatpush2.msra.mxu0 0.0
    %845 = vmatprep.subr.mxu0 0.0
    %846 = vmatpush2.msra.mxu0 0.0
    %847 = vmatprep.subr.mxu0 0.0
    %848 = vmatpush2.msra.mxu0 0.0
    %849 = vmatprep.subr.mxu0 0.0
    %850 = vmatpush2.msra.mxu0 0.0
    %851 = vmatprep.mubr.f32.mxu0 0.0
    %v852 = vand.u32 %v270, 4294901760
    %853 = vmatmul.mubr.f32.gmra.mxu0 %v852
    %v854 = vpop.f32.mrf.mxu0
    %v855 = vadd.f32 %v736, %v854
    %v856 = vpop.f32.mrf.mxu0
    %857 = vdwg.mxu0
    %858 = vmatprep.subr.mxu0 0.0
    %v859 = vand.u32 %v303, 4294901760
    %860 = vmatpush1.msra.mxu0 %v859
    %861 = vmatprep.subr.mxu0 0.0
    %v862 = vand.u32 %v302, 4294901760
    %863 = vmatpush1.msra.mxu0 %v862
    %864 = vmatprep.subr.mxu0 0.0
    %v865 = vand.u32 %v301, 4294901760
    %866 = vmatpush1.msra.mxu0 %v865
    %867 = vmatprep.subr.mxu0 0.0
    %v868 = vand.u32 %v300, 4294901760
    %869 = vmatpush1.msra.mxu0 %v868
    %870 = vmatprep.subr.mxu0 0.0
    %v871 = vand.u32 %v299, 4294901760
    %872 = vmatpush1.msra.mxu0 %v871
    %873 = vmatprep.subr.mxu0 0.0
    %v874 = vand.u32 %v298, 4294901760
    %875 = vmatpush1.msra.mxu0 %v874
    %876 = vmatprep.subr.mxu0 0.0
    %v877 = vand.u32 %v297, 4294901760
    %878 = vmatpush1.msra.mxu0 %v877
    %879 = vmatprep.subr.mxu0 0.0
    %v880 = vand.u32 %v296, 4294901760
    %881 = vmatpush1.msra.mxu0 %v880
    %882 = vmatprep.subr.mxu0 0.0
    %v883 = vand.u32 %v295, 4294901760
    %884 = vmatpush1.msra.mxu0 %v883
    %885 = vmatprep.subr.mxu0 0.0
    %v886 = vand.u32 %v294, 4294901760
    %887 = vmatpush1.msra.mxu0 %v886
    %888 = vmatprep.subr.mxu0 0.0
    %v889 = vand.u32 %v293, 4294901760
    %890 = vmatpush1.msra.mxu0 %v889
    %891 = vmatprep.subr.mxu0 0.0
    %v892 = vand.u32 %v292, 4294901760
    %893 = vmatpush1.msra.mxu0 %v892
    %894 = vmatprep.subr.mxu0 0.0
    %v895 = vand.u32 %v291, 4294901760
    %896 = vmatpush1.msra.mxu0 %v895
    %897 = vmatprep.subr.mxu0 0.0
    %v898 = vand.u32 %v290, 4294901760
    %899 = vmatpush1.msra.mxu0 %v898
    %900 = vmatprep.subr.mxu0 0.0
    %v901 = vand.u32 %v289, 4294901760
    %902 = vmatpush1.msra.mxu0 %v901
    %903 = vmatprep.subr.mxu0 0.0
    %v904 = vand.u32 %v288, 4294901760
    %905 = vmatpush1.msra.mxu0 %v904
    %906 = vmatprep.subr.mxu0 0.0
    %907 = vmatpush2.msra.mxu0 0.0
    %908 = vmatprep.subr.mxu0 0.0
    %909 = vmatpush2.msra.mxu0 0.0
    %910 = vmatprep.subr.mxu0 0.0
    %911 = vmatpush2.msra.mxu0 0.0
    %912 = vmatprep.subr.mxu0 0.0
    %913 = vmatpush2.msra.mxu0 0.0
    %914 = vmatprep.subr.mxu0 0.0
    %915 = vmatpush2.msra.mxu0 0.0
    %916 = vmatprep.subr.mxu0 0.0
    %917 = vmatpush2.msra.mxu0 0.0
    %918 = vmatprep.subr.mxu0 0.0
    %919 = vmatpush2.msra.mxu0 0.0
    %920 = vmatprep.subr.mxu0 0.0
    %921 = vmatpush2.msra.mxu0 0.0
    %922 = vmatprep.subr.mxu0 0.0
    %923 = vmatpush2.msra.mxu0 0.0
    %924 = vmatprep.subr.mxu0 0.0
    %925 = vmatpush2.msra.mxu0 0.0
    %926 = vmatprep.subr.mxu0 0.0
    %927 = vmatpush2.msra.mxu0 0.0
    %928 = vmatprep.subr.mxu0 0.0
    %929 = vmatpush2.msra.mxu0 0.0
    %930 = vmatprep.subr.mxu0 0.0
    %931 = vmatpush2.msra.mxu0 0.0
    %932 = vmatprep.subr.mxu0 0.0
    %933 = vmatpush2.msra.mxu0 0.0
    %934 = vmatprep.subr.mxu0 0.0
    %935 = vmatpush2.msra.mxu0 0.0
    %936 = vmatprep.subr.mxu0 0.0
    %937 = vmatpush2.msra.mxu0 0.0
    %938 = vmatprep.mubr.f32.mxu0 0.0
    %v939 = vand.u32 %v270, 4294901760
    %940 = vmatmul.mubr.f32.gmra.mxu0 %v939
    %v941 = vpop.f32.mrf.mxu0
    %v942 = vadd.f32 %v855, %v941
    %v943 = vpop.f32.mrf.mxu0
    %944 = vdwg.mxu0
    %945 = vmatprep.subr.mxu0 0.0
    %v946 = vand.u32 %v286, 4294901760
    %947 = vmatpush1.msra.mxu0 %v946
    %948 = vmatprep.subr.mxu0 0.0
    %v949 = vand.u32 %v285, 4294901760
    %950 = vmatpush1.msra.mxu0 %v949
    %951 = vmatprep.subr.mxu0 0.0
    %v952 = vand.u32 %v284, 4294901760
    %953 = vmatpush1.msra.mxu0 %v952
    %954 = vmatprep.subr.mxu0 0.0
    %v955 = vand.u32 %v283, 4294901760
    %956 = vmatpush1.msra.mxu0 %v955
    %957 = vmatprep.subr.mxu0 0.0
    %v958 = vand.u32 %v282, 4294901760
    %959 = vmatpush1.msra.mxu0 %v958
    %960 = vmatprep.subr.mxu0 0.0
    %v961 = vand.u32 %v281, 4294901760
    %962 = vmatpush1.msra.mxu0 %v961
    %963 = vmatprep.subr.mxu0 0.0
    %v964 = vand.u32 %v280, 4294901760
    %965 = vmatpush1.msra.mxu0 %v964
    %966 = vmatprep.subr.mxu0 0.0
    %v967 = vand.u32 %v279, 4294901760
    %968 = vmatpush1.msra.mxu0 %v967
    %969 = vmatprep.subr.mxu0 0.0
    %v970 = vand.u32 %v278, 4294901760
    %971 = vmatpush1.msra.mxu0 %v970
    %972 = vmatprep.subr.mxu0 0.0
    %v973 = vand.u32 %v277, 4294901760
    %974 = vmatpush1.msra.mxu0 %v973
    %975 = vmatprep.subr.mxu0 0.0
    %v976 = vand.u32 %v276, 4294901760
    %977 = vmatpush1.msra.mxu0 %v976
    %978 = vmatprep.subr.mxu0 0.0
    %v979 = vand.u32 %v275, 4294901760
    %980 = vmatpush1.msra.mxu0 %v979
    %981 = vmatprep.subr.mxu0 0.0
    %v982 = vand.u32 %v274, 4294901760
    %983 = vmatpush1.msra.mxu0 %v982
    %984 = vmatprep.subr.mxu0 0.0
    %v985 = vand.u32 %v273, 4294901760
    %986 = vmatpush1.msra.mxu0 %v985
    %987 = vmatprep.subr.mxu0 0.0
    %v988 = vand.u32 %v272, 4294901760
    %989 = vmatpush1.msra.mxu0 %v988
    %990 = vmatprep.subr.mxu0 0.0
    %v991 = vand.u32 %v271, 4294901760
    %992 = vmatpush1.msra.mxu0 %v991
    %993 = vmatprep.subr.mxu0 0.0
    %994 = vmatpush2.msra.mxu0 0.0
    %995 = vmatprep.subr.mxu0 0.0
    %996 = vmatpush2.msra.mxu0 0.0
    %997 = vmatprep.subr.mxu0 0.0
    %998 = vmatpush2.msra.mxu0 0.0
    %999 = vmatprep.subr.mxu0 0.0
    %1000 = vmatpush2.msra.mxu0 0.0
    %1001 = vmatprep.subr.mxu0 0.0
    %1002 = vmatpush2.msra.mxu0 0.0
    %1003 = vmatprep.subr.mxu0 0.0
    %1004 = vmatpush2.msra.mxu0 0.0
    %1005 = vmatprep.subr.mxu0 0.0
    %1006 = vmatpush2.msra.mxu0 0.0
    %1007 = vmatprep.subr.mxu0 0.0
    %1008 = vmatpush2.msra.mxu0 0.0
    %1009 = vmatprep.subr.mxu0 0.0
    %1010 = vmatpush2.msra.mxu0 0.0
    %1011 = vmatprep.subr.mxu0 0.0
    %1012 = vmatpush2.msra.mxu0 0.0
    %1013 = vmatprep.subr.mxu0 0.0
    %1014 = vmatpush2.msra.mxu0 0.0
    %1015 = vmatprep.subr.mxu0 0.0
    %1016 = vmatpush2.msra.mxu0 0.0
    %1017 = vmatprep.subr.mxu0 0.0
    %1018 = vmatpush2.msra.mxu0 0.0
    %1019 = vmatprep.subr.mxu0 0.0
    %1020 = vmatpush2.msra.mxu0 0.0
    %1021 = vmatprep.subr.mxu0 0.0
    %1022 = vmatpush2.msra.mxu0 0.0
    %1023 = vmatprep.subr.mxu0 0.0
    %1024 = vmatpush2.msra.mxu0 0.0
    %1025 = vmatprep.mubr.f32.mxu0 0.0
    %v1026 = vand.u32 %v167, 4294901760
    %v1027 = vsub.f32 %v167, %v1026
    %v1028 = vand.u32 %v1027, 4294901760
    %v1029 = vsub.f32 %v1027, %v1028
    %v1030 = vand.u32 %v1029, 4294901760
    %1031 = vmatmul.mubr.f32.gmra.mxu0 %v1030
    %v1032 = vpop.f32.mrf.mxu0
    %v1033 = vadd.f32 %v942, %v1032
    %v1034 = vpop.f32.mrf.mxu0
    %1035 = vdwg.mxu0
    %1036 = vmatprep.subr.mxu0 0.0
    %v1037 = vand.u32 %v286, 4294901760
    %v1038 = vsub.f32 %v286, %v1037
    %v1039 = vand.u32 %v1038, 4294901760
    %v1040 = vsub.f32 %v1038, %v1039
    %v1041 = vand.u32 %v1040, 4294901760
    %1042 = vmatpush1.msra.mxu0 %v1041
    %1043 = vmatprep.subr.mxu0 0.0
    %v1044 = vand.u32 %v285, 4294901760
    %v1045 = vsub.f32 %v285, %v1044
    %v1046 = vand.u32 %v1045, 4294901760
    %v1047 = vsub.f32 %v1045, %v1046
    %v1048 = vand.u32 %v1047, 4294901760
    %1049 = vmatpush1.msra.mxu0 %v1048
    %1050 = vmatprep.subr.mxu0 0.0
    %v1051 = vand.u32 %v284, 4294901760
    %v1052 = vsub.f32 %v284, %v1051
    %v1053 = vand.u32 %v1052, 4294901760
    %v1054 = vsub.f32 %v1052, %v1053
    %v1055 = vand.u32 %v1054, 4294901760
    %1056 = vmatpush1.msra.mxu0 %v1055
    %1057 = vmatprep.subr.mxu0 0.0
    %v1058 = vand.u32 %v283, 4294901760
    %v1059 = vsub.f32 %v283, %v1058
    %v1060 = vand.u32 %v1059, 4294901760
    %v1061 = vsub.f32 %v1059, %v1060
    %v1062 = vand.u32 %v1061, 4294901760
    %1063 = vmatpush1.msra.mxu0 %v1062
    %1064 = vmatprep.subr.mxu0 0.0
    %v1065 = vand.u32 %v282, 4294901760
    %v1066 = vsub.f32 %v282, %v1065
    %v1067 = vand.u32 %v1066, 4294901760
    %v1068 = vsub.f32 %v1066, %v1067
    %v1069 = vand.u32 %v1068, 4294901760
    %1070 = vmatpush1.msra.mxu0 %v1069
    %1071 = vmatprep.subr.mxu0 0.0
    %v1072 = vand.u32 %v281, 4294901760
    %v1073 = vsub.f32 %v281, %v1072
    %v1074 = vand.u32 %v1073, 4294901760
    %v1075 = vsub.f32 %v1073, %v1074
    %v1076 = vand.u32 %v1075, 4294901760
    %1077 = vmatpush1.msra.mxu0 %v1076
    %1078 = vmatprep.subr.mxu0 0.0
    %v1079 = vand.u32 %v280, 4294901760
    %v1080 = vsub.f32 %v280, %v1079
    %v1081 = vand.u32 %v1080, 4294901760
    %v1082 = vsub.f32 %v1080, %v1081
    %v1083 = vand.u32 %v1082, 4294901760
    %1084 = vmatpush1.msra.mxu0 %v1083
    %1085 = vmatprep.subr.mxu0 0.0
    %v1086 = vand.u32 %v279, 4294901760
    %v1087 = vsub.f32 %v279, %v1086
    %v1088 = vand.u32 %v1087, 4294901760
    %v1089 = vsub.f32 %v1087, %v1088
    %v1090 = vand.u32 %v1089, 4294901760
    %1091 = vmatpush1.msra.mxu0 %v1090
    %1092 = vmatprep.subr.mxu0 0.0
    %v1093 = vand.u32 %v278, 4294901760
    %v1094 = vsub.f32 %v278, %v1093
    %v1095 = vand.u32 %v1094, 4294901760
    %v1096 = vsub.f32 %v1094, %v1095
    %v1097 = vand.u32 %v1096, 4294901760
    %1098 = vmatpush1.msra.mxu0 %v1097
    %1099 = vmatprep.subr.mxu0 0.0
    %v1100 = vand.u32 %v277, 4294901760
    %v1101 = vsub.f32 %v277, %v1100
    %v1102 = vand.u32 %v1101, 4294901760
    %v1103 = vsub.f32 %v1101, %v1102
    %v1104 = vand.u32 %v1103, 4294901760
    %1105 = vmatpush1.msra.mxu0 %v1104
    %1106 = vmatprep.subr.mxu0 0.0
    %v1107 = vand.u32 %v276, 4294901760
    %v1108 = vsub.f32 %v276, %v1107
    %v1109 = vand.u32 %v1108, 4294901760
    %v1110 = vsub.f32 %v1108, %v1109
    %v1111 = vand.u32 %v1110, 4294901760
    %1112 = vmatpush1.msra.mxu0 %v1111
    %1113 = vmatprep.subr.mxu0 0.0
    %v1114 = vand.u32 %v275, 4294901760
    %v1115 = vsub.f32 %v275, %v1114
    %v1116 = vand.u32 %v1115, 4294901760
    %v1117 = vsub.f32 %v1115, %v1116
    %v1118 = vand.u32 %v1117, 4294901760
    %1119 = vmatpush1.msra.mxu0 %v1118
    %1120 = vmatprep.subr.mxu0 0.0
    %v1121 = vand.u32 %v274, 4294901760
    %v1122 = vsub.f32 %v274, %v1121
    %v1123 = vand.u32 %v1122, 4294901760
    %v1124 = vsub.f32 %v1122, %v1123
    %v1125 = vand.u32 %v1124, 4294901760
    %1126 = vmatpush1.msra.mxu0 %v1125
    %1127 = vmatprep.subr.mxu0 0.0
    %v1128 = vand.u32 %v273, 4294901760
    %v1129 = vsub.f32 %v273, %v1128
    %v1130 = vand.u32 %v1129, 4294901760
    %v1131 = vsub.f32 %v1129, %v1130
    %v1132 = vand.u32 %v1131, 4294901760
    %1133 = vmatpush1.msra.mxu0 %v1132
    %1134 = vmatprep.subr.mxu0 0.0
    %v1135 = vand.u32 %v272, 4294901760
    %v1136 = vsub.f32 %v272, %v1135
    %v1137 = vand.u32 %v1136, 4294901760
    %v1138 = vsub.f32 %v1136, %v1137
    %v1139 = vand.u32 %v1138, 4294901760
    %1140 = vmatpush1.msra.mxu0 %v1139
    %1141 = vmatprep.subr.mxu0 0.0
    %v1142 = vand.u32 %v271, 4294901760
    %v1143 = vsub.f32 %v271, %v1142
    %v1144 = vand.u32 %v1143, 4294901760
    %v1145 = vsub.f32 %v1143, %v1144
    %v1146 = vand.u32 %v1145, 4294901760
    %1147 = vmatpush1.msra.mxu0 %v1146
    %1148 = vmatprep.subr.mxu0 0.0
    %1149 = vmatpush2.msra.mxu0 0.0
    %1150 = vmatprep.subr.mxu0 0.0
    %1151 = vmatpush2.msra.mxu0 0.0
    %1152 = vmatprep.subr.mxu0 0.0
    %1153 = vmatpush2.msra.mxu0 0.0
    %1154 = vmatprep.subr.mxu0 0.0
    %1155 = vmatpush2.msra.mxu0 0.0
    %1156 = vmatprep.subr.mxu0 0.0
    %1157 = vmatpush2.msra.mxu0 0.0
    %1158 = vmatprep.subr.mxu0 0.0
    %1159 = vmatpush2.msra.mxu0 0.0
    %1160 = vmatprep.subr.mxu0 0.0
    %1161 = vmatpush2.msra.mxu0 0.0
    %1162 = vmatprep.subr.mxu0 0.0
    %1163 = vmatpush2.msra.mxu0 0.0
    %1164 = vmatprep.subr.mxu0 0.0
    %1165 = vmatpush2.msra.mxu0 0.0
    %1166 = vmatprep.subr.mxu0 0.0
    %1167 = vmatpush2.msra.mxu0 0.0
    %1168 = vmatprep.subr.mxu0 0.0
    %1169 = vmatpush2.msra.mxu0 0.0
    %1170 = vmatprep.subr.mxu0 0.0
    %1171 = vmatpush2.msra.mxu0 0.0
    %1172 = vmatprep.subr.mxu0 0.0
    %1173 = vmatpush2.msra.mxu0 0.0
    %1174 = vmatprep.subr.mxu0 0.0
    %1175 = vmatpush2.msra.mxu0 0.0
    %1176 = vmatprep.subr.mxu0 0.0
    %1177 = vmatpush2.msra.mxu0 0.0
    %1178 = vmatprep.subr.mxu0 0.0
    %1179 = vmatpush2.msra.mxu0 0.0
    %1180 = vmatprep.mubr.f32.mxu0 0.0
    %v1181 = vand.u32 %v167, 4294901760
    %1182 = vmatmul.mubr.f32.gmra.mxu0 %v1181
    %v1183 = vpop.f32.mrf.mxu0
    %v1184 = vadd.f32 %v1033, %v1183
    %v1185 = vpop.f32.mrf.mxu0
    %1186 = vdwg.mxu0
    %1187 = vmatprep.subr.mxu0 0.0
    %v1188 = vand.u32 %v286, 4294901760
    %v1189 = vsub.f32 %v286, %v1188
    %1190 = vmatpush1.msra.mxu0 %v1189
    %1191 = vmatprep.subr.mxu0 0.0
    %v1192 = vand.u32 %v285, 4294901760
    %v1193 = vsub.f32 %v285, %v1192
    %1194 = vmatpush1.msra.mxu0 %v1193
    %1195 = vmatprep.subr.mxu0 0.0
    %v1196 = vand.u32 %v284, 4294901760
    %v1197 = vsub.f32 %v284, %v1196
    %1198 = vmatpush1.msra.mxu0 %v1197
    %1199 = vmatprep.subr.mxu0 0.0
    %v1200 = vand.u32 %v283, 4294901760
    %v1201 = vsub.f32 %v283, %v1200
    %1202 = vmatpush1.msra.mxu0 %v1201
    %1203 = vmatprep.subr.mxu0 0.0
    %v1204 = vand.u32 %v282, 4294901760
    %v1205 = vsub.f32 %v282, %v1204
    %1206 = vmatpush1.msra.mxu0 %v1205
    %1207 = vmatprep.subr.mxu0 0.0
    %v1208 = vand.u32 %v281, 4294901760
    %v1209 = vsub.f32 %v281, %v1208
    %1210 = vmatpush1.msra.mxu0 %v1209
    %1211 = vmatprep.subr.mxu0 0.0
    %v1212 = vand.u32 %v280, 4294901760
    %v1213 = vsub.f32 %v280, %v1212
    %1214 = vmatpush1.msra.mxu0 %v1213
    %1215 = vmatprep.subr.mxu0 0.0
    %v1216 = vand.u32 %v279, 4294901760
    %v1217 = vsub.f32 %v279, %v1216
    %1218 = vmatpush1.msra.mxu0 %v1217
    %1219 = vmatprep.subr.mxu0 0.0
    %v1220 = vand.u32 %v278, 4294901760
    %v1221 = vsub.f32 %v278, %v1220
    %1222 = vmatpush1.msra.mxu0 %v1221
    %1223 = vmatprep.subr.mxu0 0.0
    %v1224 = vand.u32 %v277, 4294901760
    %v1225 = vsub.f32 %v277, %v1224
    %1226 = vmatpush1.msra.mxu0 %v1225
    %1227 = vmatprep.subr.mxu0 0.0
    %v1228 = vand.u32 %v276, 4294901760
    %v1229 = vsub.f32 %v276, %v1228
    %1230 = vmatpush1.msra.mxu0 %v1229
    %1231 = vmatprep.subr.mxu0 0.0
    %v1232 = vand.u32 %v275, 4294901760
    %v1233 = vsub.f32 %v275, %v1232
    %1234 = vmatpush1.msra.mxu0 %v1233
    %1235 = vmatprep.subr.mxu0 0.0
    %v1236 = vand.u32 %v274, 4294901760
    %v1237 = vsub.f32 %v274, %v1236
    %1238 = vmatpush1.msra.mxu0 %v1237
    %1239 = vmatprep.subr.mxu0 0.0
    %v1240 = vand.u32 %v273, 4294901760
    %v1241 = vsub.f32 %v273, %v1240
    %1242 = vmatpush1.msra.mxu0 %v1241
    %1243 = vmatprep.subr.mxu0 0.0
    %v1244 = vand.u32 %v272, 4294901760
    %v1245 = vsub.f32 %v272, %v1244
    %1246 = vmatpush1.msra.mxu0 %v1245
    %1247 = vmatprep.subr.mxu0 0.0
    %v1248 = vand.u32 %v271, 4294901760
    %v1249 = vsub.f32 %v271, %v1248
    %1250 = vmatpush1.msra.mxu0 %v1249
    %1251 = vmatprep.subr.mxu0 0.0
    %1252 = vmatpush2.msra.mxu0 0.0
    %1253 = vmatprep.subr.mxu0 0.0
    %1254 = vmatpush2.msra.mxu0 0.0
    %1255 = vmatprep.subr.mxu0 0.0
    %1256 = vmatpush2.msra.mxu0 0.0
    %1257 = vmatprep.subr.mxu0 0.0
    %1258 = vmatpush2.msra.mxu0 0.0
    %1259 = vmatprep.subr.mxu0 0.0
    %1260 = vmatpush2.msra.mxu0 0.0
    %1261 = vmatprep.subr.mxu0 0.0
    %1262 = vmatpush2.msra.mxu0 0.0
    %1263 = vmatprep.subr.mxu0 0.0
    %1264 = vmatpush2.msra.mxu0 0.0
    %1265 = vmatprep.subr.mxu0 0.0
    %1266 = vmatpush2.msra.mxu0 0.0
    %1267 = vmatprep.subr.mxu0 0.0
    %1268 = vmatpush2.msra.mxu0 0.0
    %1269 = vmatprep.subr.mxu0 0.0
    %1270 = vmatpush2.msra.mxu0 0.0
    %1271 = vmatprep.subr.mxu0 0.0
    %1272 = vmatpush2.msra.mxu0 0.0
    %1273 = vmatprep.subr.mxu0 0.0
    %1274 = vmatpush2.msra.mxu0 0.0
    %1275 = vmatprep.subr.mxu0 0.0
    %1276 = vmatpush2.msra.mxu0 0.0
    %1277 = vmatprep.subr.mxu0 0.0
    %1278 = vmatpush2.msra.mxu0 0.0
    %1279 = vmatprep.subr.mxu0 0.0
    %1280 = vmatpush2.msra.mxu0 0.0
    %1281 = vmatprep.subr.mxu0 0.0
    %1282 = vmatpush2.msra.mxu0 0.0
    %1283 = vmatprep.mubr.f32.mxu0 0.0
    %v1284 = vand.u32 %v167, 4294901760
    %v1285 = vsub.f32 %v167, %v1284
    %1286 = vmatmul.mubr.f32.gmra.mxu0 %v1285
    %v1287 = vpop.f32.mrf.mxu0
    %v1288 = vadd.f32 %v1184, %v1287
    %v1289 = vpop.f32.mrf.mxu0
    %1290 = vdwg.mxu0
    %1291 = vmatprep.subr.mxu0 0.0
    %v1292 = vand.u32 %v286, 4294901760
    %1293 = vmatpush1.msra.mxu0 %v1292
    %1294 = vmatprep.subr.mxu0 0.0
    %v1295 = vand.u32 %v285, 4294901760
    %1296 = vmatpush1.msra.mxu0 %v1295
    %1297 = vmatprep.subr.mxu0 0.0
    %v1298 = vand.u32 %v284, 4294901760
    %1299 = vmatpush1.msra.mxu0 %v1298
    %1300 = vmatprep.subr.mxu0 0.0
    %v1301 = vand.u32 %v283, 4294901760
    %1302 = vmatpush1.msra.mxu0 %v1301
    %1303 = vmatprep.subr.mxu0 0.0
    %v1304 = vand.u32 %v282, 4294901760
    %1305 = vmatpush1.msra.mxu0 %v1304
    %1306 = vmatprep.subr.mxu0 0.0
    %v1307 = vand.u32 %v281, 4294901760
    %1308 = vmatpush1.msra.mxu0 %v1307
    %1309 = vmatprep.subr.mxu0 0.0
    %v1310 = vand.u32 %v280, 4294901760
    %1311 = vmatpush1.msra.mxu0 %v1310
    %1312 = vmatprep.subr.mxu0 0.0
    %v1313 = vand.u32 %v279, 4294901760
    %1314 = vmatpush1.msra.mxu0 %v1313
    %1315 = vmatprep.subr.mxu0 0.0
    %v1316 = vand.u32 %v278, 4294901760
    %1317 = vmatpush1.msra.mxu0 %v1316
    %1318 = vmatprep.subr.mxu0 0.0
    %v1319 = vand.u32 %v277, 4294901760
    %1320 = vmatpush1.msra.mxu0 %v1319
    %1321 = vmatprep.subr.mxu0 0.0
    %v1322 = vand.u32 %v276, 4294901760
    %1323 = vmatpush1.msra.mxu0 %v1322
    %1324 = vmatprep.subr.mxu0 0.0
    %v1325 = vand.u32 %v275, 4294901760
    %1326 = vmatpush1.msra.mxu0 %v1325
    %1327 = vmatprep.subr.mxu0 0.0
    %v1328 = vand.u32 %v274, 4294901760
    %1329 = vmatpush1.msra.mxu0 %v1328
    %1330 = vmatprep.subr.mxu0 0.0
    %v1331 = vand.u32 %v273, 4294901760
    %1332 = vmatpush1.msra.mxu0 %v1331
    %1333 = vmatprep.subr.mxu0 0.0
    %v1334 = vand.u32 %v272, 4294901760
    %1335 = vmatpush1.msra.mxu0 %v1334
    %1336 = vmatprep.subr.mxu0 0.0
    %v1337 = vand.u32 %v271, 4294901760
    %1338 = vmatpush1.msra.mxu0 %v1337
    %1339 = vmatprep.subr.mxu0 0.0
    %1340 = vmatpush2.msra.mxu0 0.0
    %1341 = vmatprep.subr.mxu0 0.0
    %1342 = vmatpush2.msra.mxu0 0.0
    %1343 = vmatprep.subr.mxu0 0.0
    %1344 = vmatpush2.msra.mxu0 0.0
    %1345 = vmatprep.subr.mxu0 0.0
    %1346 = vmatpush2.msra.mxu0 0.0
    %1347 = vmatprep.subr.mxu0 0.0
    %1348 = vmatpush2.msra.mxu0 0.0
    %1349 = vmatprep.subr.mxu0 0.0
    %1350 = vmatpush2.msra.mxu0 0.0
    %1351 = vmatprep.subr.mxu0 0.0
    %1352 = vmatpush2.msra.mxu0 0.0
    %1353 = vmatprep.subr.mxu0 0.0
    %1354 = vmatpush2.msra.mxu0 0.0
    %1355 = vmatprep.subr.mxu0 0.0
    %1356 = vmatpush2.msra.mxu0 0.0
    %1357 = vmatprep.subr.mxu0 0.0
    %1358 = vmatpush2.msra.mxu0 0.0
    %1359 = vmatprep.subr.mxu0 0.0
    %1360 = vmatpush2.msra.mxu0 0.0
    %1361 = vmatprep.subr.mxu0 0.0
    %1362 = vmatpush2.msra.mxu0 0.0
    %1363 = vmatprep.subr.mxu0 0.0
    %1364 = vmatpush2.msra.mxu0 0.0
    %1365 = vmatprep.subr.mxu0 0.0
    %1366 = vmatpush2.msra.mxu0 0.0
    %1367 = vmatprep.subr.mxu0 0.0
    %1368 = vmatpush2.msra.mxu0 0.0
    %1369 = vmatprep.subr.mxu0 0.0
    %1370 = vmatpush2.msra.mxu0 0.0
    %1371 = vmatprep.mubr.f32.mxu0 0.0
    %v1372 = vand.u32 %v167, 4294901760
    %v1373 = vsub.f32 %v167, %v1372
    %v1374 = vand.u32 %v1373, 4294901760
    %1375 = vmatmul.mubr.f32.gmra.mxu0 %v1374
    %v1376 = vpop.f32.mrf.mxu0
    %v1377 = vadd.f32 %v1288, %v1376
    %v1378 = vpop.f32.mrf.mxu0
    %1379 = vdwg.mxu0
    %1380 = vmatprep.subr.mxu0 0.0
    %v1381 = vand.u32 %v286, 4294901760
    %v1382 = vsub.f32 %v286, %v1381
    %v1383 = vand.u32 %v1382, 4294901760
    %1384 = vmatpush1.msra.mxu0 %v1383
    %1385 = vmatprep.subr.mxu0 0.0
    %v1386 = vand.u32 %v285, 4294901760
    %v1387 = vsub.f32 %v285, %v1386
    %v1388 = vand.u32 %v1387, 4294901760
    %1389 = vmatpush1.msra.mxu0 %v1388
    %1390 = vmatprep.subr.mxu0 0.0
    %v1391 = vand.u32 %v284, 4294901760
    %v1392 = vsub.f32 %v284, %v1391
    %v1393 = vand.u32 %v1392, 4294901760
    %1394 = vmatpush1.msra.mxu0 %v1393
    %1395 = vmatprep.subr.mxu0 0.0
    %v1396 = vand.u32 %v283, 4294901760
    %v1397 = vsub.f32 %v283, %v1396
    %v1398 = vand.u32 %v1397, 4294901760
    %1399 = vmatpush1.msra.mxu0 %v1398
    %1400 = vmatprep.subr.mxu0 0.0
    %v1401 = vand.u32 %v282, 4294901760
    %v1402 = vsub.f32 %v282, %v1401
    %v1403 = vand.u32 %v1402, 4294901760
    %1404 = vmatpush1.msra.mxu0 %v1403
    %1405 = vmatprep.subr.mxu0 0.0
    %v1406 = vand.u32 %v281, 4294901760
    %v1407 = vsub.f32 %v281, %v1406
    %v1408 = vand.u32 %v1407, 4294901760
    %1409 = vmatpush1.msra.mxu0 %v1408
    %1410 = vmatprep.subr.mxu0 0.0
    %v1411 = vand.u32 %v280, 4294901760
    %v1412 = vsub.f32 %v280, %v1411
    %v1413 = vand.u32 %v1412, 4294901760
    %1414 = vmatpush1.msra.mxu0 %v1413
    %1415 = vmatprep.subr.mxu0 0.0
    %v1416 = vand.u32 %v279, 4294901760
    %v1417 = vsub.f32 %v279, %v1416
    %v1418 = vand.u32 %v1417, 4294901760
    %1419 = vmatpush1.msra.mxu0 %v1418
    %1420 = vmatprep.subr.mxu0 0.0
    %v1421 = vand.u32 %v278, 4294901760
    %v1422 = vsub.f32 %v278, %v1421
    %v1423 = vand.u32 %v1422, 4294901760
    %1424 = vmatpush1.msra.mxu0 %v1423
    %1425 = vmatprep.subr.mxu0 0.0
    %v1426 = vand.u32 %v277, 4294901760
    %v1427 = vsub.f32 %v277, %v1426
    %v1428 = vand.u32 %v1427, 4294901760
    %1429 = vmatpush1.msra.mxu0 %v1428
    %1430 = vmatprep.subr.mxu0 0.0
    %v1431 = vand.u32 %v276, 4294901760
    %v1432 = vsub.f32 %v276, %v1431
    %v1433 = vand.u32 %v1432, 4294901760
    %1434 = vmatpush1.msra.mxu0 %v1433
    %1435 = vmatprep.subr.mxu0 0.0
    %v1436 = vand.u32 %v275, 4294901760
    %v1437 = vsub.f32 %v275, %v1436
    %v1438 = vand.u32 %v1437, 4294901760
    %1439 = vmatpush1.msra.mxu0 %v1438
    %1440 = vmatprep.subr.mxu0 0.0
    %v1441 = vand.u32 %v274, 4294901760
    %v1442 = vsub.f32 %v274, %v1441
    %v1443 = vand.u32 %v1442, 4294901760
    %1444 = vmatpush1.msra.mxu0 %v1443
    %1445 = vmatprep.subr.mxu0 0.0
    %v1446 = vand.u32 %v273, 4294901760
    %v1447 = vsub.f32 %v273, %v1446
    %v1448 = vand.u32 %v1447, 4294901760
    %1449 = vmatpush1.msra.mxu0 %v1448
    %1450 = vmatprep.subr.mxu0 0.0
    %v1451 = vand.u32 %v272, 4294901760
    %v1452 = vsub.f32 %v272, %v1451
    %v1453 = vand.u32 %v1452, 4294901760
    %1454 = vmatpush1.msra.mxu0 %v1453
    %1455 = vmatprep.subr.mxu0 0.0
    %v1456 = vand.u32 %v271, 4294901760
    %v1457 = vsub.f32 %v271, %v1456
    %v1458 = vand.u32 %v1457, 4294901760
    %1459 = vmatpush1.msra.mxu0 %v1458
    %1460 = vmatprep.subr.mxu0 0.0
    %1461 = vmatpush2.msra.mxu0 0.0
    %1462 = vmatprep.subr.mxu0 0.0
    %1463 = vmatpush2.msra.mxu0 0.0
    %1464 = vmatprep.subr.mxu0 0.0
    %1465 = vmatpush2.msra.mxu0 0.0
    %1466 = vmatprep.subr.mxu0 0.0
    %1467 = vmatpush2.msra.mxu0 0.0
    %1468 = vmatprep.subr.mxu0 0.0
    %1469 = vmatpush2.msra.mxu0 0.0
    %1470 = vmatprep.subr.mxu0 0.0
    %1471 = vmatpush2.msra.mxu0 0.0
    %1472 = vmatprep.subr.mxu0 0.0
    %1473 = vmatpush2.msra.mxu0 0.0
    %1474 = vmatprep.subr.mxu0 0.0
    %1475 = vmatpush2.msra.mxu0 0.0
    %1476 = vmatprep.subr.mxu0 0.0
    %1477 = vmatpush2.msra.mxu0 0.0
    %1478 = vmatprep.subr.mxu0 0.0
    %1479 = vmatpush2.msra.mxu0 0.0
    %1480 = vmatprep.subr.mxu0 0.0
    %1481 = vmatpush2.msra.mxu0 0.0
    %1482 = vmatprep.subr.mxu0 0.0
    %1483 = vmatpush2.msra.mxu0 0.0
    %1484 = vmatprep.subr.mxu0 0.0
    %1485 = vmatpush2.msra.mxu0 0.0
    %1486 = vmatprep.subr.mxu0 0.0
    %1487 = vmatpush2.msra.mxu0 0.0
    %1488 = vmatprep.subr.mxu0 0.0
    %1489 = vmatpush2.msra.mxu0 0.0
    %1490 = vmatprep.subr.mxu0 0.0
    %1491 = vmatpush2.msra.mxu0 0.0
    %1492 = vmatprep.mubr.f32.mxu0 0.0
    %v1493 = vand.u32 %v167, 4294901760
    %1494 = vmatmul.mubr.f32.gmra.mxu0 %v1493
    %v1495 = vpop.f32.mrf.mxu0
    %v1496 = vadd.f32 %v1377, %v1495
    %v1497 = vpop.f32.mrf.mxu0
    %1498 = vdwg.mxu0
    %1499 = vmatprep.subr.mxu0 0.0
    %v1500 = vand.u32 %v286, 4294901760
    %1501 = vmatpush1.msra.mxu0 %v1500
    %1502 = vmatprep.subr.mxu0 0.0
    %v1503 = vand.u32 %v285, 4294901760
    %1504 = vmatpush1.msra.mxu0 %v1503
    %1505 = vmatprep.subr.mxu0 0.0
    %v1506 = vand.u32 %v284, 4294901760
    %1507 = vmatpush1.msra.mxu0 %v1506
    %1508 = vmatprep.subr.mxu0 0.0
    %v1509 = vand.u32 %v283, 4294901760
    %1510 = vmatpush1.msra.mxu0 %v1509
    %1511 = vmatprep.subr.mxu0 0.0
    %v1512 = vand.u32 %v282, 4294901760
    %1513 = vmatpush1.msra.mxu0 %v1512
    %1514 = vmatprep.subr.mxu0 0.0
    %v1515 = vand.u32 %v281, 4294901760
    %1516 = vmatpush1.msra.mxu0 %v1515
    %1517 = vmatprep.subr.mxu0 0.0
    %v1518 = vand.u32 %v280, 4294901760
    %1519 = vmatpush1.msra.mxu0 %v1518
    %1520 = vmatprep.subr.mxu0 0.0
    %v1521 = vand.u32 %v279, 4294901760
    %1522 = vmatpush1.msra.mxu0 %v1521
    %1523 = vmatprep.subr.mxu0 0.0
    %v1524 = vand.u32 %v278, 4294901760
    %1525 = vmatpush1.msra.mxu0 %v1524
    %1526 = vmatprep.subr.mxu0 0.0
    %v1527 = vand.u32 %v277, 4294901760
    %1528 = vmatpush1.msra.mxu0 %v1527
    %1529 = vmatprep.subr.mxu0 0.0
    %v1530 = vand.u32 %v276, 4294901760
    %1531 = vmatpush1.msra.mxu0 %v1530
    %1532 = vmatprep.subr.mxu0 0.0
    %v1533 = vand.u32 %v275, 4294901760
    %1534 = vmatpush1.msra.mxu0 %v1533
    %1535 = vmatprep.subr.mxu0 0.0
    %v1536 = vand.u32 %v274, 4294901760
    %1537 = vmatpush1.msra.mxu0 %v1536
    %1538 = vmatprep.subr.mxu0 0.0
    %v1539 = vand.u32 %v273, 4294901760
    %1540 = vmatpush1.msra.mxu0 %v1539
    %1541 = vmatprep.subr.mxu0 0.0
    %v1542 = vand.u32 %v272, 4294901760
    %1543 = vmatpush1.msra.mxu0 %v1542
    %1544 = vmatprep.subr.mxu0 0.0
    %v1545 = vand.u32 %v271, 4294901760
    %1546 = vmatpush1.msra.mxu0 %v1545
    %1547 = vmatprep.subr.mxu0 0.0
    %1548 = vmatpush2.msra.mxu0 0.0
    %1549 = vmatprep.subr.mxu0 0.0
    %1550 = vmatpush2.msra.mxu0 0.0
    %1551 = vmatprep.subr.mxu0 0.0
    %1552 = vmatpush2.msra.mxu0 0.0
    %1553 = vmatprep.subr.mxu0 0.0
    %1554 = vmatpush2.msra.mxu0 0.0
    %1555 = vmatprep.subr.mxu0 0.0
    %1556 = vmatpush2.msra.mxu0 0.0
    %1557 = vmatprep.subr.mxu0 0.0
    %1558 = vmatpush2.msra.mxu0 0.0
    %1559 = vmatprep.subr.mxu0 0.0
    %1560 = vmatpush2.msra.mxu0 0.0
    %1561 = vmatprep.subr.mxu0 0.0
    %1562 = vmatpush2.msra.mxu0 0.0
    %1563 = vmatprep.subr.mxu0 0.0
    %1564 = vmatpush2.msra.mxu0 0.0
    %1565 = vmatprep.subr.mxu0 0.0
    %1566 = vmatpush2.msra.mxu0 0.0
    %1567 = vmatprep.subr.mxu0 0.0
    %1568 = vmatpush2.msra.mxu0 0.0
    %1569 = vmatprep.subr.mxu0 0.0
    %1570 = vmatpush2.msra.mxu0 0.0
    %1571 = vmatprep.subr.mxu0 0.0
    %1572 = vmatpush2.msra.mxu0 0.0
    %1573 = vmatprep.subr.mxu0 0.0
    %1574 = vmatpush2.msra.mxu0 0.0
    %1575 = vmatprep.subr.mxu0 0.0
    %1576 = vmatpush2.msra.mxu0 0.0
    %1577 = vmatprep.subr.mxu0 0.0
    %1578 = vmatpush2.msra.mxu0 0.0
    %1579 = vmatprep.mubr.f32.mxu0 0.0
    %v1580 = vand.u32 %v167, 4294901760
    %1581 = vmatmul.mubr.f32.gmra.mxu0 %v1580
    %v1582 = vpop.f32.mrf.mxu0
    %v1583 = vadd.f32 %v1496, %v1582
    %v1584 = vpop.f32.mrf.mxu0
    %1585 = vdwg.mxu0
    %v1586 = vld [vmem:[#allocation7] sm:$0x1]
    %v1587 = vlaneseq
    %v1588 = vshrl.u32 %v1587, 7
    %v1589 = vsub.s32 0, %v1588
    %v1590 = vrot.slane %v1586, %v1589
    %v1591 = vadd.f32 %v1583, %v1590
    %v1592 = vmax.f32 %v1591, 0.0
    %s1593 = scalar_lea.vmem [#allocation5], 256
    %v1594 = vld [vmem:[%s1593] sm:$0xff]
    %v1595 = vld [vmem:[%s1593 + $0x8] sm:$0xff]
    %v1596 = vld [vmem:[%s1593 + $0x10] sm:$0xff]
    %v1597 = vld [vmem:[%s1593 + $0x18] sm:$0xff]
    %v1598 = vld [vmem:[%s1593 + $0x20] sm:$0xff]
    %v1599 = vld [vmem:[%s1593 + $0x28] sm:$0xff]
    %v1600 = vld [vmem:[%s1593 + $0x30] sm:$0xff]
    %v1601 = vld [vmem:[%s1593 + $0x38] sm:$0xff]
    %v1602 = vld [vmem:[%s1593 + $0x40] sm:$0xff]
    %v1603 = vld [vmem:[%s1593 + $0x48] sm:$0xff]
    %v1604 = vld [vmem:[%s1593 + $0x50] sm:$0xff]
    %v1605 = vld [vmem:[%s1593 + $0x58] sm:$0xff]
    %v1606 = vld [vmem:[%s1593 + $0x60] sm:$0xff]
    %v1607 = vld [vmem:[%s1593 + $0x68] sm:$0xff]
    %v1608 = vld [vmem:[%s1593 + $0x70] sm:$0xff]
    %v1609 = vld [vmem:[%s1593 + $0x78] sm:$0xff]
    %v1610 = vld [vmem:[#allocation7 + $0x1] sm:$0x1]
    %v1611 = vlaneseq
    %v1612 = vshrl.u32 %v1611, 7
    %v1613 = vsub.s32 0, %v1612
    %v1614 = vrot.slane %v1610, %v1613
    %1615 = vmatprep.subr.mxu0 0.0
    %v1616 = vand.u32 %v1609, 4294901760
    %1617 = vmatpush1.msra.mxu0 %v1616
    %1618 = vmatprep.subr.mxu0 0.0
    %v1619 = vand.u32 %v1608, 4294901760
    %1620 = vmatpush1.msra.mxu0 %v1619
    %1621 = vmatprep.subr.mxu0 0.0
    %v1622 = vand.u32 %v1607, 4294901760
    %1623 = vmatpush1.msra.mxu0 %v1622
    %1624 = vmatprep.subr.mxu0 0.0
    %v1625 = vand.u32 %v1606, 4294901760
    %1626 = vmatpush1.msra.mxu0 %v1625
    %1627 = vmatprep.subr.mxu0 0.0
    %v1628 = vand.u32 %v1605, 4294901760
    %1629 = vmatpush1.msra.mxu0 %v1628
    %1630 = vmatprep.subr.mxu0 0.0
    %v1631 = vand.u32 %v1604, 4294901760
    %1632 = vmatpush1.msra.mxu0 %v1631
    %1633 = vmatprep.subr.mxu0 0.0
    %v1634 = vand.u32 %v1603, 4294901760
    %1635 = vmatpush1.msra.mxu0 %v1634
    %1636 = vmatprep.subr.mxu0 0.0
    %v1637 = vand.u32 %v1602, 4294901760
    %1638 = vmatpush1.msra.mxu0 %v1637
    %1639 = vmatprep.subr.mxu0 0.0
    %v1640 = vand.u32 %v1601, 4294901760
    %1641 = vmatpush1.msra.mxu0 %v1640
    %1642 = vmatprep.subr.mxu0 0.0
    %v1643 = vand.u32 %v1600, 4294901760
    %1644 = vmatpush1.msra.mxu0 %v1643
    %1645 = vmatprep.subr.mxu0 0.0
    %v1646 = vand.u32 %v1599, 4294901760
    %1647 = vmatpush1.msra.mxu0 %v1646
    %1648 = vmatprep.subr.mxu0 0.0
    %v1649 = vand.u32 %v1598, 4294901760
    %1650 = vmatpush1.msra.mxu0 %v1649
    %1651 = vmatprep.subr.mxu0 0.0
    %v1652 = vand.u32 %v1597, 4294901760
    %1653 = vmatpush1.msra.mxu0 %v1652
    %1654 = vmatprep.subr.mxu0 0.0
    %v1655 = vand.u32 %v1596, 4294901760
    %1656 = vmatpush1.msra.mxu0 %v1655
    %1657 = vmatprep.subr.mxu0 0.0
    %v1658 = vand.u32 %v1595, 4294901760
    %1659 = vmatpush1.msra.mxu0 %v1658
    %1660 = vmatprep.subr.mxu0 0.0
    %v1661 = vand.u32 %v1594, 4294901760
    %1662 = vmatpush1.msra.mxu0 %v1661
    %1663 = vmatprep.subr.mxu0 0.0
    %1664 = vmatpush2.msra.mxu0 0.0
    %1665 = vmatprep.subr.mxu0 0.0
    %1666 = vmatpush2.msra.mxu0 0.0
    %1667 = vmatprep.subr.mxu0 0.0
    %1668 = vmatpush2.msra.mxu0 0.0
    %1669 = vmatprep.subr.mxu0 0.0
    %1670 = vmatpush2.msra.mxu0 0.0
    %1671 = vmatprep.subr.mxu0 0.0
    %1672 = vmatpush2.msra.mxu0 0.0
    %1673 = vmatprep.subr.mxu0 0.0
    %1674 = vmatpush2.msra.mxu0 0.0
    %1675 = vmatprep.subr.mxu0 0.0
    %1676 = vmatpush2.msra.mxu0 0.0
    %1677 = vmatprep.subr.mxu0 0.0
    %1678 = vmatpush2.msra.mxu0 0.0
    %1679 = vmatprep.subr.mxu0 0.0
    %1680 = vmatpush2.msra.mxu0 0.0
    %1681 = vmatprep.subr.mxu0 0.0
    %1682 = vmatpush2.msra.mxu0 0.0
    %1683 = vmatprep.subr.mxu0 0.0
    %1684 = vmatpush2.msra.mxu0 0.0
    %1685 = vmatprep.subr.mxu0 0.0
    %1686 = vmatpush2.msra.mxu0 0.0
    %1687 = vmatprep.subr.mxu0 0.0
    %1688 = vmatpush2.msra.mxu0 0.0
    %1689 = vmatprep.subr.mxu0 0.0
    %1690 = vmatpush2.msra.mxu0 0.0
    %1691 = vmatprep.subr.mxu0 0.0
    %1692 = vmatpush2.msra.mxu0 0.0
    %1693 = vmatprep.subr.mxu0 0.0
    %1694 = vmatpush2.msra.mxu0 0.0
    %1695 = vmatprep.mubr.f32.mxu0 0.0
    %v1696 = vand.u32 %v1592, 4294901760
    %v1697 = vsub.f32 %v1592, %v1696
    %v1698 = vand.u32 %v1697, 4294901760
    %v1699 = vsub.f32 %v1697, %v1698
    %v1700 = vand.u32 %v1699, 4294901760
    %1701 = vmatmul.mubr.f32.gmra.mxu0 %v1700
    %v1702 = vpop.f32.mrf.mxu0
    %v1703 = vadd.f32 %v1614, %v1702
    %v1704 = vpop.f32.mrf.mxu0
    %1705 = vdwg.mxu0
    %1706 = vmatprep.subr.mxu0 0.0
    %v1707 = vand.u32 %v1609, 4294901760
    %v1708 = vsub.f32 %v1609, %v1707
    %v1709 = vand.u32 %v1708, 4294901760
    %v1710 = vsub.f32 %v1708, %v1709
    %v1711 = vand.u32 %v1710, 4294901760
    %1712 = vmatpush1.msra.mxu0 %v1711
    %1713 = vmatprep.subr.mxu0 0.0
    %v1714 = vand.u32 %v1608, 4294901760
    %v1715 = vsub.f32 %v1608, %v1714
    %v1716 = vand.u32 %v1715, 4294901760
    %v1717 = vsub.f32 %v1715, %v1716
    %v1718 = vand.u32 %v1717, 4294901760
    %1719 = vmatpush1.msra.mxu0 %v1718
    %1720 = vmatprep.subr.mxu0 0.0
    %v1721 = vand.u32 %v1607, 4294901760
    %v1722 = vsub.f32 %v1607, %v1721
    %v1723 = vand.u32 %v1722, 4294901760
    %v1724 = vsub.f32 %v1722, %v1723
    %v1725 = vand.u32 %v1724, 4294901760
    %1726 = vmatpush1.msra.mxu0 %v1725
    %1727 = vmatprep.subr.mxu0 0.0
    %v1728 = vand.u32 %v1606, 4294901760
    %v1729 = vsub.f32 %v1606, %v1728
    %v1730 = vand.u32 %v1729, 4294901760
    %v1731 = vsub.f32 %v1729, %v1730
    %v1732 = vand.u32 %v1731, 4294901760
    %1733 = vmatpush1.msra.mxu0 %v1732
    %1734 = vmatprep.subr.mxu0 0.0
    %v1735 = vand.u32 %v1605, 4294901760
    %v1736 = vsub.f32 %v1605, %v1735
    %v1737 = vand.u32 %v1736, 4294901760
    %v1738 = vsub.f32 %v1736, %v1737
    %v1739 = vand.u32 %v1738, 4294901760
    %1740 = vmatpush1.msra.mxu0 %v1739
    %1741 = vmatprep.subr.mxu0 0.0
    %v1742 = vand.u32 %v1604, 4294901760
    %v1743 = vsub.f32 %v1604, %v1742
    %v1744 = vand.u32 %v1743, 4294901760
    %v1745 = vsub.f32 %v1743, %v1744
    %v1746 = vand.u32 %v1745, 4294901760
    %1747 = vmatpush1.msra.mxu0 %v1746
    %1748 = vmatprep.subr.mxu0 0.0
    %v1749 = vand.u32 %v1603, 4294901760
    %v1750 = vsub.f32 %v1603, %v1749
    %v1751 = vand.u32 %v1750, 4294901760
    %v1752 = vsub.f32 %v1750, %v1751
    %v1753 = vand.u32 %v1752, 4294901760
    %1754 = vmatpush1.msra.mxu0 %v1753
    %1755 = vmatprep.subr.mxu0 0.0
    %v1756 = vand.u32 %v1602, 4294901760
    %v1757 = vsub.f32 %v1602, %v1756
    %v1758 = vand.u32 %v1757, 4294901760
    %v1759 = vsub.f32 %v1757, %v1758
    %v1760 = vand.u32 %v1759, 4294901760
    %1761 = vmatpush1.msra.mxu0 %v1760
    %1762 = vmatprep.subr.mxu0 0.0
    %v1763 = vand.u32 %v1601, 4294901760
    %v1764 = vsub.f32 %v1601, %v1763
    %v1765 = vand.u32 %v1764, 4294901760
    %v1766 = vsub.f32 %v1764, %v1765
    %v1767 = vand.u32 %v1766, 4294901760
    %1768 = vmatpush1.msra.mxu0 %v1767
    %1769 = vmatprep.subr.mxu0 0.0
    %v1770 = vand.u32 %v1600, 4294901760
    %v1771 = vsub.f32 %v1600, %v1770
    %v1772 = vand.u32 %v1771, 4294901760
    %v1773 = vsub.f32 %v1771, %v1772
    %v1774 = vand.u32 %v1773, 4294901760
    %1775 = vmatpush1.msra.mxu0 %v1774
    %1776 = vmatprep.subr.mxu0 0.0
    %v1777 = vand.u32 %v1599, 4294901760
    %v1778 = vsub.f32 %v1599, %v1777
    %v1779 = vand.u32 %v1778, 4294901760
    %v1780 = vsub.f32 %v1778, %v1779
    %v1781 = vand.u32 %v1780, 4294901760
    %1782 = vmatpush1.msra.mxu0 %v1781
    %1783 = vmatprep.subr.mxu0 0.0
    %v1784 = vand.u32 %v1598, 4294901760
    %v1785 = vsub.f32 %v1598, %v1784
    %v1786 = vand.u32 %v1785, 4294901760
    %v1787 = vsub.f32 %v1785, %v1786
    %v1788 = vand.u32 %v1787, 4294901760
    %1789 = vmatpush1.msra.mxu0 %v1788
    %1790 = vmatprep.subr.mxu0 0.0
    %v1791 = vand.u32 %v1597, 4294901760
    %v1792 = vsub.f32 %v1597, %v1791
    %v1793 = vand.u32 %v1792, 4294901760
    %v1794 = vsub.f32 %v1792, %v1793
    %v1795 = vand.u32 %v1794, 4294901760
    %1796 = vmatpush1.msra.mxu0 %v1795
    %1797 = vmatprep.subr.mxu0 0.0
    %v1798 = vand.u32 %v1596, 4294901760
    %v1799 = vsub.f32 %v1596, %v1798
    %v1800 = vand.u32 %v1799, 4294901760
    %v1801 = vsub.f32 %v1799, %v1800
    %v1802 = vand.u32 %v1801, 4294901760
    %1803 = vmatpush1.msra.mxu0 %v1802
    %1804 = vmatprep.subr.mxu0 0.0
    %v1805 = vand.u32 %v1595, 4294901760
    %v1806 = vsub.f32 %v1595, %v1805
    %v1807 = vand.u32 %v1806, 4294901760
    %v1808 = vsub.f32 %v1806, %v1807
    %v1809 = vand.u32 %v1808, 4294901760
    %1810 = vmatpush1.msra.mxu0 %v1809
    %1811 = vmatprep.subr.mxu0 0.0
    %v1812 = vand.u32 %v1594, 4294901760
    %v1813 = vsub.f32 %v1594, %v1812
    %v1814 = vand.u32 %v1813, 4294901760
    %v1815 = vsub.f32 %v1813, %v1814
    %v1816 = vand.u32 %v1815, 4294901760
    %1817 = vmatpush1.msra.mxu0 %v1816
    %1818 = vmatprep.subr.mxu0 0.0
    %1819 = vmatpush2.msra.mxu0 0.0
    %1820 = vmatprep.subr.mxu0 0.0
    %1821 = vmatpush2.msra.mxu0 0.0
    %1822 = vmatprep.subr.mxu0 0.0
    %1823 = vmatpush2.msra.mxu0 0.0
    %1824 = vmatprep.subr.mxu0 0.0
    %1825 = vmatpush2.msra.mxu0 0.0
    %1826 = vmatprep.subr.mxu0 0.0
    %1827 = vmatpush2.msra.mxu0 0.0
    %1828 = vmatprep.subr.mxu0 0.0
    %1829 = vmatpush2.msra.mxu0 0.0
    %1830 = vmatprep.subr.mxu0 0.0
    %1831 = vmatpush2.msra.mxu0 0.0
    %1832 = vmatprep.subr.mxu0 0.0
    %1833 = vmatpush2.msra.mxu0 0.0
    %1834 = vmatprep.subr.mxu0 0.0
    %1835 = vmatpush2.msra.mxu0 0.0
    %1836 = vmatprep.subr.mxu0 0.0
    %1837 = vmatpush2.msra.mxu0 0.0
    %1838 = vmatprep.subr.mxu0 0.0
    %1839 = vmatpush2.msra.mxu0 0.0
    %1840 = vmatprep.subr.mxu0 0.0
    %1841 = vmatpush2.msra.mxu0 0.0
    %1842 = vmatprep.subr.mxu0 0.0
    %1843 = vmatpush2.msra.mxu0 0.0
    %1844 = vmatprep.subr.mxu0 0.0
    %1845 = vmatpush2.msra.mxu0 0.0
    %1846 = vmatprep.subr.mxu0 0.0
    %1847 = vmatpush2.msra.mxu0 0.0
    %1848 = vmatprep.subr.mxu0 0.0
    %1849 = vmatpush2.msra.mxu0 0.0
    %1850 = vmatprep.mubr.f32.mxu0 0.0
    %v1851 = vand.u32 %v1592, 4294901760
    %1852 = vmatmul.mubr.f32.gmra.mxu0 %v1851
    %v1853 = vpop.f32.mrf.mxu0
    %v1854 = vadd.f32 %v1703, %v1853
    %v1855 = vpop.f32.mrf.mxu0
    %1856 = vdwg.mxu0
    %1857 = vmatprep.subr.mxu0 0.0
    %v1858 = vand.u32 %v1609, 4294901760
    %v1859 = vsub.f32 %v1609, %v1858
    %1860 = vmatpush1.msra.mxu0 %v1859
    %1861 = vmatprep.subr.mxu0 0.0
    %v1862 = vand.u32 %v1608, 4294901760
    %v1863 = vsub.f32 %v1608, %v1862
    %1864 = vmatpush1.msra.mxu0 %v1863
    %1865 = vmatprep.subr.mxu0 0.0
    %v1866 = vand.u32 %v1607, 4294901760
    %v1867 = vsub.f32 %v1607, %v1866
    %1868 = vmatpush1.msra.mxu0 %v1867
    %1869 = vmatprep.subr.mxu0 0.0
    %v1870 = vand.u32 %v1606, 4294901760
    %v1871 = vsub.f32 %v1606, %v1870
    %1872 = vmatpush1.msra.mxu0 %v1871
    %1873 = vmatprep.subr.mxu0 0.0
    %v1874 = vand.u32 %v1605, 4294901760
    %v1875 = vsub.f32 %v1605, %v1874
    %1876 = vmatpush1.msra.mxu0 %v1875
    %1877 = vmatprep.subr.mxu0 0.0
    %v1878 = vand.u32 %v1604, 4294901760
    %v1879 = vsub.f32 %v1604, %v1878
    %1880 = vmatpush1.msra.mxu0 %v1879
    %1881 = vmatprep.subr.mxu0 0.0
    %v1882 = vand.u32 %v1603, 4294901760
    %v1883 = vsub.f32 %v1603, %v1882
    %1884 = vmatpush1.msra.mxu0 %v1883
    %1885 = vmatprep.subr.mxu0 0.0
    %v1886 = vand.u32 %v1602, 4294901760
    %v1887 = vsub.f32 %v1602, %v1886
    %1888 = vmatpush1.msra.mxu0 %v1887
    %1889 = vmatprep.subr.mxu0 0.0
    %v1890 = vand.u32 %v1601, 4294901760
    %v1891 = vsub.f32 %v1601, %v1890
    %1892 = vmatpush1.msra.mxu0 %v1891
    %1893 = vmatprep.subr.mxu0 0.0
    %v1894 = vand.u32 %v1600, 4294901760
    %v1895 = vsub.f32 %v1600, %v1894
    %1896 = vmatpush1.msra.mxu0 %v1895
    %1897 = vmatprep.subr.mxu0 0.0
    %v1898 = vand.u32 %v1599, 4294901760
    %v1899 = vsub.f32 %v1599, %v1898
    %1900 = vmatpush1.msra.mxu0 %v1899
    %1901 = vmatprep.subr.mxu0 0.0
    %v1902 = vand.u32 %v1598, 4294901760
    %v1903 = vsub.f32 %v1598, %v1902
    %1904 = vmatpush1.msra.mxu0 %v1903
    %1905 = vmatprep.subr.mxu0 0.0
    %v1906 = vand.u32 %v1597, 4294901760
    %v1907 = vsub.f32 %v1597, %v1906
    %1908 = vmatpush1.msra.mxu0 %v1907
    %1909 = vmatprep.subr.mxu0 0.0
    %v1910 = vand.u32 %v1596, 4294901760
    %v1911 = vsub.f32 %v1596, %v1910
    %1912 = vmatpush1.msra.mxu0 %v1911
    %1913 = vmatprep.subr.mxu0 0.0
    %v1914 = vand.u32 %v1595, 4294901760
    %v1915 = vsub.f32 %v1595, %v1914
    %1916 = vmatpush1.msra.mxu0 %v1915
    %1917 = vmatprep.subr.mxu0 0.0
    %v1918 = vand.u32 %v1594, 4294901760
    %v1919 = vsub.f32 %v1594, %v1918
    %1920 = vmatpush1.msra.mxu0 %v1919
    %1921 = vmatprep.subr.mxu0 0.0
    %1922 = vmatpush2.msra.mxu0 0.0
    %1923 = vmatprep.subr.mxu0 0.0
    %1924 = vmatpush2.msra.mxu0 0.0
    %1925 = vmatprep.subr.mxu0 0.0
    %1926 = vmatpush2.msra.mxu0 0.0
    %1927 = vmatprep.subr.mxu0 0.0
    %1928 = vmatpush2.msra.mxu0 0.0
    %1929 = vmatprep.subr.mxu0 0.0
    %1930 = vmatpush2.msra.mxu0 0.0
    %1931 = vmatprep.subr.mxu0 0.0
    %1932 = vmatpush2.msra.mxu0 0.0
    %1933 = vmatprep.subr.mxu0 0.0
    %1934 = vmatpush2.msra.mxu0 0.0
    %1935 = vmatprep.subr.mxu0 0.0
    %1936 = vmatpush2.msra.mxu0 0.0
    %1937 = vmatprep.subr.mxu0 0.0
    %1938 = vmatpush2.msra.mxu0 0.0
    %1939 = vmatprep.subr.mxu0 0.0
    %1940 = vmatpush2.msra.mxu0 0.0
    %1941 = vmatprep.subr.mxu0 0.0
    %1942 = vmatpush2.msra.mxu0 0.0
    %1943 = vmatprep.subr.mxu0 0.0
    %1944 = vmatpush2.msra.mxu0 0.0
    %1945 = vmatprep.subr.mxu0 0.0
    %1946 = vmatpush2.msra.mxu0 0.0
    %1947 = vmatprep.subr.mxu0 0.0
    %1948 = vmatpush2.msra.mxu0 0.0
    %1949 = vmatprep.subr.mxu0 0.0
    %1950 = vmatpush2.msra.mxu0 0.0
    %1951 = vmatprep.subr.mxu0 0.0
    %1952 = vmatpush2.msra.mxu0 0.0
    %1953 = vmatprep.mubr.f32.mxu0 0.0
    %v1954 = vand.u32 %v1592, 4294901760
    %v1955 = vsub.f32 %v1592, %v1954
    %1956 = vmatmul.mubr.f32.gmra.mxu0 %v1955
    %v1957 = vpop.f32.mrf.mxu0
    %v1958 = vadd.f32 %v1854, %v1957
    %v1959 = vpop.f32.mrf.mxu0
    %1960 = vdwg.mxu0
    %1961 = vmatprep.subr.mxu0 0.0
    %v1962 = vand.u32 %v1609, 4294901760
    %1963 = vmatpush1.msra.mxu0 %v1962
    %1964 = vmatprep.subr.mxu0 0.0
    %v1965 = vand.u32 %v1608, 4294901760
    %1966 = vmatpush1.msra.mxu0 %v1965
    %1967 = vmatprep.subr.mxu0 0.0
    %v1968 = vand.u32 %v1607, 4294901760
    %1969 = vmatpush1.msra.mxu0 %v1968
    %1970 = vmatprep.subr.mxu0 0.0
    %v1971 = vand.u32 %v1606, 4294901760
    %1972 = vmatpush1.msra.mxu0 %v1971
    %1973 = vmatprep.subr.mxu0 0.0
    %v1974 = vand.u32 %v1605, 4294901760
    %1975 = vmatpush1.msra.mxu0 %v1974
    %1976 = vmatprep.subr.mxu0 0.0
    %v1977 = vand.u32 %v1604, 4294901760
    %1978 = vmatpush1.msra.mxu0 %v1977
    %1979 = vmatprep.subr.mxu0 0.0
    %v1980 = vand.u32 %v1603, 4294901760
    %1981 = vmatpush1.msra.mxu0 %v1980
    %1982 = vmatprep.subr.mxu0 0.0
    %v1983 = vand.u32 %v1602, 4294901760
    %1984 = vmatpush1.msra.mxu0 %v1983
    %1985 = vmatprep.subr.mxu0 0.0
    %v1986 = vand.u32 %v1601, 4294901760
    %1987 = vmatpush1.msra.mxu0 %v1986
    %1988 = vmatprep.subr.mxu0 0.0
    %v1989 = vand.u32 %v1600, 4294901760
    %1990 = vmatpush1.msra.mxu0 %v1989
    %1991 = vmatprep.subr.mxu0 0.0
    %v1992 = vand.u32 %v1599, 4294901760
    %1993 = vmatpush1.msra.mxu0 %v1992
    %1994 = vmatprep.subr.mxu0 0.0
    %v1995 = vand.u32 %v1598, 4294901760
    %1996 = vmatpush1.msra.mxu0 %v1995
    %1997 = vmatprep.subr.mxu0 0.0
    %v1998 = vand.u32 %v1597, 4294901760
    %1999 = vmatpush1.msra.mxu0 %v1998
    %2000 = vmatprep.subr.mxu0 0.0
    %v2001 = vand.u32 %v1596, 4294901760
    %2002 = vmatpush1.msra.mxu0 %v2001
    %2003 = vmatprep.subr.mxu0 0.0
    %v2004 = vand.u32 %v1595, 4294901760
    %2005 = vmatpush1.msra.mxu0 %v2004
    %2006 = vmatprep.subr.mxu0 0.0
    %v2007 = vand.u32 %v1594, 4294901760
    %2008 = vmatpush1.msra.mxu0 %v2007
    %2009 = vmatprep.subr.mxu0 0.0
    %2010 = vmatpush2.msra.mxu0 0.0
    %2011 = vmatprep.subr.mxu0 0.0
    %2012 = vmatpush2.msra.mxu0 0.0
    %2013 = vmatprep.subr.mxu0 0.0
    %2014 = vmatpush2.msra.mxu0 0.0
    %2015 = vmatprep.subr.mxu0 0.0
    %2016 = vmatpush2.msra.mxu0 0.0
    %2017 = vmatprep.subr.mxu0 0.0
    %2018 = vmatpush2.msra.mxu0 0.0
    %2019 = vmatprep.subr.mxu0 0.0
    %2020 = vmatpush2.msra.mxu0 0.0
    %2021 = vmatprep.subr.mxu0 0.0
    %2022 = vmatpush2.msra.mxu0 0.0
    %2023 = vmatprep.subr.mxu0 0.0
    %2024 = vmatpush2.msra.mxu0 0.0
    %2025 = vmatprep.subr.mxu0 0.0
    %2026 = vmatpush2.msra.mxu0 0.0
    %2027 = vmatprep.subr.mxu0 0.0
    %2028 = vmatpush2.msra.mxu0 0.0
    %2029 = vmatprep.subr.mxu0 0.0
    %2030 = vmatpush2.msra.mxu0 0.0
    %2031 = vmatprep.subr.mxu0 0.0
    %2032 = vmatpush2.msra.mxu0 0.0
    %2033 = vmatprep.subr.mxu0 0.0
    %2034 = vmatpush2.msra.mxu0 0.0
    %2035 = vmatprep.subr.mxu0 0.0
    %2036 = vmatpush2.msra.mxu0 0.0
    %2037 = vmatprep.subr.mxu0 0.0
    %2038 = vmatpush2.msra.mxu0 0.0
    %2039 = vmatprep.subr.mxu0 0.0
    %2040 = vmatpush2.msra.mxu0 0.0
    %2041 = vmatprep.mubr.f32.mxu0 0.0
    %v2042 = vand.u32 %v1592, 4294901760
    %v2043 = vsub.f32 %v1592, %v2042
    %v2044 = vand.u32 %v2043, 4294901760
    %2045 = vmatmul.mubr.f32.gmra.mxu0 %v2044
    %v2046 = vpop.f32.mrf.mxu0
    %v2047 = vadd.f32 %v1958, %v2046
    %v2048 = vpop.f32.mrf.mxu0
    %2049 = vdwg.mxu0
    %2050 = vmatprep.subr.mxu0 0.0
    %v2051 = vand.u32 %v1609, 4294901760
    %v2052 = vsub.f32 %v1609, %v2051
    %v2053 = vand.u32 %v2052, 4294901760
    %2054 = vmatpush1.msra.mxu0 %v2053
    %2055 = vmatprep.subr.mxu0 0.0
    %v2056 = vand.u32 %v1608, 4294901760
    %v2057 = vsub.f32 %v1608, %v2056
    %v2058 = vand.u32 %v2057, 4294901760
    %2059 = vmatpush1.msra.mxu0 %v2058
    %2060 = vmatprep.subr.mxu0 0.0
    %v2061 = vand.u32 %v1607, 4294901760
    %v2062 = vsub.f32 %v1607, %v2061
    %v2063 = vand.u32 %v2062, 4294901760
    %2064 = vmatpush1.msra.mxu0 %v2063
    %2065 = vmatprep.subr.mxu0 0.0
    %v2066 = vand.u32 %v1606, 4294901760
    %v2067 = vsub.f32 %v1606, %v2066
    %v2068 = vand.u32 %v2067, 4294901760
    %2069 = vmatpush1.msra.mxu0 %v2068
    %2070 = vmatprep.subr.mxu0 0.0
    %v2071 = vand.u32 %v1605, 4294901760
    %v2072 = vsub.f32 %v1605, %v2071
    %v2073 = vand.u32 %v2072, 4294901760
    %2074 = vmatpush1.msra.mxu0 %v2073
    %2075 = vmatprep.subr.mxu0 0.0
    %v2076 = vand.u32 %v1604, 4294901760
    %v2077 = vsub.f32 %v1604, %v2076
    %v2078 = vand.u32 %v2077, 4294901760
    %2079 = vmatpush1.msra.mxu0 %v2078
    %2080 = vmatprep.subr.mxu0 0.0
    %v2081 = vand.u32 %v1603, 4294901760
    %v2082 = vsub.f32 %v1603, %v2081
    %v2083 = vand.u32 %v2082, 4294901760
    %2084 = vmatpush1.msra.mxu0 %v2083
    %2085 = vmatprep.subr.mxu0 0.0
    %v2086 = vand.u32 %v1602, 4294901760
    %v2087 = vsub.f32 %v1602, %v2086
    %v2088 = vand.u32 %v2087, 4294901760
    %2089 = vmatpush1.msra.mxu0 %v2088
    %2090 = vmatprep.subr.mxu0 0.0
    %v2091 = vand.u32 %v1601, 4294901760
    %v2092 = vsub.f32 %v1601, %v2091
    %v2093 = vand.u32 %v2092, 4294901760
    %2094 = vmatpush1.msra.mxu0 %v2093
    %2095 = vmatprep.subr.mxu0 0.0
    %v2096 = vand.u32 %v1600, 4294901760
    %v2097 = vsub.f32 %v1600, %v2096
    %v2098 = vand.u32 %v2097, 4294901760
    %2099 = vmatpush1.msra.mxu0 %v2098
    %2100 = vmatprep.subr.mxu0 0.0
    %v2101 = vand.u32 %v1599, 4294901760
    %v2102 = vsub.f32 %v1599, %v2101
    %v2103 = vand.u32 %v2102, 4294901760
    %2104 = vmatpush1.msra.mxu0 %v2103
    %2105 = vmatprep.subr.mxu0 0.0
    %v2106 = vand.u32 %v1598, 4294901760
    %v2107 = vsub.f32 %v1598, %v2106
    %v2108 = vand.u32 %v2107, 4294901760
    %2109 = vmatpush1.msra.mxu0 %v2108
    %2110 = vmatprep.subr.mxu0 0.0
    %v2111 = vand.u32 %v1597, 4294901760
    %v2112 = vsub.f32 %v1597, %v2111
    %v2113 = vand.u32 %v2112, 4294901760
    %2114 = vmatpush1.msra.mxu0 %v2113
    %2115 = vmatprep.subr.mxu0 0.0
    %v2116 = vand.u32 %v1596, 4294901760
    %v2117 = vsub.f32 %v1596, %v2116
    %v2118 = vand.u32 %v2117, 4294901760
    %2119 = vmatpush1.msra.mxu0 %v2118
    %2120 = vmatprep.subr.mxu0 0.0
    %v2121 = vand.u32 %v1595, 4294901760
    %v2122 = vsub.f32 %v1595, %v2121
    %v2123 = vand.u32 %v2122, 4294901760
    %2124 = vmatpush1.msra.mxu0 %v2123
    %2125 = vmatprep.subr.mxu0 0.0
    %v2126 = vand.u32 %v1594, 4294901760
    %v2127 = vsub.f32 %v1594, %v2126
    %v2128 = vand.u32 %v2127, 4294901760
    %2129 = vmatpush1.msra.mxu0 %v2128
    %2130 = vmatprep.subr.mxu0 0.0
    %2131 = vmatpush2.msra.mxu0 0.0
    %2132 = vmatprep.subr.mxu0 0.0
    %2133 = vmatpush2.msra.mxu0 0.0
    %2134 = vmatprep.subr.mxu0 0.0
    %2135 = vmatpush2.msra.mxu0 0.0
    %2136 = vmatprep.subr.mxu0 0.0
    %2137 = vmatpush2.msra.mxu0 0.0
    %2138 = vmatprep.subr.mxu0 0.0
    %2139 = vmatpush2.msra.mxu0 0.0
    %2140 = vmatprep.subr.mxu0 0.0
    %2141 = vmatpush2.msra.mxu0 0.0
    %2142 = vmatprep.subr.mxu0 0.0
    %2143 = vmatpush2.msra.mxu0 0.0
    %2144 = vmatprep.subr.mxu0 0.0
    %2145 = vmatpush2.msra.mxu0 0.0
    %2146 = vmatprep.subr.mxu0 0.0
    %2147 = vmatpush2.msra.mxu0 0.0
    %2148 = vmatprep.subr.mxu0 0.0
    %2149 = vmatpush2.msra.mxu0 0.0
    %2150 = vmatprep.subr.mxu0 0.0
    %2151 = vmatpush2.msra.mxu0 0.0
    %2152 = vmatprep.subr.mxu0 0.0
    %2153 = vmatpush2.msra.mxu0 0.0
    %2154 = vmatprep.subr.mxu0 0.0
    %2155 = vmatpush2.msra.mxu0 0.0
    %2156 = vmatprep.subr.mxu0 0.0
    %2157 = vmatpush2.msra.mxu0 0.0
    %2158 = vmatprep.subr.mxu0 0.0
    %2159 = vmatpush2.msra.mxu0 0.0
    %2160 = vmatprep.subr.mxu0 0.0
    %2161 = vmatpush2.msra.mxu0 0.0
    %2162 = vmatprep.mubr.f32.mxu0 0.0
    %v2163 = vand.u32 %v1592, 4294901760
    %2164 = vmatmul.mubr.f32.gmra.mxu0 %v2163
    %v2165 = vpop.f32.mrf.mxu0
    %v2166 = vadd.f32 %v2047, %v2165
    %v2167 = vpop.f32.mrf.mxu0
    %2168 = vdwg.mxu0
    %2169 = vmatprep.subr.mxu0 0.0
    %v2170 = vand.u32 %v1609, 4294901760
    %2171 = vmatpush1.msra.mxu0 %v2170
    %2172 = vmatprep.subr.mxu0 0.0
    %v2173 = vand.u32 %v1608, 4294901760
    %2174 = vmatpush1.msra.mxu0 %v2173
    %2175 = vmatprep.subr.mxu0 0.0
    %v2176 = vand.u32 %v1607, 4294901760
    %2177 = vmatpush1.msra.mxu0 %v2176
    %2178 = vmatprep.subr.mxu0 0.0
    %v2179 = vand.u32 %v1606, 4294901760
    %2180 = vmatpush1.msra.mxu0 %v2179
    %2181 = vmatprep.subr.mxu0 0.0
    %v2182 = vand.u32 %v1605, 4294901760
    %2183 = vmatpush1.msra.mxu0 %v2182
    %2184 = vmatprep.subr.mxu0 0.0
    %v2185 = vand.u32 %v1604, 4294901760
    %2186 = vmatpush1.msra.mxu0 %v2185
    %2187 = vmatprep.subr.mxu0 0.0
    %v2188 = vand.u32 %v1603, 4294901760
    %2189 = vmatpush1.msra.mxu0 %v2188
    %2190 = vmatprep.subr.mxu0 0.0
    %v2191 = vand.u32 %v1602, 4294901760
    %2192 = vmatpush1.msra.mxu0 %v2191
    %2193 = vmatprep.subr.mxu0 0.0
    %v2194 = vand.u32 %v1601, 4294901760
    %2195 = vmatpush1.msra.mxu0 %v2194
    %2196 = vmatprep.subr.mxu0 0.0
    %v2197 = vand.u32 %v1600, 4294901760
    %2198 = vmatpush1.msra.mxu0 %v2197
    %2199 = vmatprep.subr.mxu0 0.0
    %v2200 = vand.u32 %v1599, 4294901760
    %2201 = vmatpush1.msra.mxu0 %v2200
    %2202 = vmatprep.subr.mxu0 0.0
    %v2203 = vand.u32 %v1598, 4294901760
    %2204 = vmatpush1.msra.mxu0 %v2203
    %2205 = vmatprep.subr.mxu0 0.0
    %v2206 = vand.u32 %v1597, 4294901760
    %2207 = vmatpush1.msra.mxu0 %v2206
    %2208 = vmatprep.subr.mxu0 0.0
    %v2209 = vand.u32 %v1596, 4294901760
    %2210 = vmatpush1.msra.mxu0 %v2209
    %2211 = vmatprep.subr.mxu0 0.0
    %v2212 = vand.u32 %v1595, 4294901760
    %2213 = vmatpush1.msra.mxu0 %v2212
    %2214 = vmatprep.subr.mxu0 0.0
    %v2215 = vand.u32 %v1594, 4294901760
    %2216 = vmatpush1.msra.mxu0 %v2215
    %2217 = vmatprep.subr.mxu0 0.0
    %2218 = vmatpush2.msra.mxu0 0.0
    %2219 = vmatprep.subr.mxu0 0.0
    %2220 = vmatpush2.msra.mxu0 0.0
    %2221 = vmatprep.subr.mxu0 0.0
    %2222 = vmatpush2.msra.mxu0 0.0
    %2223 = vmatprep.subr.mxu0 0.0
    %2224 = vmatpush2.msra.mxu0 0.0
    %2225 = vmatprep.subr.mxu0 0.0
    %2226 = vmatpush2.msra.mxu0 0.0
    %2227 = vmatprep.subr.mxu0 0.0
    %2228 = vmatpush2.msra.mxu0 0.0
    %2229 = vmatprep.subr.mxu0 0.0
    %2230 = vmatpush2.msra.mxu0 0.0
    %2231 = vmatprep.subr.mxu0 0.0
    %2232 = vmatpush2.msra.mxu0 0.0
    %2233 = vmatprep.subr.mxu0 0.0
    %2234 = vmatpush2.msra.mxu0 0.0
    %2235 = vmatprep.subr.mxu0 0.0
    %2236 = vmatpush2.msra.mxu0 0.0
    %2237 = vmatprep.subr.mxu0 0.0
    %2238 = vmatpush2.msra.mxu0 0.0
    %2239 = vmatprep.subr.mxu0 0.0
    %2240 = vmatpush2.msra.mxu0 0.0
    %2241 = vmatprep.subr.mxu0 0.0
    %2242 = vmatpush2.msra.mxu0 0.0
    %2243 = vmatprep.subr.mxu0 0.0
    %2244 = vmatpush2.msra.mxu0 0.0
    %2245 = vmatprep.subr.mxu0 0.0
    %2246 = vmatpush2.msra.mxu0 0.0
    %2247 = vmatprep.subr.mxu0 0.0
    %2248 = vmatpush2.msra.mxu0 0.0
    %2249 = vmatprep.mubr.f32.mxu0 0.0
    %v2250 = vand.u32 %v1592, 4294901760
    %2251 = vmatmul.mubr.f32.gmra.mxu0 %v2250
    %v2252 = vpop.f32.mrf.mxu0
    %v2253 = vadd.f32 %v2166, %v2252
    %v2254 = vpop.f32.mrf.mxu0
    %2255 = vdwg.mxu0
    %s2256 = scalar_lea.vmem [#allocation5], 384
    %v2257 = vld [vmem:[%s2256] sm:$0xff]
    %v2258 = vld [vmem:[%s2256 + $0x8] sm:$0xff]
    %v2259 = vld [vmem:[%s2256 + $0x10] sm:$0xff]
    %v2260 = vld [vmem:[%s2256 + $0x18] sm:$0xff]
    %v2261 = vld [vmem:[%s2256 + $0x20] sm:$0xff]
    %v2262 = vld [vmem:[%s2256 + $0x28] sm:$0xff]
    %v2263 = vld [vmem:[%s2256 + $0x30] sm:$0xff]
    %v2264 = vld [vmem:[%s2256 + $0x38] sm:$0xff]
    %v2265 = vld [vmem:[%s2256 + $0x40] sm:$0xff]
    %v2266 = vld [vmem:[%s2256 + $0x48] sm:$0xff]
    %v2267 = vld [vmem:[%s2256 + $0x50] sm:$0xff]
    %v2268 = vld [vmem:[%s2256 + $0x58] sm:$0xff]
    %v2269 = vld [vmem:[%s2256 + $0x60] sm:$0xff]
    %v2270 = vld [vmem:[%s2256 + $0x68] sm:$0xff]
    %v2271 = vld [vmem:[%s2256 + $0x70] sm:$0xff]
    %v2272 = vld [vmem:[%s2256 + $0x78] sm:$0xff]
    %s2273 = scalar_lea.vmem [#allocation5], 512
    %v2274 = vld [vmem:[%s2273] sm:$0xff]
    %v2275 = vld [vmem:[%s2273 + $0x8] sm:$0xff]
    %v2276 = vld [vmem:[%s2273 + $0x10] sm:$0xff]
    %v2277 = vld [vmem:[%s2273 + $0x18] sm:$0xff]
    %v2278 = vld [vmem:[%s2273 + $0x20] sm:$0xff]
    %v2279 = vld [vmem:[%s2273 + $0x28] sm:$0xff]
    %v2280 = vld [vmem:[%s2273 + $0x30] sm:$0xff]
    %v2281 = vld [vmem:[%s2273 + $0x38] sm:$0xff]
    %v2282 = vld [vmem:[%s2273 + $0x40] sm:$0xff]
    %v2283 = vld [vmem:[%s2273 + $0x48] sm:$0xff]
    %v2284 = vld [vmem:[%s2273 + $0x50] sm:$0xff]
    %v2285 = vld [vmem:[%s2273 + $0x58] sm:$0xff]
    %v2286 = vld [vmem:[%s2273 + $0x60] sm:$0xff]
    %v2287 = vld [vmem:[%s2273 + $0x68] sm:$0xff]
    %v2288 = vld [vmem:[%s2273 + $0x70] sm:$0xff]
    %v2289 = vld [vmem:[%s2273 + $0x78] sm:$0xff]
    %2290 = vmatprep.subr.mxu0 0.0
    %v2291 = vand.u32 %v2289, 4294901760
    %2292 = vmatpush1.msra.mxu0 %v2291
    %2293 = vmatprep.subr.mxu0 0.0
    %v2294 = vand.u32 %v2288, 4294901760
    %2295 = vmatpush1.msra.mxu0 %v2294
    %2296 = vmatprep.subr.mxu0 0.0
    %v2297 = vand.u32 %v2287, 4294901760
    %2298 = vmatpush1.msra.mxu0 %v2297
    %2299 = vmatprep.subr.mxu0 0.0
    %v2300 = vand.u32 %v2286, 4294901760
    %2301 = vmatpush1.msra.mxu0 %v2300
    %2302 = vmatprep.subr.mxu0 0.0
    %v2303 = vand.u32 %v2285, 4294901760
    %2304 = vmatpush1.msra.mxu0 %v2303
    %2305 = vmatprep.subr.mxu0 0.0
    %v2306 = vand.u32 %v2284, 4294901760
    %2307 = vmatpush1.msra.mxu0 %v2306
    %2308 = vmatprep.subr.mxu0 0.0
    %v2309 = vand.u32 %v2283, 4294901760
    %2310 = vmatpush1.msra.mxu0 %v2309
    %2311 = vmatprep.subr.mxu0 0.0
    %v2312 = vand.u32 %v2282, 4294901760
    %2313 = vmatpush1.msra.mxu0 %v2312
    %2314 = vmatprep.subr.mxu0 0.0
    %v2315 = vand.u32 %v2281, 4294901760
    %2316 = vmatpush1.msra.mxu0 %v2315
    %2317 = vmatprep.subr.mxu0 0.0
    %v2318 = vand.u32 %v2280, 4294901760
    %2319 = vmatpush1.msra.mxu0 %v2318
    %2320 = vmatprep.subr.mxu0 0.0
    %v2321 = vand.u32 %v2279, 4294901760
    %2322 = vmatpush1.msra.mxu0 %v2321
    %2323 = vmatprep.subr.mxu0 0.0
    %v2324 = vand.u32 %v2278, 4294901760
    %2325 = vmatpush1.msra.mxu0 %v2324
    %2326 = vmatprep.subr.mxu0 0.0
    %v2327 = vand.u32 %v2277, 4294901760
    %2328 = vmatpush1.msra.mxu0 %v2327
    %2329 = vmatprep.subr.mxu0 0.0
    %v2330 = vand.u32 %v2276, 4294901760
    %2331 = vmatpush1.msra.mxu0 %v2330
    %2332 = vmatprep.subr.mxu0 0.0
    %v2333 = vand.u32 %v2275, 4294901760
    %2334 = vmatpush1.msra.mxu0 %v2333
    %2335 = vmatprep.subr.mxu0 0.0
    %v2336 = vand.u32 %v2274, 4294901760
    %2337 = vmatpush1.msra.mxu0 %v2336
    %2338 = vmatprep.subr.mxu0 0.0
    %2339 = vmatpush2.msra.mxu0 0.0
    %2340 = vmatprep.subr.mxu0 0.0
    %2341 = vmatpush2.msra.mxu0 0.0
    %2342 = vmatprep.subr.mxu0 0.0
    %2343 = vmatpush2.msra.mxu0 0.0
    %2344 = vmatprep.subr.mxu0 0.0
    %2345 = vmatpush2.msra.mxu0 0.0
    %2346 = vmatprep.subr.mxu0 0.0
    %2347 = vmatpush2.msra.mxu0 0.0
    %2348 = vmatprep.subr.mxu0 0.0
    %2349 = vmatpush2.msra.mxu0 0.0
    %2350 = vmatprep.subr.mxu0 0.0
    %2351 = vmatpush2.msra.mxu0 0.0
    %2352 = vmatprep.subr.mxu0 0.0
    %2353 = vmatpush2.msra.mxu0 0.0
    %2354 = vmatprep.subr.mxu0 0.0
    %2355 = vmatpush2.msra.mxu0 0.0
    %2356 = vmatprep.subr.mxu0 0.0
    %2357 = vmatpush2.msra.mxu0 0.0
    %2358 = vmatprep.subr.mxu0 0.0
    %2359 = vmatpush2.msra.mxu0 0.0
    %2360 = vmatprep.subr.mxu0 0.0
    %2361 = vmatpush2.msra.mxu0 0.0
    %2362 = vmatprep.subr.mxu0 0.0
    %2363 = vmatpush2.msra.mxu0 0.0
    %2364 = vmatprep.subr.mxu0 0.0
    %2365 = vmatpush2.msra.mxu0 0.0
    %2366 = vmatprep.subr.mxu0 0.0
    %2367 = vmatpush2.msra.mxu0 0.0
    %2368 = vmatprep.subr.mxu0 0.0
    %2369 = vmatpush2.msra.mxu0 0.0
    %2370 = vmatprep.mubr.f32.mxu0 0.0
    %v2371 = vand.u32 %v2253, 4294901760
    %v2372 = vsub.f32 %v2253, %v2371
    %v2373 = vand.u32 %v2372, 4294901760
    %v2374 = vsub.f32 %v2372, %v2373
    %v2375 = vand.u32 %v2374, 4294901760
    %2376 = vmatmul.mubr.f32.gmra.mxu0 %v2375
    %v2377 = vpop.f32.mrf.mxu0
    %v2378 = vadd.f32 0.0, %v2377
    %v2379 = vpop.f32.mrf.mxu0
    %2380 = vdwg.mxu0
    %2381 = vmatprep.subr.mxu0 0.0
    %v2382 = vand.u32 %v2289, 4294901760
    %v2383 = vsub.f32 %v2289, %v2382
    %v2384 = vand.u32 %v2383, 4294901760
    %v2385 = vsub.f32 %v2383, %v2384
    %v2386 = vand.u32 %v2385, 4294901760
    %2387 = vmatpush1.msra.mxu0 %v2386
    %2388 = vmatprep.subr.mxu0 0.0
    %v2389 = vand.u32 %v2288, 4294901760
    %v2390 = vsub.f32 %v2288, %v2389
    %v2391 = vand.u32 %v2390, 4294901760
    %v2392 = vsub.f32 %v2390, %v2391
    %v2393 = vand.u32 %v2392, 4294901760
    %2394 = vmatpush1.msra.mxu0 %v2393
    %2395 = vmatprep.subr.mxu0 0.0
    %v2396 = vand.u32 %v2287, 4294901760
    %v2397 = vsub.f32 %v2287, %v2396
    %v2398 = vand.u32 %v2397, 4294901760
    %v2399 = vsub.f32 %v2397, %v2398
    %v2400 = vand.u32 %v2399, 4294901760
    %2401 = vmatpush1.msra.mxu0 %v2400
    %2402 = vmatprep.subr.mxu0 0.0
    %v2403 = vand.u32 %v2286, 4294901760
    %v2404 = vsub.f32 %v2286, %v2403
    %v2405 = vand.u32 %v2404, 4294901760
    %v2406 = vsub.f32 %v2404, %v2405
    %v2407 = vand.u32 %v2406, 4294901760
    %2408 = vmatpush1.msra.mxu0 %v2407
    %2409 = vmatprep.subr.mxu0 0.0
    %v2410 = vand.u32 %v2285, 4294901760
    %v2411 = vsub.f32 %v2285, %v2410
    %v2412 = vand.u32 %v2411, 4294901760
    %v2413 = vsub.f32 %v2411, %v2412
    %v2414 = vand.u32 %v2413, 4294901760
    %2415 = vmatpush1.msra.mxu0 %v2414
    %2416 = vmatprep.subr.mxu0 0.0
    %v2417 = vand.u32 %v2284, 4294901760
    %v2418 = vsub.f32 %v2284, %v2417
    %v2419 = vand.u32 %v2418, 4294901760
    %v2420 = vsub.f32 %v2418, %v2419
    %v2421 = vand.u32 %v2420, 4294901760
    %2422 = vmatpush1.msra.mxu0 %v2421
    %2423 = vmatprep.subr.mxu0 0.0
    %v2424 = vand.u32 %v2283, 4294901760
    %v2425 = vsub.f32 %v2283, %v2424
    %v2426 = vand.u32 %v2425, 4294901760
    %v2427 = vsub.f32 %v2425, %v2426
    %v2428 = vand.u32 %v2427, 4294901760
    %2429 = vmatpush1.msra.mxu0 %v2428
    %2430 = vmatprep.subr.mxu0 0.0
    %v2431 = vand.u32 %v2282, 4294901760
    %v2432 = vsub.f32 %v2282, %v2431
    %v2433 = vand.u32 %v2432, 4294901760
    %v2434 = vsub.f32 %v2432, %v2433
    %v2435 = vand.u32 %v2434, 4294901760
    %2436 = vmatpush1.msra.mxu0 %v2435
    %2437 = vmatprep.subr.mxu0 0.0
    %v2438 = vand.u32 %v2281, 4294901760
    %v2439 = vsub.f32 %v2281, %v2438
    %v2440 = vand.u32 %v2439, 4294901760
    %v2441 = vsub.f32 %v2439, %v2440
    %v2442 = vand.u32 %v2441, 4294901760
    %2443 = vmatpush1.msra.mxu0 %v2442
    %2444 = vmatprep.subr.mxu0 0.0
    %v2445 = vand.u32 %v2280, 4294901760
    %v2446 = vsub.f32 %v2280, %v2445
    %v2447 = vand.u32 %v2446, 4294901760
    %v2448 = vsub.f32 %v2446, %v2447
    %v2449 = vand.u32 %v2448, 4294901760
    %2450 = vmatpush1.msra.mxu0 %v2449
    %2451 = vmatprep.subr.mxu0 0.0
    %v2452 = vand.u32 %v2279, 4294901760
    %v2453 = vsub.f32 %v2279, %v2452
    %v2454 = vand.u32 %v2453, 4294901760
    %v2455 = vsub.f32 %v2453, %v2454
    %v2456 = vand.u32 %v2455, 4294901760
    %2457 = vmatpush1.msra.mxu0 %v2456
    %2458 = vmatprep.subr.mxu0 0.0
    %v2459 = vand.u32 %v2278, 4294901760
    %v2460 = vsub.f32 %v2278, %v2459
    %v2461 = vand.u32 %v2460, 4294901760
    %v2462 = vsub.f32 %v2460, %v2461
    %v2463 = vand.u32 %v2462, 4294901760
    %2464 = vmatpush1.msra.mxu0 %v2463
    %2465 = vmatprep.subr.mxu0 0.0
    %v2466 = vand.u32 %v2277, 4294901760
    %v2467 = vsub.f32 %v2277, %v2466
    %v2468 = vand.u32 %v2467, 4294901760
    %v2469 = vsub.f32 %v2467, %v2468
    %v2470 = vand.u32 %v2469, 4294901760
    %2471 = vmatpush1.msra.mxu0 %v2470
    %2472 = vmatprep.subr.mxu0 0.0
    %v2473 = vand.u32 %v2276, 4294901760
    %v2474 = vsub.f32 %v2276, %v2473
    %v2475 = vand.u32 %v2474, 4294901760
    %v2476 = vsub.f32 %v2474, %v2475
    %v2477 = vand.u32 %v2476, 4294901760
    %2478 = vmatpush1.msra.mxu0 %v2477
    %2479 = vmatprep.subr.mxu0 0.0
    %v2480 = vand.u32 %v2275, 4294901760
    %v2481 = vsub.f32 %v2275, %v2480
    %v2482 = vand.u32 %v2481, 4294901760
    %v2483 = vsub.f32 %v2481, %v2482
    %v2484 = vand.u32 %v2483, 4294901760
    %2485 = vmatpush1.msra.mxu0 %v2484
    %2486 = vmatprep.subr.mxu0 0.0
    %v2487 = vand.u32 %v2274, 4294901760
    %v2488 = vsub.f32 %v2274, %v2487
    %v2489 = vand.u32 %v2488, 4294901760
    %v2490 = vsub.f32 %v2488, %v2489
    %v2491 = vand.u32 %v2490, 4294901760
    %2492 = vmatpush1.msra.mxu0 %v2491
    %2493 = vmatprep.subr.mxu0 0.0
    %2494 = vmatpush2.msra.mxu0 0.0
    %2495 = vmatprep.subr.mxu0 0.0
    %2496 = vmatpush2.msra.mxu0 0.0
    %2497 = vmatprep.subr.mxu0 0.0
    %2498 = vmatpush2.msra.mxu0 0.0
    %2499 = vmatprep.subr.mxu0 0.0
    %2500 = vmatpush2.msra.mxu0 0.0
    %2501 = vmatprep.subr.mxu0 0.0
    %2502 = vmatpush2.msra.mxu0 0.0
    %2503 = vmatprep.subr.mxu0 0.0
    %2504 = vmatpush2.msra.mxu0 0.0
    %2505 = vmatprep.subr.mxu0 0.0
    %2506 = vmatpush2.msra.mxu0 0.0
    %2507 = vmatprep.subr.mxu0 0.0
    %2508 = vmatpush2.msra.mxu0 0.0
    %2509 = vmatprep.subr.mxu0 0.0
    %2510 = vmatpush2.msra.mxu0 0.0
    %2511 = vmatprep.subr.mxu0 0.0
    %2512 = vmatpush2.msra.mxu0 0.0
    %2513 = vmatprep.subr.mxu0 0.0
    %2514 = vmatpush2.msra.mxu0 0.0
    %2515 = vmatprep.subr.mxu0 0.0
    %2516 = vmatpush2.msra.mxu0 0.0
    %2517 = vmatprep.subr.mxu0 0.0
    %2518 = vmatpush2.msra.mxu0 0.0
    %2519 = vmatprep.subr.mxu0 0.0
    %2520 = vmatpush2.msra.mxu0 0.0
    %2521 = vmatprep.subr.mxu0 0.0
    %2522 = vmatpush2.msra.mxu0 0.0
    %2523 = vmatprep.subr.mxu0 0.0
    %2524 = vmatpush2.msra.mxu0 0.0
    %2525 = vmatprep.mubr.f32.mxu0 0.0
    %v2526 = vand.u32 %v2253, 4294901760
    %2527 = vmatmul.mubr.f32.gmra.mxu0 %v2526
    %v2528 = vpop.f32.mrf.mxu0
    %v2529 = vadd.f32 %v2378, %v2528
    %v2530 = vpop.f32.mrf.mxu0
    %2531 = vdwg.mxu0
    %2532 = vmatprep.subr.mxu0 0.0
    %v2533 = vand.u32 %v2289, 4294901760
    %v2534 = vsub.f32 %v2289, %v2533
    %2535 = vmatpush1.msra.mxu0 %v2534
    %2536 = vmatprep.subr.mxu0 0.0
    %v2537 = vand.u32 %v2288, 4294901760
    %v2538 = vsub.f32 %v2288, %v2537
    %2539 = vmatpush1.msra.mxu0 %v2538
    %2540 = vmatprep.subr.mxu0 0.0
    %v2541 = vand.u32 %v2287, 4294901760
    %v2542 = vsub.f32 %v2287, %v2541
    %2543 = vmatpush1.msra.mxu0 %v2542
    %2544 = vmatprep.subr.mxu0 0.0
    %v2545 = vand.u32 %v2286, 4294901760
    %v2546 = vsub.f32 %v2286, %v2545
    %2547 = vmatpush1.msra.mxu0 %v2546
    %2548 = vmatprep.subr.mxu0 0.0
    %v2549 = vand.u32 %v2285, 4294901760
    %v2550 = vsub.f32 %v2285, %v2549
    %2551 = vmatpush1.msra.mxu0 %v2550
    %2552 = vmatprep.subr.mxu0 0.0
    %v2553 = vand.u32 %v2284, 4294901760
    %v2554 = vsub.f32 %v2284, %v2553
    %2555 = vmatpush1.msra.mxu0 %v2554
    %2556 = vmatprep.subr.mxu0 0.0
    %v2557 = vand.u32 %v2283, 4294901760
    %v2558 = vsub.f32 %v2283, %v2557
    %2559 = vmatpush1.msra.mxu0 %v2558
    %2560 = vmatprep.subr.mxu0 0.0
    %v2561 = vand.u32 %v2282, 4294901760
    %v2562 = vsub.f32 %v2282, %v2561
    %2563 = vmatpush1.msra.mxu0 %v2562
    %2564 = vmatprep.subr.mxu0 0.0
    %v2565 = vand.u32 %v2281, 4294901760
    %v2566 = vsub.f32 %v2281, %v2565
    %2567 = vmatpush1.msra.mxu0 %v2566
    %2568 = vmatprep.subr.mxu0 0.0
    %v2569 = vand.u32 %v2280, 4294901760
    %v2570 = vsub.f32 %v2280, %v2569
    %2571 = vmatpush1.msra.mxu0 %v2570
    %2572 = vmatprep.subr.mxu0 0.0
    %v2573 = vand.u32 %v2279, 4294901760
    %v2574 = vsub.f32 %v2279, %v2573
    %2575 = vmatpush1.msra.mxu0 %v2574
    %2576 = vmatprep.subr.mxu0 0.0
    %v2577 = vand.u32 %v2278, 4294901760
    %v2578 = vsub.f32 %v2278, %v2577
    %2579 = vmatpush1.msra.mxu0 %v2578
    %2580 = vmatprep.subr.mxu0 0.0
    %v2581 = vand.u32 %v2277, 4294901760
    %v2582 = vsub.f32 %v2277, %v2581
    %2583 = vmatpush1.msra.mxu0 %v2582
    %2584 = vmatprep.subr.mxu0 0.0
    %v2585 = vand.u32 %v2276, 4294901760
    %v2586 = vsub.f32 %v2276, %v2585
    %2587 = vmatpush1.msra.mxu0 %v2586
    %2588 = vmatprep.subr.mxu0 0.0
    %v2589 = vand.u32 %v2275, 4294901760
    %v2590 = vsub.f32 %v2275, %v2589
    %2591 = vmatpush1.msra.mxu0 %v2590
    %2592 = vmatprep.subr.mxu0 0.0
    %v2593 = vand.u32 %v2274, 4294901760
    %v2594 = vsub.f32 %v2274, %v2593
    %2595 = vmatpush1.msra.mxu0 %v2594
    %2596 = vmatprep.subr.mxu0 0.0
    %2597 = vmatpush2.msra.mxu0 0.0
    %2598 = vmatprep.subr.mxu0 0.0
    %2599 = vmatpush2.msra.mxu0 0.0
    %2600 = vmatprep.subr.mxu0 0.0
    %2601 = vmatpush2.msra.mxu0 0.0
    %2602 = vmatprep.subr.mxu0 0.0
    %2603 = vmatpush2.msra.mxu0 0.0
    %2604 = vmatprep.subr.mxu0 0.0
    %2605 = vmatpush2.msra.mxu0 0.0
    %2606 = vmatprep.subr.mxu0 0.0
    %2607 = vmatpush2.msra.mxu0 0.0
    %2608 = vmatprep.subr.mxu0 0.0
    %2609 = vmatpush2.msra.mxu0 0.0
    %2610 = vmatprep.subr.mxu0 0.0
    %2611 = vmatpush2.msra.mxu0 0.0
    %2612 = vmatprep.subr.mxu0 0.0
    %2613 = vmatpush2.msra.mxu0 0.0
    %2614 = vmatprep.subr.mxu0 0.0
    %2615 = vmatpush2.msra.mxu0 0.0
    %2616 = vmatprep.subr.mxu0 0.0
    %2617 = vmatpush2.msra.mxu0 0.0
    %2618 = vmatprep.subr.mxu0 0.0
    %2619 = vmatpush2.msra.mxu0 0.0
    %2620 = vmatprep.subr.mxu0 0.0
    %2621 = vmatpush2.msra.mxu0 0.0
    %2622 = vmatprep.subr.mxu0 0.0
    %2623 = vmatpush2.msra.mxu0 0.0
    %2624 = vmatprep.subr.mxu0 0.0
    %2625 = vmatpush2.msra.mxu0 0.0
    %2626 = vmatprep.subr.mxu0 0.0
    %2627 = vmatpush2.msra.mxu0 0.0
    %2628 = vmatprep.mubr.f32.mxu0 0.0
    %v2629 = vand.u32 %v2253, 4294901760
    %v2630 = vsub.f32 %v2253, %v2629
    %2631 = vmatmul.mubr.f32.gmra.mxu0 %v2630
    %v2632 = vpop.f32.mrf.mxu0
    %v2633 = vadd.f32 %v2529, %v2632
    %v2634 = vpop.f32.mrf.mxu0
    %2635 = vdwg.mxu0
    %2636 = vmatprep.subr.mxu0 0.0
    %v2637 = vand.u32 %v2289, 4294901760
    %2638 = vmatpush1.msra.mxu0 %v2637
    %2639 = vmatprep.subr.mxu0 0.0
    %v2640 = vand.u32 %v2288, 4294901760
    %2641 = vmatpush1.msra.mxu0 %v2640
    %2642 = vmatprep.subr.mxu0 0.0
    %v2643 = vand.u32 %v2287, 4294901760
    %2644 = vmatpush1.msra.mxu0 %v2643
    %2645 = vmatprep.subr.mxu0 0.0
    %v2646 = vand.u32 %v2286, 4294901760
    %2647 = vmatpush1.msra.mxu0 %v2646
    %2648 = vmatprep.subr.mxu0 0.0
    %v2649 = vand.u32 %v2285, 4294901760
    %2650 = vmatpush1.msra.mxu0 %v2649
    %2651 = vmatprep.subr.mxu0 0.0
    %v2652 = vand.u32 %v2284, 4294901760
    %2653 = vmatpush1.msra.mxu0 %v2652
    %2654 = vmatprep.subr.mxu0 0.0
    %v2655 = vand.u32 %v2283, 4294901760
    %2656 = vmatpush1.msra.mxu0 %v2655
    %2657 = vmatprep.subr.mxu0 0.0
    %v2658 = vand.u32 %v2282, 4294901760
    %2659 = vmatpush1.msra.mxu0 %v2658
    %2660 = vmatprep.subr.mxu0 0.0
    %v2661 = vand.u32 %v2281, 4294901760
    %2662 = vmatpush1.msra.mxu0 %v2661
    %2663 = vmatprep.subr.mxu0 0.0
    %v2664 = vand.u32 %v2280, 4294901760
    %2665 = vmatpush1.msra.mxu0 %v2664
    %2666 = vmatprep.subr.mxu0 0.0
    %v2667 = vand.u32 %v2279, 4294901760
    %2668 = vmatpush1.msra.mxu0 %v2667
    %2669 = vmatprep.subr.mxu0 0.0
    %v2670 = vand.u32 %v2278, 4294901760
    %2671 = vmatpush1.msra.mxu0 %v2670
    %2672 = vmatprep.subr.mxu0 0.0
    %v2673 = vand.u32 %v2277, 4294901760
    %2674 = vmatpush1.msra.mxu0 %v2673
    %2675 = vmatprep.subr.mxu0 0.0
    %v2676 = vand.u32 %v2276, 4294901760
    %2677 = vmatpush1.msra.mxu0 %v2676
    %2678 = vmatprep.subr.mxu0 0.0
    %v2679 = vand.u32 %v2275, 4294901760
    %2680 = vmatpush1.msra.mxu0 %v2679
    %2681 = vmatprep.subr.mxu0 0.0
    %v2682 = vand.u32 %v2274, 4294901760
    %2683 = vmatpush1.msra.mxu0 %v2682
    %2684 = vmatprep.subr.mxu0 0.0
    %2685 = vmatpush2.msra.mxu0 0.0
    %2686 = vmatprep.subr.mxu0 0.0
    %2687 = vmatpush2.msra.mxu0 0.0
    %2688 = vmatprep.subr.mxu0 0.0
    %2689 = vmatpush2.msra.mxu0 0.0
    %2690 = vmatprep.subr.mxu0 0.0
    %2691 = vmatpush2.msra.mxu0 0.0
    %2692 = vmatprep.subr.mxu0 0.0
    %2693 = vmatpush2.msra.mxu0 0.0
    %2694 = vmatprep.subr.mxu0 0.0
    %2695 = vmatpush2.msra.mxu0 0.0
    %2696 = vmatprep.subr.mxu0 0.0
    %2697 = vmatpush2.msra.mxu0 0.0
    %2698 = vmatprep.subr.mxu0 0.0
    %2699 = vmatpush2.msra.mxu0 0.0
    %2700 = vmatprep.subr.mxu0 0.0
    %2701 = vmatpush2.msra.mxu0 0.0
    %2702 = vmatprep.subr.mxu0 0.0
    %2703 = vmatpush2.msra.mxu0 0.0
    %2704 = vmatprep.subr.mxu0 0.0
    %2705 = vmatpush2.msra.mxu0 0.0
    %2706 = vmatprep.subr.mxu0 0.0
    %2707 = vmatpush2.msra.mxu0 0.0
    %2708 = vmatprep.subr.mxu0 0.0
    %2709 = vmatpush2.msra.mxu0 0.0
    %2710 = vmatprep.subr.mxu0 0.0
    %2711 = vmatpush2.msra.mxu0 0.0
    %2712 = vmatprep.subr.mxu0 0.0
    %2713 = vmatpush2.msra.mxu0 0.0
    %2714 = vmatprep.subr.mxu0 0.0
    %2715 = vmatpush2.msra.mxu0 0.0
    %2716 = vmatprep.mubr.f32.mxu0 0.0
    %v2717 = vand.u32 %v2253, 4294901760
    %v2718 = vsub.f32 %v2253, %v2717
    %v2719 = vand.u32 %v2718, 4294901760
    %2720 = vmatmul.mubr.f32.gmra.mxu0 %v2719
    %v2721 = vpop.f32.mrf.mxu0
    %v2722 = vadd.f32 %v2633, %v2721
    %v2723 = vpop.f32.mrf.mxu0
    %2724 = vdwg.mxu0
    %2725 = vmatprep.subr.mxu0 0.0
    %v2726 = vand.u32 %v2289, 4294901760
    %v2727 = vsub.f32 %v2289, %v2726
    %v2728 = vand.u32 %v2727, 4294901760
    %2729 = vmatpush1.msra.mxu0 %v2728
    %2730 = vmatprep.subr.mxu0 0.0
    %v2731 = vand.u32 %v2288, 4294901760
    %v2732 = vsub.f32 %v2288, %v2731
    %v2733 = vand.u32 %v2732, 4294901760
    %2734 = vmatpush1.msra.mxu0 %v2733
    %2735 = vmatprep.subr.mxu0 0.0
    %v2736 = vand.u32 %v2287, 4294901760
    %v2737 = vsub.f32 %v2287, %v2736
    %v2738 = vand.u32 %v2737, 4294901760
    %2739 = vmatpush1.msra.mxu0 %v2738
    %2740 = vmatprep.subr.mxu0 0.0
    %v2741 = vand.u32 %v2286, 4294901760
    %v2742 = vsub.f32 %v2286, %v2741
    %v2743 = vand.u32 %v2742, 4294901760
    %2744 = vmatpush1.msra.mxu0 %v2743
    %2745 = vmatprep.subr.mxu0 0.0
    %v2746 = vand.u32 %v2285, 4294901760
    %v2747 = vsub.f32 %v2285, %v2746
    %v2748 = vand.u32 %v2747, 4294901760
    %2749 = vmatpush1.msra.mxu0 %v2748
    %2750 = vmatprep.subr.mxu0 0.0
    %v2751 = vand.u32 %v2284, 4294901760
    %v2752 = vsub.f32 %v2284, %v2751
    %v2753 = vand.u32 %v2752, 4294901760
    %2754 = vmatpush1.msra.mxu0 %v2753
    %2755 = vmatprep.subr.mxu0 0.0
    %v2756 = vand.u32 %v2283, 4294901760
    %v2757 = vsub.f32 %v2283, %v2756
    %v2758 = vand.u32 %v2757, 4294901760
    %2759 = vmatpush1.msra.mxu0 %v2758
    %2760 = vmatprep.subr.mxu0 0.0
    %v2761 = vand.u32 %v2282, 4294901760
    %v2762 = vsub.f32 %v2282, %v2761
    %v2763 = vand.u32 %v2762, 4294901760
    %2764 = vmatpush1.msra.mxu0 %v2763
    %2765 = vmatprep.subr.mxu0 0.0
    %v2766 = vand.u32 %v2281, 4294901760
    %v2767 = vsub.f32 %v2281, %v2766
    %v2768 = vand.u32 %v2767, 4294901760
    %2769 = vmatpush1.msra.mxu0 %v2768
    %2770 = vmatprep.subr.mxu0 0.0
    %v2771 = vand.u32 %v2280, 4294901760
    %v2772 = vsub.f32 %v2280, %v2771
    %v2773 = vand.u32 %v2772, 4294901760
    %2774 = vmatpush1.msra.mxu0 %v2773
    %2775 = vmatprep.subr.mxu0 0.0
    %v2776 = vand.u32 %v2279, 4294901760
    %v2777 = vsub.f32 %v2279, %v2776
    %v2778 = vand.u32 %v2777, 4294901760
    %2779 = vmatpush1.msra.mxu0 %v2778
    %2780 = vmatprep.subr.mxu0 0.0
    %v2781 = vand.u32 %v2278, 4294901760
    %v2782 = vsub.f32 %v2278, %v2781
    %v2783 = vand.u32 %v2782, 4294901760
    %2784 = vmatpush1.msra.mxu0 %v2783
    %2785 = vmatprep.subr.mxu0 0.0
    %v2786 = vand.u32 %v2277, 4294901760
    %v2787 = vsub.f32 %v2277, %v2786
    %v2788 = vand.u32 %v2787, 4294901760
    %2789 = vmatpush1.msra.mxu0 %v2788
    %2790 = vmatprep.subr.mxu0 0.0
    %v2791 = vand.u32 %v2276, 4294901760
    %v2792 = vsub.f32 %v2276, %v2791
    %v2793 = vand.u32 %v2792, 4294901760
    %2794 = vmatpush1.msra.mxu0 %v2793
    %2795 = vmatprep.subr.mxu0 0.0
    %v2796 = vand.u32 %v2275, 4294901760
    %v2797 = vsub.f32 %v2275, %v2796
    %v2798 = vand.u32 %v2797, 4294901760
    %2799 = vmatpush1.msra.mxu0 %v2798
    %2800 = vmatprep.subr.mxu0 0.0
    %v2801 = vand.u32 %v2274, 4294901760
    %v2802 = vsub.f32 %v2274, %v2801
    %v2803 = vand.u32 %v2802, 4294901760
    %2804 = vmatpush1.msra.mxu0 %v2803
    %2805 = vmatprep.subr.mxu0 0.0
    %2806 = vmatpush2.msra.mxu0 0.0
    %2807 = vmatprep.subr.mxu0 0.0
    %2808 = vmatpush2.msra.mxu0 0.0
    %2809 = vmatprep.subr.mxu0 0.0
    %2810 = vmatpush2.msra.mxu0 0.0
    %2811 = vmatprep.subr.mxu0 0.0
    %2812 = vmatpush2.msra.mxu0 0.0
    %2813 = vmatprep.subr.mxu0 0.0
    %2814 = vmatpush2.msra.mxu0 0.0
    %2815 = vmatprep.subr.mxu0 0.0
    %2816 = vmatpush2.msra.mxu0 0.0
    %2817 = vmatprep.subr.mxu0 0.0
    %2818 = vmatpush2.msra.mxu0 0.0
    %2819 = vmatprep.subr.mxu0 0.0
    %2820 = vmatpush2.msra.mxu0 0.0
    %2821 = vmatprep.subr.mxu0 0.0
    %2822 = vmatpush2.msra.mxu0 0.0
    %2823 = vmatprep.subr.mxu0 0.0
    %2824 = vmatpush2.msra.mxu0 0.0
    %2825 = vmatprep.subr.mxu0 0.0
    %2826 = vmatpush2.msra.mxu0 0.0
    %2827 = vmatprep.subr.mxu0 0.0
    %2828 = vmatpush2.msra.mxu0 0.0
    %2829 = vmatprep.subr.mxu0 0.0
    %2830 = vmatpush2.msra.mxu0 0.0
    %2831 = vmatprep.subr.mxu0 0.0
    %2832 = vmatpush2.msra.mxu0 0.0
    %2833 = vmatprep.subr.mxu0 0.0
    %2834 = vmatpush2.msra.mxu0 0.0
    %2835 = vmatprep.subr.mxu0 0.0
    %2836 = vmatpush2.msra.mxu0 0.0
    %2837 = vmatprep.mubr.f32.mxu0 0.0
    %v2838 = vand.u32 %v2253, 4294901760
    %2839 = vmatmul.mubr.f32.gmra.mxu0 %v2838
    %v2840 = vpop.f32.mrf.mxu0
    %v2841 = vadd.f32 %v2722, %v2840
    %v2842 = vpop.f32.mrf.mxu0
    %2843 = vdwg.mxu0
    %2844 = vmatprep.subr.mxu0 0.0
    %v2845 = vand.u32 %v2289, 4294901760
    %2846 = vmatpush1.msra.mxu0 %v2845
    %2847 = vmatprep.subr.mxu0 0.0
    %v2848 = vand.u32 %v2288, 4294901760
    %2849 = vmatpush1.msra.mxu0 %v2848
    %2850 = vmatprep.subr.mxu0 0.0
    %v2851 = vand.u32 %v2287, 4294901760
    %2852 = vmatpush1.msra.mxu0 %v2851
    %2853 = vmatprep.subr.mxu0 0.0
    %v2854 = vand.u32 %v2286, 4294901760
    %2855 = vmatpush1.msra.mxu0 %v2854
    %2856 = vmatprep.subr.mxu0 0.0
    %v2857 = vand.u32 %v2285, 4294901760
    %2858 = vmatpush1.msra.mxu0 %v2857
    %2859 = vmatprep.subr.mxu0 0.0
    %v2860 = vand.u32 %v2284, 4294901760
    %2861 = vmatpush1.msra.mxu0 %v2860
    %2862 = vmatprep.subr.mxu0 0.0
    %v2863 = vand.u32 %v2283, 4294901760
    %2864 = vmatpush1.msra.mxu0 %v2863
    %2865 = vmatprep.subr.mxu0 0.0
    %v2866 = vand.u32 %v2282, 4294901760
    %2867 = vmatpush1.msra.mxu0 %v2866
    %2868 = vmatprep.subr.mxu0 0.0
    %v2869 = vand.u32 %v2281, 4294901760
    %2870 = vmatpush1.msra.mxu0 %v2869
    %2871 = vmatprep.subr.mxu0 0.0
    %v2872 = vand.u32 %v2280, 4294901760
    %2873 = vmatpush1.msra.mxu0 %v2872
    %2874 = vmatprep.subr.mxu0 0.0
    %v2875 = vand.u32 %v2279, 4294901760
    %2876 = vmatpush1.msra.mxu0 %v2875
    %2877 = vmatprep.subr.mxu0 0.0
    %v2878 = vand.u32 %v2278, 4294901760
    %2879 = vmatpush1.msra.mxu0 %v2878
    %2880 = vmatprep.subr.mxu0 0.0
    %v2881 = vand.u32 %v2277, 4294901760
    %2882 = vmatpush1.msra.mxu0 %v2881
    %2883 = vmatprep.subr.mxu0 0.0
    %v2884 = vand.u32 %v2276, 4294901760
    %2885 = vmatpush1.msra.mxu0 %v2884
    %2886 = vmatprep.subr.mxu0 0.0
    %v2887 = vand.u32 %v2275, 4294901760
    %2888 = vmatpush1.msra.mxu0 %v2887
    %2889 = vmatprep.subr.mxu0 0.0
    %v2890 = vand.u32 %v2274, 4294901760
    %2891 = vmatpush1.msra.mxu0 %v2890
    %2892 = vmatprep.subr.mxu0 0.0
    %2893 = vmatpush2.msra.mxu0 0.0
    %2894 = vmatprep.subr.mxu0 0.0
    %2895 = vmatpush2.msra.mxu0 0.0
    %2896 = vmatprep.subr.mxu0 0.0
    %2897 = vmatpush2.msra.mxu0 0.0
    %2898 = vmatprep.subr.mxu0 0.0
    %2899 = vmatpush2.msra.mxu0 0.0
    %2900 = vmatprep.subr.mxu0 0.0
    %2901 = vmatpush2.msra.mxu0 0.0
    %2902 = vmatprep.subr.mxu0 0.0
    %2903 = vmatpush2.msra.mxu0 0.0
    %2904 = vmatprep.subr.mxu0 0.0
    %2905 = vmatpush2.msra.mxu0 0.0
    %2906 = vmatprep.subr.mxu0 0.0
    %2907 = vmatpush2.msra.mxu0 0.0
    %2908 = vmatprep.subr.mxu0 0.0
    %2909 = vmatpush2.msra.mxu0 0.0
    %2910 = vmatprep.subr.mxu0 0.0
    %2911 = vmatpush2.msra.mxu0 0.0
    %2912 = vmatprep.subr.mxu0 0.0
    %2913 = vmatpush2.msra.mxu0 0.0
    %2914 = vmatprep.subr.mxu0 0.0
    %2915 = vmatpush2.msra.mxu0 0.0
    %2916 = vmatprep.subr.mxu0 0.0
    %2917 = vmatpush2.msra.mxu0 0.0
    %2918 = vmatprep.subr.mxu0 0.0
    %2919 = vmatpush2.msra.mxu0 0.0
    %2920 = vmatprep.subr.mxu0 0.0
    %2921 = vmatpush2.msra.mxu0 0.0
    %2922 = vmatprep.subr.mxu0 0.0
    %2923 = vmatpush2.msra.mxu0 0.0
    %2924 = vmatprep.mubr.f32.mxu0 0.0
    %v2925 = vand.u32 %v2253, 4294901760
    %2926 = vmatmul.mubr.f32.gmra.mxu0 %v2925
    %v2927 = vpop.f32.mrf.mxu0
    %v2928 = vadd.f32 %v2841, %v2927
    %v2929 = vpop.f32.mrf.mxu0
    %2930 = vdwg.mxu0
    %2931 = vmatprep.subr.mxu0 0.0
    %v2932 = vand.u32 %v2272, 4294901760
    %2933 = vmatpush1.msra.mxu0 %v2932
    %2934 = vmatprep.subr.mxu0 0.0
    %v2935 = vand.u32 %v2271, 4294901760
    %2936 = vmatpush1.msra.mxu0 %v2935
    %2937 = vmatprep.subr.mxu0 0.0
    %v2938 = vand.u32 %v2270, 4294901760
    %2939 = vmatpush1.msra.mxu0 %v2938
    %2940 = vmatprep.subr.mxu0 0.0
    %v2941 = vand.u32 %v2269, 4294901760
    %2942 = vmatpush1.msra.mxu0 %v2941
    %2943 = vmatprep.subr.mxu0 0.0
    %v2944 = vand.u32 %v2268, 4294901760
    %2945 = vmatpush1.msra.mxu0 %v2944
    %2946 = vmatprep.subr.mxu0 0.0
    %v2947 = vand.u32 %v2267, 4294901760
    %2948 = vmatpush1.msra.mxu0 %v2947
    %2949 = vmatprep.subr.mxu0 0.0
    %v2950 = vand.u32 %v2266, 4294901760
    %2951 = vmatpush1.msra.mxu0 %v2950
    %2952 = vmatprep.subr.mxu0 0.0
    %v2953 = vand.u32 %v2265, 4294901760
    %2954 = vmatpush1.msra.mxu0 %v2953
    %2955 = vmatprep.subr.mxu0 0.0
    %v2956 = vand.u32 %v2264, 4294901760
    %2957 = vmatpush1.msra.mxu0 %v2956
    %2958 = vmatprep.subr.mxu0 0.0
    %v2959 = vand.u32 %v2263, 4294901760
    %2960 = vmatpush1.msra.mxu0 %v2959
    %2961 = vmatprep.subr.mxu0 0.0
    %v2962 = vand.u32 %v2262, 4294901760
    %2963 = vmatpush1.msra.mxu0 %v2962
    %2964 = vmatprep.subr.mxu0 0.0
    %v2965 = vand.u32 %v2261, 4294901760
    %2966 = vmatpush1.msra.mxu0 %v2965
    %2967 = vmatprep.subr.mxu0 0.0
    %v2968 = vand.u32 %v2260, 4294901760
    %2969 = vmatpush1.msra.mxu0 %v2968
    %2970 = vmatprep.subr.mxu0 0.0
    %v2971 = vand.u32 %v2259, 4294901760
    %2972 = vmatpush1.msra.mxu0 %v2971
    %2973 = vmatprep.subr.mxu0 0.0
    %v2974 = vand.u32 %v2258, 4294901760
    %2975 = vmatpush1.msra.mxu0 %v2974
    %2976 = vmatprep.subr.mxu0 0.0
    %v2977 = vand.u32 %v2257, 4294901760
    %2978 = vmatpush1.msra.mxu0 %v2977
    %2979 = vmatprep.subr.mxu0 0.0
    %2980 = vmatpush2.msra.mxu0 0.0
    %2981 = vmatprep.subr.mxu0 0.0
    %2982 = vmatpush2.msra.mxu0 0.0
    %2983 = vmatprep.subr.mxu0 0.0
    %2984 = vmatpush2.msra.mxu0 0.0
    %2985 = vmatprep.subr.mxu0 0.0
    %2986 = vmatpush2.msra.mxu0 0.0
    %2987 = vmatprep.subr.mxu0 0.0
    %2988 = vmatpush2.msra.mxu0 0.0
    %2989 = vmatprep.subr.mxu0 0.0
    %2990 = vmatpush2.msra.mxu0 0.0
    %2991 = vmatprep.subr.mxu0 0.0
    %2992 = vmatpush2.msra.mxu0 0.0
    %2993 = vmatprep.subr.mxu0 0.0
    %2994 = vmatpush2.msra.mxu0 0.0
    %2995 = vmatprep.subr.mxu0 0.0
    %2996 = vmatpush2.msra.mxu0 0.0
    %2997 = vmatprep.subr.mxu0 0.0
    %2998 = vmatpush2.msra.mxu0 0.0
    %2999 = vmatprep.subr.mxu0 0.0
    %3000 = vmatpush2.msra.mxu0 0.0
    %3001 = vmatprep.subr.mxu0 0.0
    %3002 = vmatpush2.msra.mxu0 0.0
    %3003 = vmatprep.subr.mxu0 0.0
    %3004 = vmatpush2.msra.mxu0 0.0
    %3005 = vmatprep.subr.mxu0 0.0
    %3006 = vmatpush2.msra.mxu0 0.0
    %3007 = vmatprep.subr.mxu0 0.0
    %3008 = vmatpush2.msra.mxu0 0.0
    %3009 = vmatprep.subr.mxu0 0.0
    %3010 = vmatpush2.msra.mxu0 0.0
    %3011 = vmatprep.mubr.f32.mxu0 0.0
    %v3012 = vand.u32 %v52, 4294901760
    %v3013 = vsub.f32 %v52, %v3012
    %v3014 = vand.u32 %v3013, 4294901760
    %v3015 = vsub.f32 %v3013, %v3014
    %v3016 = vand.u32 %v3015, 4294901760
    %3017 = vmatmul.mubr.f32.gmra.mxu0 %v3016
    %v3018 = vpop.f32.mrf.mxu0
    %v3019 = vadd.f32 %v2928, %v3018
    %v3020 = vpop.f32.mrf.mxu0
    %3021 = vdwg.mxu0
    %3022 = vmatprep.subr.mxu0 0.0
    %v3023 = vand.u32 %v2272, 4294901760
    %v3024 = vsub.f32 %v2272, %v3023
    %v3025 = vand.u32 %v3024, 4294901760
    %v3026 = vsub.f32 %v3024, %v3025
    %v3027 = vand.u32 %v3026, 4294901760
    %3028 = vmatpush1.msra.mxu0 %v3027
    %3029 = vmatprep.subr.mxu0 0.0
    %v3030 = vand.u32 %v2271, 4294901760
    %v3031 = vsub.f32 %v2271, %v3030
    %v3032 = vand.u32 %v3031, 4294901760
    %v3033 = vsub.f32 %v3031, %v3032
    %v3034 = vand.u32 %v3033, 4294901760
    %3035 = vmatpush1.msra.mxu0 %v3034
    %3036 = vmatprep.subr.mxu0 0.0
    %v3037 = vand.u32 %v2270, 4294901760
    %v3038 = vsub.f32 %v2270, %v3037
    %v3039 = vand.u32 %v3038, 4294901760
    %v3040 = vsub.f32 %v3038, %v3039
    %v3041 = vand.u32 %v3040, 4294901760
    %3042 = vmatpush1.msra.mxu0 %v3041
    %3043 = vmatprep.subr.mxu0 0.0
    %v3044 = vand.u32 %v2269, 4294901760
    %v3045 = vsub.f32 %v2269, %v3044
    %v3046 = vand.u32 %v3045, 4294901760
    %v3047 = vsub.f32 %v3045, %v3046
    %v3048 = vand.u32 %v3047, 4294901760
    %3049 = vmatpush1.msra.mxu0 %v3048
    %3050 = vmatprep.subr.mxu0 0.0
    %v3051 = vand.u32 %v2268, 4294901760
    %v3052 = vsub.f32 %v2268, %v3051
    %v3053 = vand.u32 %v3052, 4294901760
    %v3054 = vsub.f32 %v3052, %v3053
    %v3055 = vand.u32 %v3054, 4294901760
    %3056 = vmatpush1.msra.mxu0 %v3055
    %3057 = vmatprep.subr.mxu0 0.0
    %v3058 = vand.u32 %v2267, 4294901760
    %v3059 = vsub.f32 %v2267, %v3058
    %v3060 = vand.u32 %v3059, 4294901760
    %v3061 = vsub.f32 %v3059, %v3060
    %v3062 = vand.u32 %v3061, 4294901760
    %3063 = vmatpush1.msra.mxu0 %v3062
    %3064 = vmatprep.subr.mxu0 0.0
    %v3065 = vand.u32 %v2266, 4294901760
    %v3066 = vsub.f32 %v2266, %v3065
    %v3067 = vand.u32 %v3066, 4294901760
    %v3068 = vsub.f32 %v3066, %v3067
    %v3069 = vand.u32 %v3068, 4294901760
    %3070 = vmatpush1.msra.mxu0 %v3069
    %3071 = vmatprep.subr.mxu0 0.0
    %v3072 = vand.u32 %v2265, 4294901760
    %v3073 = vsub.f32 %v2265, %v3072
    %v3074 = vand.u32 %v3073, 4294901760
    %v3075 = vsub.f32 %v3073, %v3074
    %v3076 = vand.u32 %v3075, 4294901760
    %3077 = vmatpush1.msra.mxu0 %v3076
    %3078 = vmatprep.subr.mxu0 0.0
    %v3079 = vand.u32 %v2264, 4294901760
    %v3080 = vsub.f32 %v2264, %v3079
    %v3081 = vand.u32 %v3080, 4294901760
    %v3082 = vsub.f32 %v3080, %v3081
    %v3083 = vand.u32 %v3082, 4294901760
    %3084 = vmatpush1.msra.mxu0 %v3083
    %3085 = vmatprep.subr.mxu0 0.0
    %v3086 = vand.u32 %v2263, 4294901760
    %v3087 = vsub.f32 %v2263, %v3086
    %v3088 = vand.u32 %v3087, 4294901760
    %v3089 = vsub.f32 %v3087, %v3088
    %v3090 = vand.u32 %v3089, 4294901760
    %3091 = vmatpush1.msra.mxu0 %v3090
    %3092 = vmatprep.subr.mxu0 0.0
    %v3093 = vand.u32 %v2262, 4294901760
    %v3094 = vsub.f32 %v2262, %v3093
    %v3095 = vand.u32 %v3094, 4294901760
    %v3096 = vsub.f32 %v3094, %v3095
    %v3097 = vand.u32 %v3096, 4294901760
    %3098 = vmatpush1.msra.mxu0 %v3097
    %3099 = vmatprep.subr.mxu0 0.0
    %v3100 = vand.u32 %v2261, 4294901760
    %v3101 = vsub.f32 %v2261, %v3100
    %v3102 = vand.u32 %v3101, 4294901760
    %v3103 = vsub.f32 %v3101, %v3102
    %v3104 = vand.u32 %v3103, 4294901760
    %3105 = vmatpush1.msra.mxu0 %v3104
    %3106 = vmatprep.subr.mxu0 0.0
    %v3107 = vand.u32 %v2260, 4294901760
    %v3108 = vsub.f32 %v2260, %v3107
    %v3109 = vand.u32 %v3108, 4294901760
    %v3110 = vsub.f32 %v3108, %v3109
    %v3111 = vand.u32 %v3110, 4294901760
    %3112 = vmatpush1.msra.mxu0 %v3111
    %3113 = vmatprep.subr.mxu0 0.0
    %v3114 = vand.u32 %v2259, 4294901760
    %v3115 = vsub.f32 %v2259, %v3114
    %v3116 = vand.u32 %v3115, 4294901760
    %v3117 = vsub.f32 %v3115, %v3116
    %v3118 = vand.u32 %v3117, 4294901760
    %3119 = vmatpush1.msra.mxu0 %v3118
    %3120 = vmatprep.subr.mxu0 0.0
    %v3121 = vand.u32 %v2258, 4294901760
    %v3122 = vsub.f32 %v2258, %v3121
    %v3123 = vand.u32 %v3122, 4294901760
    %v3124 = vsub.f32 %v3122, %v3123
    %v3125 = vand.u32 %v3124, 4294901760
    %3126 = vmatpush1.msra.mxu0 %v3125
    %3127 = vmatprep.subr.mxu0 0.0
    %v3128 = vand.u32 %v2257, 4294901760
    %v3129 = vsub.f32 %v2257, %v3128
    %v3130 = vand.u32 %v3129, 4294901760
    %v3131 = vsub.f32 %v3129, %v3130
    %v3132 = vand.u32 %v3131, 4294901760
    %3133 = vmatpush1.msra.mxu0 %v3132
    %3134 = vmatprep.subr.mxu0 0.0
    %3135 = vmatpush2.msra.mxu0 0.0
    %3136 = vmatprep.subr.mxu0 0.0
    %3137 = vmatpush2.msra.mxu0 0.0
    %3138 = vmatprep.subr.mxu0 0.0
    %3139 = vmatpush2.msra.mxu0 0.0
    %3140 = vmatprep.subr.mxu0 0.0
    %3141 = vmatpush2.msra.mxu0 0.0
    %3142 = vmatprep.subr.mxu0 0.0
    %3143 = vmatpush2.msra.mxu0 0.0
    %3144 = vmatprep.subr.mxu0 0.0
    %3145 = vmatpush2.msra.mxu0 0.0
    %3146 = vmatprep.subr.mxu0 0.0
    %3147 = vmatpush2.msra.mxu0 0.0
    %3148 = vmatprep.subr.mxu0 0.0
    %3149 = vmatpush2.msra.mxu0 0.0
    %3150 = vmatprep.subr.mxu0 0.0
    %3151 = vmatpush2.msra.mxu0 0.0
    %3152 = vmatprep.subr.mxu0 0.0
    %3153 = vmatpush2.msra.mxu0 0.0
    %3154 = vmatprep.subr.mxu0 0.0
    %3155 = vmatpush2.msra.mxu0 0.0
    %3156 = vmatprep.subr.mxu0 0.0
    %3157 = vmatpush2.msra.mxu0 0.0
    %3158 = vmatprep.subr.mxu0 0.0
    %3159 = vmatpush2.msra.mxu0 0.0
    %3160 = vmatprep.subr.mxu0 0.0
    %3161 = vmatpush2.msra.mxu0 0.0
    %3162 = vmatprep.subr.mxu0 0.0
    %3163 = vmatpush2.msra.mxu0 0.0
    %3164 = vmatprep.subr.mxu0 0.0
    %3165 = vmatpush2.msra.mxu0 0.0
    %3166 = vmatprep.mubr.f32.mxu0 0.0
    %v3167 = vand.u32 %v52, 4294901760
    %3168 = vmatmul.mubr.f32.gmra.mxu0 %v3167
    %v3169 = vpop.f32.mrf.mxu0
    %v3170 = vadd.f32 %v3019, %v3169
    %v3171 = vpop.f32.mrf.mxu0
    %3172 = vdwg.mxu0
    %3173 = vmatprep.subr.mxu0 0.0
    %v3174 = vand.u32 %v2272, 4294901760
    %v3175 = vsub.f32 %v2272, %v3174
    %3176 = vmatpush1.msra.mxu0 %v3175
    %3177 = vmatprep.subr.mxu0 0.0
    %v3178 = vand.u32 %v2271, 4294901760
    %v3179 = vsub.f32 %v2271, %v3178
    %3180 = vmatpush1.msra.mxu0 %v3179
    %3181 = vmatprep.subr.mxu0 0.0
    %v3182 = vand.u32 %v2270, 4294901760
    %v3183 = vsub.f32 %v2270, %v3182
    %3184 = vmatpush1.msra.mxu0 %v3183
    %3185 = vmatprep.subr.mxu0 0.0
    %v3186 = vand.u32 %v2269, 4294901760
    %v3187 = vsub.f32 %v2269, %v3186
    %3188 = vmatpush1.msra.mxu0 %v3187
    %3189 = vmatprep.subr.mxu0 0.0
    %v3190 = vand.u32 %v2268, 4294901760
    %v3191 = vsub.f32 %v2268, %v3190
    %3192 = vmatpush1.msra.mxu0 %v3191
    %3193 = vmatprep.subr.mxu0 0.0
    %v3194 = vand.u32 %v2267, 4294901760
    %v3195 = vsub.f32 %v2267, %v3194
    %3196 = vmatpush1.msra.mxu0 %v3195
    %3197 = vmatprep.subr.mxu0 0.0
    %v3198 = vand.u32 %v2266, 4294901760
    %v3199 = vsub.f32 %v2266, %v3198
    %3200 = vmatpush1.msra.mxu0 %v3199
    %3201 = vmatprep.subr.mxu0 0.0
    %v3202 = vand.u32 %v2265, 4294901760
    %v3203 = vsub.f32 %v2265, %v3202
    %3204 = vmatpush1.msra.mxu0 %v3203
    %3205 = vmatprep.subr.mxu0 0.0
    %v3206 = vand.u32 %v2264, 4294901760
    %v3207 = vsub.f32 %v2264, %v3206
    %3208 = vmatpush1.msra.mxu0 %v3207
    %3209 = vmatprep.subr.mxu0 0.0
    %v3210 = vand.u32 %v2263, 4294901760
    %v3211 = vsub.f32 %v2263, %v3210
    %3212 = vmatpush1.msra.mxu0 %v3211
    %3213 = vmatprep.subr.mxu0 0.0
    %v3214 = vand.u32 %v2262, 4294901760
    %v3215 = vsub.f32 %v2262, %v3214
    %3216 = vmatpush1.msra.mxu0 %v3215
    %3217 = vmatprep.subr.mxu0 0.0
    %v3218 = vand.u32 %v2261, 4294901760
    %v3219 = vsub.f32 %v2261, %v3218
    %3220 = vmatpush1.msra.mxu0 %v3219
    %3221 = vmatprep.subr.mxu0 0.0
    %v3222 = vand.u32 %v2260, 4294901760
    %v3223 = vsub.f32 %v2260, %v3222
    %3224 = vmatpush1.msra.mxu0 %v3223
    %3225 = vmatprep.subr.mxu0 0.0
    %v3226 = vand.u32 %v2259, 4294901760
    %v3227 = vsub.f32 %v2259, %v3226
    %3228 = vmatpush1.msra.mxu0 %v3227
    %3229 = vmatprep.subr.mxu0 0.0
    %v3230 = vand.u32 %v2258, 4294901760
    %v3231 = vsub.f32 %v2258, %v3230
    %3232 = vmatpush1.msra.mxu0 %v3231
    %3233 = vmatprep.subr.mxu0 0.0
    %v3234 = vand.u32 %v2257, 4294901760
    %v3235 = vsub.f32 %v2257, %v3234
    %3236 = vmatpush1.msra.mxu0 %v3235
    %3237 = vmatprep.subr.mxu0 0.0
    %3238 = vmatpush2.msra.mxu0 0.0
    %3239 = vmatprep.subr.mxu0 0.0
    %3240 = vmatpush2.msra.mxu0 0.0
    %3241 = vmatprep.subr.mxu0 0.0
    %3242 = vmatpush2.msra.mxu0 0.0
    %3243 = vmatprep.subr.mxu0 0.0
    %3244 = vmatpush2.msra.mxu0 0.0
    %3245 = vmatprep.subr.mxu0 0.0
    %3246 = vmatpush2.msra.mxu0 0.0
    %3247 = vmatprep.subr.mxu0 0.0
    %3248 = vmatpush2.msra.mxu0 0.0
    %3249 = vmatprep.subr.mxu0 0.0
    %3250 = vmatpush2.msra.mxu0 0.0
    %3251 = vmatprep.subr.mxu0 0.0
    %3252 = vmatpush2.msra.mxu0 0.0
    %3253 = vmatprep.subr.mxu0 0.0
    %3254 = vmatpush2.msra.mxu0 0.0
    %3255 = vmatprep.subr.mxu0 0.0
    %3256 = vmatpush2.msra.mxu0 0.0
    %3257 = vmatprep.subr.mxu0 0.0
    %3258 = vmatpush2.msra.mxu0 0.0
    %3259 = vmatprep.subr.mxu0 0.0
    %3260 = vmatpush2.msra.mxu0 0.0
    %3261 = vmatprep.subr.mxu0 0.0
    %3262 = vmatpush2.msra.mxu0 0.0
    %3263 = vmatprep.subr.mxu0 0.0
    %3264 = vmatpush2.msra.mxu0 0.0
    %3265 = vmatprep.subr.mxu0 0.0
    %3266 = vmatpush2.msra.mxu0 0.0
    %3267 = vmatprep.subr.mxu0 0.0
    %3268 = vmatpush2.msra.mxu0 0.0
    %3269 = vmatprep.mubr.f32.mxu0 0.0
    %v3270 = vand.u32 %v52, 4294901760
    %v3271 = vsub.f32 %v52, %v3270
    %3272 = vmatmul.mubr.f32.gmra.mxu0 %v3271
    %v3273 = vpop.f32.mrf.mxu0
    %v3274 = vadd.f32 %v3170, %v3273
    %v3275 = vpop.f32.mrf.mxu0
    %3276 = vdwg.mxu0
    %3277 = vmatprep.subr.mxu0 0.0
    %v3278 = vand.u32 %v2272, 4294901760
    %3279 = vmatpush1.msra.mxu0 %v3278
    %3280 = vmatprep.subr.mxu0 0.0
    %v3281 = vand.u32 %v2271, 4294901760
    %3282 = vmatpush1.msra.mxu0 %v3281
    %3283 = vmatprep.subr.mxu0 0.0
    %v3284 = vand.u32 %v2270, 4294901760
    %3285 = vmatpush1.msra.mxu0 %v3284
    %3286 = vmatprep.subr.mxu0 0.0
    %v3287 = vand.u32 %v2269, 4294901760
    %3288 = vmatpush1.msra.mxu0 %v3287
    %3289 = vmatprep.subr.mxu0 0.0
    %v3290 = vand.u32 %v2268, 4294901760
    %3291 = vmatpush1.msra.mxu0 %v3290
    %3292 = vmatprep.subr.mxu0 0.0
    %v3293 = vand.u32 %v2267, 4294901760
    %3294 = vmatpush1.msra.mxu0 %v3293
    %3295 = vmatprep.subr.mxu0 0.0
    %v3296 = vand.u32 %v2266, 4294901760
    %3297 = vmatpush1.msra.mxu0 %v3296
    %3298 = vmatprep.subr.mxu0 0.0
    %v3299 = vand.u32 %v2265, 4294901760
    %3300 = vmatpush1.msra.mxu0 %v3299
    %3301 = vmatprep.subr.mxu0 0.0
    %v3302 = vand.u32 %v2264, 4294901760
    %3303 = vmatpush1.msra.mxu0 %v3302
    %3304 = vmatprep.subr.mxu0 0.0
    %v3305 = vand.u32 %v2263, 4294901760
    %3306 = vmatpush1.msra.mxu0 %v3305
    %3307 = vmatprep.subr.mxu0 0.0
    %v3308 = vand.u32 %v2262, 4294901760
    %3309 = vmatpush1.msra.mxu0 %v3308
    %3310 = vmatprep.subr.mxu0 0.0
    %v3311 = vand.u32 %v2261, 4294901760
    %3312 = vmatpush1.msra.mxu0 %v3311
    %3313 = vmatprep.subr.mxu0 0.0
    %v3314 = vand.u32 %v2260, 4294901760
    %3315 = vmatpush1.msra.mxu0 %v3314
    %3316 = vmatprep.subr.mxu0 0.0
    %v3317 = vand.u32 %v2259, 4294901760
    %3318 = vmatpush1.msra.mxu0 %v3317
    %3319 = vmatprep.subr.mxu0 0.0
    %v3320 = vand.u32 %v2258, 4294901760
    %3321 = vmatpush1.msra.mxu0 %v3320
    %3322 = vmatprep.subr.mxu0 0.0
    %v3323 = vand.u32 %v2257, 4294901760
    %3324 = vmatpush1.msra.mxu0 %v3323
    %3325 = vmatprep.subr.mxu0 0.0
    %3326 = vmatpush2.msra.mxu0 0.0
    %3327 = vmatprep.subr.mxu0 0.0
    %3328 = vmatpush2.msra.mxu0 0.0
    %3329 = vmatprep.subr.mxu0 0.0
    %3330 = vmatpush2.msra.mxu0 0.0
    %3331 = vmatprep.subr.mxu0 0.0
    %3332 = vmatpush2.msra.mxu0 0.0
    %3333 = vmatprep.subr.mxu0 0.0
    %3334 = vmatpush2.msra.mxu0 0.0
    %3335 = vmatprep.subr.mxu0 0.0
    %3336 = vmatpush2.msra.mxu0 0.0
    %3337 = vmatprep.subr.mxu0 0.0
    %3338 = vmatpush2.msra.mxu0 0.0
    %3339 = vmatprep.subr.mxu0 0.0
    %3340 = vmatpush2.msra.mxu0 0.0
    %3341 = vmatprep.subr.mxu0 0.0
    %3342 = vmatpush2.msra.mxu0 0.0
    %3343 = vmatprep.subr.mxu0 0.0
    %3344 = vmatpush2.msra.mxu0 0.0
    %3345 = vmatprep.subr.mxu0 0.0
    %3346 = vmatpush2.msra.mxu0 0.0
    %3347 = vmatprep.subr.mxu0 0.0
    %3348 = vmatpush2.msra.mxu0 0.0
    %3349 = vmatprep.subr.mxu0 0.0
    %3350 = vmatpush2.msra.mxu0 0.0
    %3351 = vmatprep.subr.mxu0 0.0
    %3352 = vmatpush2.msra.mxu0 0.0
    %3353 = vmatprep.subr.mxu0 0.0
    %3354 = vmatpush2.msra.mxu0 0.0
    %3355 = vmatprep.subr.mxu0 0.0
    %3356 = vmatpush2.msra.mxu0 0.0
    %3357 = vmatprep.mubr.f32.mxu0 0.0
    %v3358 = vand.u32 %v52, 4294901760
    %v3359 = vsub.f32 %v52, %v3358
    %v3360 = vand.u32 %v3359, 4294901760
    %3361 = vmatmul.mubr.f32.gmra.mxu0 %v3360
    %v3362 = vpop.f32.mrf.mxu0
    %v3363 = vadd.f32 %v3274, %v3362
    %v3364 = vpop.f32.mrf.mxu0
    %3365 = vdwg.mxu0
    %3366 = vmatprep.subr.mxu0 0.0
    %v3367 = vand.u32 %v2272, 4294901760
    %v3368 = vsub.f32 %v2272, %v3367
    %v3369 = vand.u32 %v3368, 4294901760
    %3370 = vmatpush1.msra.mxu0 %v3369
    %3371 = vmatprep.subr.mxu0 0.0
    %v3372 = vand.u32 %v2271, 4294901760
    %v3373 = vsub.f32 %v2271, %v3372
    %v3374 = vand.u32 %v3373, 4294901760
    %3375 = vmatpush1.msra.mxu0 %v3374
    %3376 = vmatprep.subr.mxu0 0.0
    %v3377 = vand.u32 %v2270, 4294901760
    %v3378 = vsub.f32 %v2270, %v3377
    %v3379 = vand.u32 %v3378, 4294901760
    %3380 = vmatpush1.msra.mxu0 %v3379
    %3381 = vmatprep.subr.mxu0 0.0
    %v3382 = vand.u32 %v2269, 4294901760
    %v3383 = vsub.f32 %v2269, %v3382
    %v3384 = vand.u32 %v3383, 4294901760
    %3385 = vmatpush1.msra.mxu0 %v3384
    %3386 = vmatprep.subr.mxu0 0.0
    %v3387 = vand.u32 %v2268, 4294901760
    %v3388 = vsub.f32 %v2268, %v3387
    %v3389 = vand.u32 %v3388, 4294901760
    %3390 = vmatpush1.msra.mxu0 %v3389
    %3391 = vmatprep.subr.mxu0 0.0
    %v3392 = vand.u32 %v2267, 4294901760
    %v3393 = vsub.f32 %v2267, %v3392
    %v3394 = vand.u32 %v3393, 4294901760
    %3395 = vmatpush1.msra.mxu0 %v3394
    %3396 = vmatprep.subr.mxu0 0.0
    %v3397 = vand.u32 %v2266, 4294901760
    %v3398 = vsub.f32 %v2266, %v3397
    %v3399 = vand.u32 %v3398, 4294901760
    %3400 = vmatpush1.msra.mxu0 %v3399
    %3401 = vmatprep.subr.mxu0 0.0
    %v3402 = vand.u32 %v2265, 4294901760
    %v3403 = vsub.f32 %v2265, %v3402
    %v3404 = vand.u32 %v3403, 4294901760
    %3405 = vmatpush1.msra.mxu0 %v3404
    %3406 = vmatprep.subr.mxu0 0.0
    %v3407 = vand.u32 %v2264, 4294901760
    %v3408 = vsub.f32 %v2264, %v3407
    %v3409 = vand.u32 %v3408, 4294901760
    %3410 = vmatpush1.msra.mxu0 %v3409
    %3411 = vmatprep.subr.mxu0 0.0
    %v3412 = vand.u32 %v2263, 4294901760
    %v3413 = vsub.f32 %v2263, %v3412
    %v3414 = vand.u32 %v3413, 4294901760
    %3415 = vmatpush1.msra.mxu0 %v3414
    %3416 = vmatprep.subr.mxu0 0.0
    %v3417 = vand.u32 %v2262, 4294901760
    %v3418 = vsub.f32 %v2262, %v3417
    %v3419 = vand.u32 %v3418, 4294901760
    %3420 = vmatpush1.msra.mxu0 %v3419
    %3421 = vmatprep.subr.mxu0 0.0
    %v3422 = vand.u32 %v2261, 4294901760
    %v3423 = vsub.f32 %v2261, %v3422
    %v3424 = vand.u32 %v3423, 4294901760
    %3425 = vmatpush1.msra.mxu0 %v3424
    %3426 = vmatprep.subr.mxu0 0.0
    %v3427 = vand.u32 %v2260, 4294901760
    %v3428 = vsub.f32 %v2260, %v3427
    %v3429 = vand.u32 %v3428, 4294901760
    %3430 = vmatpush1.msra.mxu0 %v3429
    %3431 = vmatprep.subr.mxu0 0.0
    %v3432 = vand.u32 %v2259, 4294901760
    %v3433 = vsub.f32 %v2259, %v3432
    %v3434 = vand.u32 %v3433, 4294901760
    %3435 = vmatpush1.msra.mxu0 %v3434
    %3436 = vmatprep.subr.mxu0 0.0
    %v3437 = vand.u32 %v2258, 4294901760
    %v3438 = vsub.f32 %v2258, %v3437
    %v3439 = vand.u32 %v3438, 4294901760
    %3440 = vmatpush1.msra.mxu0 %v3439
    %3441 = vmatprep.subr.mxu0 0.0
    %v3442 = vand.u32 %v2257, 4294901760
    %v3443 = vsub.f32 %v2257, %v3442
    %v3444 = vand.u32 %v3443, 4294901760
    %3445 = vmatpush1.msra.mxu0 %v3444
    %3446 = vmatprep.subr.mxu0 0.0
    %3447 = vmatpush2.msra.mxu0 0.0
    %3448 = vmatprep.subr.mxu0 0.0
    %3449 = vmatpush2.msra.mxu0 0.0
    %3450 = vmatprep.subr.mxu0 0.0
    %3451 = vmatpush2.msra.mxu0 0.0
    %3452 = vmatprep.subr.mxu0 0.0
    %3453 = vmatpush2.msra.mxu0 0.0
    %3454 = vmatprep.subr.mxu0 0.0
    %3455 = vmatpush2.msra.mxu0 0.0
    %3456 = vmatprep.subr.mxu0 0.0
    %3457 = vmatpush2.msra.mxu0 0.0
    %3458 = vmatprep.subr.mxu0 0.0
    %3459 = vmatpush2.msra.mxu0 0.0
    %3460 = vmatprep.subr.mxu0 0.0
    %3461 = vmatpush2.msra.mxu0 0.0
    %3462 = vmatprep.subr.mxu0 0.0
    %3463 = vmatpush2.msra.mxu0 0.0
    %3464 = vmatprep.subr.mxu0 0.0
    %3465 = vmatpush2.msra.mxu0 0.0
    %3466 = vmatprep.subr.mxu0 0.0
    %3467 = vmatpush2.msra.mxu0 0.0
    %3468 = vmatprep.subr.mxu0 0.0
    %3469 = vmatpush2.msra.mxu0 0.0
    %3470 = vmatprep.subr.mxu0 0.0
    %3471 = vmatpush2.msra.mxu0 0.0
    %3472 = vmatprep.subr.mxu0 0.0
    %3473 = vmatpush2.msra.mxu0 0.0
    %3474 = vmatprep.subr.mxu0 0.0
    %3475 = vmatpush2.msra.mxu0 0.0
    %3476 = vmatprep.subr.mxu0 0.0
    %3477 = vmatpush2.msra.mxu0 0.0
    %3478 = vmatprep.mubr.f32.mxu0 0.0
    %v3479 = vand.u32 %v52, 4294901760
    %3480 = vmatmul.mubr.f32.gmra.mxu0 %v3479
    %v3481 = vpop.f32.mrf.mxu0
    %v3482 = vadd.f32 %v3363, %v3481
    %v3483 = vpop.f32.mrf.mxu0
    %3484 = vdwg.mxu0
    %3485 = vmatprep.subr.mxu0 0.0
    %v3486 = vand.u32 %v2272, 4294901760
    %3487 = vmatpush1.msra.mxu0 %v3486
    %3488 = vmatprep.subr.mxu0 0.0
    %v3489 = vand.u32 %v2271, 4294901760
    %3490 = vmatpush1.msra.mxu0 %v3489
    %3491 = vmatprep.subr.mxu0 0.0
    %v3492 = vand.u32 %v2270, 4294901760
    %3493 = vmatpush1.msra.mxu0 %v3492
    %3494 = vmatprep.subr.mxu0 0.0
    %v3495 = vand.u32 %v2269, 4294901760
    %3496 = vmatpush1.msra.mxu0 %v3495
    %3497 = vmatprep.subr.mxu0 0.0
    %v3498 = vand.u32 %v2268, 4294901760
    %3499 = vmatpush1.msra.mxu0 %v3498
    %3500 = vmatprep.subr.mxu0 0.0
    %v3501 = vand.u32 %v2267, 4294901760
    %3502 = vmatpush1.msra.mxu0 %v3501
    %3503 = vmatprep.subr.mxu0 0.0
    %v3504 = vand.u32 %v2266, 4294901760
    %3505 = vmatpush1.msra.mxu0 %v3504
    %3506 = vmatprep.subr.mxu0 0.0
    %v3507 = vand.u32 %v2265, 4294901760
    %3508 = vmatpush1.msra.mxu0 %v3507
    %3509 = vmatprep.subr.mxu0 0.0
    %v3510 = vand.u32 %v2264, 4294901760
    %3511 = vmatpush1.msra.mxu0 %v3510
    %3512 = vmatprep.subr.mxu0 0.0
    %v3513 = vand.u32 %v2263, 4294901760
    %3514 = vmatpush1.msra.mxu0 %v3513
    %3515 = vmatprep.subr.mxu0 0.0
    %v3516 = vand.u32 %v2262, 4294901760
    %3517 = vmatpush1.msra.mxu0 %v3516
    %3518 = vmatprep.subr.mxu0 0.0
    %v3519 = vand.u32 %v2261, 4294901760
    %3520 = vmatpush1.msra.mxu0 %v3519
    %3521 = vmatprep.subr.mxu0 0.0
    %v3522 = vand.u32 %v2260, 4294901760
    %3523 = vmatpush1.msra.mxu0 %v3522
    %3524 = vmatprep.subr.mxu0 0.0
    %v3525 = vand.u32 %v2259, 4294901760
    %3526 = vmatpush1.msra.mxu0 %v3525
    %3527 = vmatprep.subr.mxu0 0.0
    %v3528 = vand.u32 %v2258, 4294901760
    %3529 = vmatpush1.msra.mxu0 %v3528
    %3530 = vmatprep.subr.mxu0 0.0
    %v3531 = vand.u32 %v2257, 4294901760
    %3532 = vmatpush1.msra.mxu0 %v3531
    %3533 = vmatprep.subr.mxu0 0.0
    %3534 = vmatpush2.msra.mxu0 0.0
    %3535 = vmatprep.subr.mxu0 0.0
    %3536 = vmatpush2.msra.mxu0 0.0
    %3537 = vmatprep.subr.mxu0 0.0
    %3538 = vmatpush2.msra.mxu0 0.0
    %3539 = vmatprep.subr.mxu0 0.0
    %3540 = vmatpush2.msra.mxu0 0.0
    %3541 = vmatprep.subr.mxu0 0.0
    %3542 = vmatpush2.msra.mxu0 0.0
    %3543 = vmatprep.subr.mxu0 0.0
    %3544 = vmatpush2.msra.mxu0 0.0
    %3545 = vmatprep.subr.mxu0 0.0
    %3546 = vmatpush2.msra.mxu0 0.0
    %3547 = vmatprep.subr.mxu0 0.0
    %3548 = vmatpush2.msra.mxu0 0.0
    %3549 = vmatprep.subr.mxu0 0.0
    %3550 = vmatpush2.msra.mxu0 0.0
    %3551 = vmatprep.subr.mxu0 0.0
    %3552 = vmatpush2.msra.mxu0 0.0
    %3553 = vmatprep.subr.mxu0 0.0
    %3554 = vmatpush2.msra.mxu0 0.0
    %3555 = vmatprep.subr.mxu0 0.0
    %3556 = vmatpush2.msra.mxu0 0.0
    %3557 = vmatprep.subr.mxu0 0.0
    %3558 = vmatpush2.msra.mxu0 0.0
    %3559 = vmatprep.subr.mxu0 0.0
    %3560 = vmatpush2.msra.mxu0 0.0
    %3561 = vmatprep.subr.mxu0 0.0
    %3562 = vmatpush2.msra.mxu0 0.0
    %3563 = vmatprep.subr.mxu0 0.0
    %3564 = vmatpush2.msra.mxu0 0.0
    %3565 = vmatprep.mubr.f32.mxu0 0.0
    %v3566 = vand.u32 %v52, 4294901760
    %3567 = vmatmul.mubr.f32.gmra.mxu0 %v3566
    %v3568 = vpop.f32.mrf.mxu0
    %v3569 = vadd.f32 %v3482, %v3568
    %v3570 = vpop.f32.mrf.mxu0
    %3571 = vdwg.mxu0
    %v3572 = vld [vmem:[#allocation7 + $0x2] sm:$0x1]
    %v3573 = vlaneseq
    %v3574 = vshrl.u32 %v3573, 7
    %v3575 = vsub.s32 0, %v3574
    %v3576 = vrot.slane %v3572, %v3575
    %v3577 = vadd.f32 %v3569, %v3576
    %v3578 = vmax.f32 %v3577, 0.0
    %s3579 = scalar_lea.vmem [#allocation5], 640
    %v3580 = vld [vmem:[%s3579] sm:$0xff]
    %v3581 = vld [vmem:[%s3579 + $0x8] sm:$0xff]
    %v3582 = vld [vmem:[%s3579 + $0x10] sm:$0xff]
    %v3583 = vld [vmem:[%s3579 + $0x18] sm:$0xff]
    %v3584 = vld [vmem:[%s3579 + $0x20] sm:$0xff]
    %v3585 = vld [vmem:[%s3579 + $0x28] sm:$0xff]
    %v3586 = vld [vmem:[%s3579 + $0x30] sm:$0xff]
    %v3587 = vld [vmem:[%s3579 + $0x38] sm:$0xff]
    %v3588 = vld [vmem:[%s3579 + $0x40] sm:$0xff]
    %v3589 = vld [vmem:[%s3579 + $0x48] sm:$0xff]
    %v3590 = vld [vmem:[%s3579 + $0x50] sm:$0xff]
    %v3591 = vld [vmem:[%s3579 + $0x58] sm:$0xff]
    %v3592 = vld [vmem:[%s3579 + $0x60] sm:$0xff]
    %v3593 = vld [vmem:[%s3579 + $0x68] sm:$0xff]
    %v3594 = vld [vmem:[%s3579 + $0x70] sm:$0xff]
    %v3595 = vld [vmem:[%s3579 + $0x78] sm:$0xff]
    %v3596 = vld [vmem:[#allocation7 + $0x3] sm:$0x1]
    %v3597 = vlaneseq
    %v3598 = vshrl.u32 %v3597, 7
    %v3599 = vsub.s32 0, %v3598
    %v3600 = vrot.slane %v3596, %v3599
    %3601 = vmatprep.subr.mxu0 0.0
    %v3602 = vand.u32 %v3595, 4294901760
    %3603 = vmatpush1.msra.mxu0 %v3602
    %3604 = vmatprep.subr.mxu0 0.0
    %v3605 = vand.u32 %v3594, 4294901760
    %3606 = vmatpush1.msra.mxu0 %v3605
    %3607 = vmatprep.subr.mxu0 0.0
    %v3608 = vand.u32 %v3593, 4294901760
    %3609 = vmatpush1.msra.mxu0 %v3608
    %3610 = vmatprep.subr.mxu0 0.0
    %v3611 = vand.u32 %v3592, 4294901760
    %3612 = vmatpush1.msra.mxu0 %v3611
    %3613 = vmatprep.subr.mxu0 0.0
    %v3614 = vand.u32 %v3591, 4294901760
    %3615 = vmatpush1.msra.mxu0 %v3614
    %3616 = vmatprep.subr.mxu0 0.0
    %v3617 = vand.u32 %v3590, 4294901760
    %3618 = vmatpush1.msra.mxu0 %v3617
    %3619 = vmatprep.subr.mxu0 0.0
    %v3620 = vand.u32 %v3589, 4294901760
    %3621 = vmatpush1.msra.mxu0 %v3620
    %3622 = vmatprep.subr.mxu0 0.0
    %v3623 = vand.u32 %v3588, 4294901760
    %3624 = vmatpush1.msra.mxu0 %v3623
    %3625 = vmatprep.subr.mxu0 0.0
    %v3626 = vand.u32 %v3587, 4294901760
    %3627 = vmatpush1.msra.mxu0 %v3626
    %3628 = vmatprep.subr.mxu0 0.0
    %v3629 = vand.u32 %v3586, 4294901760
    %3630 = vmatpush1.msra.mxu0 %v3629
    %3631 = vmatprep.subr.mxu0 0.0
    %v3632 = vand.u32 %v3585, 4294901760
    %3633 = vmatpush1.msra.mxu0 %v3632
    %3634 = vmatprep.subr.mxu0 0.0
    %v3635 = vand.u32 %v3584, 4294901760
    %3636 = vmatpush1.msra.mxu0 %v3635
    %3637 = vmatprep.subr.mxu0 0.0
    %v3638 = vand.u32 %v3583, 4294901760
    %3639 = vmatpush1.msra.mxu0 %v3638
    %3640 = vmatprep.subr.mxu0 0.0
    %v3641 = vand.u32 %v3582, 4294901760
    %3642 = vmatpush1.msra.mxu0 %v3641
    %3643 = vmatprep.subr.mxu0 0.0
    %v3644 = vand.u32 %v3581, 4294901760
    %3645 = vmatpush1.msra.mxu0 %v3644
    %3646 = vmatprep.subr.mxu0 0.0
    %v3647 = vand.u32 %v3580, 4294901760
    %3648 = vmatpush1.msra.mxu0 %v3647
    %3649 = vmatprep.subr.mxu0 0.0
    %3650 = vmatpush2.msra.mxu0 0.0
    %3651 = vmatprep.subr.mxu0 0.0
    %3652 = vmatpush2.msra.mxu0 0.0
    %3653 = vmatprep.subr.mxu0 0.0
    %3654 = vmatpush2.msra.mxu0 0.0
    %3655 = vmatprep.subr.mxu0 0.0
    %3656 = vmatpush2.msra.mxu0 0.0
    %3657 = vmatprep.subr.mxu0 0.0
    %3658 = vmatpush2.msra.mxu0 0.0
    %3659 = vmatprep.subr.mxu0 0.0
    %3660 = vmatpush2.msra.mxu0 0.0
    %3661 = vmatprep.subr.mxu0 0.0
    %3662 = vmatpush2.msra.mxu0 0.0
    %3663 = vmatprep.subr.mxu0 0.0
    %3664 = vmatpush2.msra.mxu0 0.0
    %3665 = vmatprep.subr.mxu0 0.0
    %3666 = vmatpush2.msra.mxu0 0.0
    %3667 = vmatprep.subr.mxu0 0.0
    %3668 = vmatpush2.msra.mxu0 0.0
    %3669 = vmatprep.subr.mxu0 0.0
    %3670 = vmatpush2.msra.mxu0 0.0
    %3671 = vmatprep.subr.mxu0 0.0
    %3672 = vmatpush2.msra.mxu0 0.0
    %3673 = vmatprep.subr.mxu0 0.0
    %3674 = vmatpush2.msra.mxu0 0.0
    %3675 = vmatprep.subr.mxu0 0.0
    %3676 = vmatpush2.msra.mxu0 0.0
    %3677 = vmatprep.subr.mxu0 0.0
    %3678 = vmatpush2.msra.mxu0 0.0
    %3679 = vmatprep.subr.mxu0 0.0
    %3680 = vmatpush2.msra.mxu0 0.0
    %3681 = vmatprep.mubr.f32.mxu0 0.0
    %v3682 = vand.u32 %v3578, 4294901760
    %v3683 = vsub.f32 %v3578, %v3682
    %v3684 = vand.u32 %v3683, 4294901760
    %v3685 = vsub.f32 %v3683, %v3684
    %v3686 = vand.u32 %v3685, 4294901760
    %3687 = vmatmul.mubr.f32.gmra.mxu0 %v3686
    %v3688 = vpop.f32.mrf.mxu0
    %v3689 = vadd.f32 %v3600, %v3688
    %v3690 = vpop.f32.mrf.mxu0
    %3691 = vdwg.mxu0
    %3692 = vmatprep.subr.mxu0 0.0
    %v3693 = vand.u32 %v3595, 4294901760
    %v3694 = vsub.f32 %v3595, %v3693
    %v3695 = vand.u32 %v3694, 4294901760
    %v3696 = vsub.f32 %v3694, %v3695
    %v3697 = vand.u32 %v3696, 4294901760
    %3698 = vmatpush1.msra.mxu0 %v3697
    %3699 = vmatprep.subr.mxu0 0.0
    %v3700 = vand.u32 %v3594, 4294901760
    %v3701 = vsub.f32 %v3594, %v3700
    %v3702 = vand.u32 %v3701, 4294901760
    %v3703 = vsub.f32 %v3701, %v3702
    %v3704 = vand.u32 %v3703, 4294901760
    %3705 = vmatpush1.msra.mxu0 %v3704
    %3706 = vmatprep.subr.mxu0 0.0
    %v3707 = vand.u32 %v3593, 4294901760
    %v3708 = vsub.f32 %v3593, %v3707
    %v3709 = vand.u32 %v3708, 4294901760
    %v3710 = vsub.f32 %v3708, %v3709
    %v3711 = vand.u32 %v3710, 4294901760
    %3712 = vmatpush1.msra.mxu0 %v3711
    %3713 = vmatprep.subr.mxu0 0.0
    %v3714 = vand.u32 %v3592, 4294901760
    %v3715 = vsub.f32 %v3592, %v3714
    %v3716 = vand.u32 %v3715, 4294901760
    %v3717 = vsub.f32 %v3715, %v3716
    %v3718 = vand.u32 %v3717, 4294901760
    %3719 = vmatpush1.msra.mxu0 %v3718
    %3720 = vmatprep.subr.mxu0 0.0
    %v3721 = vand.u32 %v3591, 4294901760
    %v3722 = vsub.f32 %v3591, %v3721
    %v3723 = vand.u32 %v3722, 4294901760
    %v3724 = vsub.f32 %v3722, %v3723
    %v3725 = vand.u32 %v3724, 4294901760
    %3726 = vmatpush1.msra.mxu0 %v3725
    %3727 = vmatprep.subr.mxu0 0.0
    %v3728 = vand.u32 %v3590, 4294901760
    %v3729 = vsub.f32 %v3590, %v3728
    %v3730 = vand.u32 %v3729, 4294901760
    %v3731 = vsub.f32 %v3729, %v3730
    %v3732 = vand.u32 %v3731, 4294901760
    %3733 = vmatpush1.msra.mxu0 %v3732
    %3734 = vmatprep.subr.mxu0 0.0
    %v3735 = vand.u32 %v3589, 4294901760
    %v3736 = vsub.f32 %v3589, %v3735
    %v3737 = vand.u32 %v3736, 4294901760
    %v3738 = vsub.f32 %v3736, %v3737
    %v3739 = vand.u32 %v3738, 4294901760
    %3740 = vmatpush1.msra.mxu0 %v3739
    %3741 = vmatprep.subr.mxu0 0.0
    %v3742 = vand.u32 %v3588, 4294901760
    %v3743 = vsub.f32 %v3588, %v3742
    %v3744 = vand.u32 %v3743, 4294901760
    %v3745 = vsub.f32 %v3743, %v3744
    %v3746 = vand.u32 %v3745, 4294901760
    %3747 = vmatpush1.msra.mxu0 %v3746
    %3748 = vmatprep.subr.mxu0 0.0
    %v3749 = vand.u32 %v3587, 4294901760
    %v3750 = vsub.f32 %v3587, %v3749
    %v3751 = vand.u32 %v3750, 4294901760
    %v3752 = vsub.f32 %v3750, %v3751
    %v3753 = vand.u32 %v3752, 4294901760
    %3754 = vmatpush1.msra.mxu0 %v3753
    %3755 = vmatprep.subr.mxu0 0.0
    %v3756 = vand.u32 %v3586, 4294901760
    %v3757 = vsub.f32 %v3586, %v3756
    %v3758 = vand.u32 %v3757, 4294901760
    %v3759 = vsub.f32 %v3757, %v3758
    %v3760 = vand.u32 %v3759, 4294901760
    %3761 = vmatpush1.msra.mxu0 %v3760
    %3762 = vmatprep.subr.mxu0 0.0
    %v3763 = vand.u32 %v3585, 4294901760
    %v3764 = vsub.f32 %v3585, %v3763
    %v3765 = vand.u32 %v3764, 4294901760
    %v3766 = vsub.f32 %v3764, %v3765
    %v3767 = vand.u32 %v3766, 4294901760
    %3768 = vmatpush1.msra.mxu0 %v3767
    %3769 = vmatprep.subr.mxu0 0.0
    %v3770 = vand.u32 %v3584, 4294901760
    %v3771 = vsub.f32 %v3584, %v3770
    %v3772 = vand.u32 %v3771, 4294901760
    %v3773 = vsub.f32 %v3771, %v3772
    %v3774 = vand.u32 %v3773, 4294901760
    %3775 = vmatpush1.msra.mxu0 %v3774
    %3776 = vmatprep.subr.mxu0 0.0
    %v3777 = vand.u32 %v3583, 4294901760
    %v3778 = vsub.f32 %v3583, %v3777
    %v3779 = vand.u32 %v3778, 4294901760
    %v3780 = vsub.f32 %v3778, %v3779
    %v3781 = vand.u32 %v3780, 4294901760
    %3782 = vmatpush1.msra.mxu0 %v3781
    %3783 = vmatprep.subr.mxu0 0.0
    %v3784 = vand.u32 %v3582, 4294901760
    %v3785 = vsub.f32 %v3582, %v3784
    %v3786 = vand.u32 %v3785, 4294901760
    %v3787 = vsub.f32 %v3785, %v3786
    %v3788 = vand.u32 %v3787, 4294901760
    %3789 = vmatpush1.msra.mxu0 %v3788
    %3790 = vmatprep.subr.mxu0 0.0
    %v3791 = vand.u32 %v3581, 4294901760
    %v3792 = vsub.f32 %v3581, %v3791
    %v3793 = vand.u32 %v3792, 4294901760
    %v3794 = vsub.f32 %v3792, %v3793
    %v3795 = vand.u32 %v3794, 4294901760
    %3796 = vmatpush1.msra.mxu0 %v3795
    %3797 = vmatprep.subr.mxu0 0.0
    %v3798 = vand.u32 %v3580, 4294901760
    %v3799 = vsub.f32 %v3580, %v3798
    %v3800 = vand.u32 %v3799, 4294901760
    %v3801 = vsub.f32 %v3799, %v3800
    %v3802 = vand.u32 %v3801, 4294901760
    %3803 = vmatpush1.msra.mxu0 %v3802
    %3804 = vmatprep.subr.mxu0 0.0
    %3805 = vmatpush2.msra.mxu0 0.0
    %3806 = vmatprep.subr.mxu0 0.0
    %3807 = vmatpush2.msra.mxu0 0.0
    %3808 = vmatprep.subr.mxu0 0.0
    %3809 = vmatpush2.msra.mxu0 0.0
    %3810 = vmatprep.subr.mxu0 0.0
    %3811 = vmatpush2.msra.mxu0 0.0
    %3812 = vmatprep.subr.mxu0 0.0
    %3813 = vmatpush2.msra.mxu0 0.0
    %3814 = vmatprep.subr.mxu0 0.0
    %3815 = vmatpush2.msra.mxu0 0.0
    %3816 = vmatprep.subr.mxu0 0.0
    %3817 = vmatpush2.msra.mxu0 0.0
    %3818 = vmatprep.subr.mxu0 0.0
    %3819 = vmatpush2.msra.mxu0 0.0
    %3820 = vmatprep.subr.mxu0 0.0
    %3821 = vmatpush2.msra.mxu0 0.0
    %3822 = vmatprep.subr.mxu0 0.0
    %3823 = vmatpush2.msra.mxu0 0.0
    %3824 = vmatprep.subr.mxu0 0.0
    %3825 = vmatpush2.msra.mxu0 0.0
    %3826 = vmatprep.subr.mxu0 0.0
    %3827 = vmatpush2.msra.mxu0 0.0
    %3828 = vmatprep.subr.mxu0 0.0
    %3829 = vmatpush2.msra.mxu0 0.0
    %3830 = vmatprep.subr.mxu0 0.0
    %3831 = vmatpush2.msra.mxu0 0.0
    %3832 = vmatprep.subr.mxu0 0.0
    %3833 = vmatpush2.msra.mxu0 0.0
    %3834 = vmatprep.subr.mxu0 0.0
    %3835 = vmatpush2.msra.mxu0 0.0
    %3836 = vmatprep.mubr.f32.mxu0 0.0
    %v3837 = vand.u32 %v3578, 4294901760
    %3838 = vmatmul.mubr.f32.gmra.mxu0 %v3837
    %v3839 = vpop.f32.mrf.mxu0
    %v3840 = vadd.f32 %v3689, %v3839
    %v3841 = vpop.f32.mrf.mxu0
    %3842 = vdwg.mxu0
    %3843 = vmatprep.subr.mxu0 0.0
    %v3844 = vand.u32 %v3595, 4294901760
    %v3845 = vsub.f32 %v3595, %v3844
    %3846 = vmatpush1.msra.mxu0 %v3845
    %3847 = vmatprep.subr.mxu0 0.0
    %v3848 = vand.u32 %v3594, 4294901760
    %v3849 = vsub.f32 %v3594, %v3848
    %3850 = vmatpush1.msra.mxu0 %v3849
    %3851 = vmatprep.subr.mxu0 0.0
    %v3852 = vand.u32 %v3593, 4294901760
    %v3853 = vsub.f32 %v3593, %v3852
    %3854 = vmatpush1.msra.mxu0 %v3853
    %3855 = vmatprep.subr.mxu0 0.0
    %v3856 = vand.u32 %v3592, 4294901760
    %v3857 = vsub.f32 %v3592, %v3856
    %3858 = vmatpush1.msra.mxu0 %v3857
    %3859 = vmatprep.subr.mxu0 0.0
    %v3860 = vand.u32 %v3591, 4294901760
    %v3861 = vsub.f32 %v3591, %v3860
    %3862 = vmatpush1.msra.mxu0 %v3861
    %3863 = vmatprep.subr.mxu0 0.0
    %v3864 = vand.u32 %v3590, 4294901760
    %v3865 = vsub.f32 %v3590, %v3864
    %3866 = vmatpush1.msra.mxu0 %v3865
    %3867 = vmatprep.subr.mxu0 0.0
    %v3868 = vand.u32 %v3589, 4294901760
    %v3869 = vsub.f32 %v3589, %v3868
    %3870 = vmatpush1.msra.mxu0 %v3869
    %3871 = vmatprep.subr.mxu0 0.0
    %v3872 = vand.u32 %v3588, 4294901760
    %v3873 = vsub.f32 %v3588, %v3872
    %3874 = vmatpush1.msra.mxu0 %v3873
    %3875 = vmatprep.subr.mxu0 0.0
    %v3876 = vand.u32 %v3587, 4294901760
    %v3877 = vsub.f32 %v3587, %v3876
    %3878 = vmatpush1.msra.mxu0 %v3877
    %3879 = vmatprep.subr.mxu0 0.0
    %v3880 = vand.u32 %v3586, 4294901760
    %v3881 = vsub.f32 %v3586, %v3880
    %3882 = vmatpush1.msra.mxu0 %v3881
    %3883 = vmatprep.subr.mxu0 0.0
    %v3884 = vand.u32 %v3585, 4294901760
    %v3885 = vsub.f32 %v3585, %v3884
    %3886 = vmatpush1.msra.mxu0 %v3885
    %3887 = vmatprep.subr.mxu0 0.0
    %v3888 = vand.u32 %v3584, 4294901760
    %v3889 = vsub.f32 %v3584, %v3888
    %3890 = vmatpush1.msra.mxu0 %v3889
    %3891 = vmatprep.subr.mxu0 0.0
    %v3892 = vand.u32 %v3583, 4294901760
    %v3893 = vsub.f32 %v3583, %v3892
    %3894 = vmatpush1.msra.mxu0 %v3893
    %3895 = vmatprep.subr.mxu0 0.0
    %v3896 = vand.u32 %v3582, 4294901760
    %v3897 = vsub.f32 %v3582, %v3896
    %3898 = vmatpush1.msra.mxu0 %v3897
    %3899 = vmatprep.subr.mxu0 0.0
    %v3900 = vand.u32 %v3581, 4294901760
    %v3901 = vsub.f32 %v3581, %v3900
    %3902 = vmatpush1.msra.mxu0 %v3901
    %3903 = vmatprep.subr.mxu0 0.0
    %v3904 = vand.u32 %v3580, 4294901760
    %v3905 = vsub.f32 %v3580, %v3904
    %3906 = vmatpush1.msra.mxu0 %v3905
    %3907 = vmatprep.subr.mxu0 0.0
    %3908 = vmatpush2.msra.mxu0 0.0
    %3909 = vmatprep.subr.mxu0 0.0
    %3910 = vmatpush2.msra.mxu0 0.0
    %3911 = vmatprep.subr.mxu0 0.0
    %3912 = vmatpush2.msra.mxu0 0.0
    %3913 = vmatprep.subr.mxu0 0.0
    %3914 = vmatpush2.msra.mxu0 0.0
    %3915 = vmatprep.subr.mxu0 0.0
    %3916 = vmatpush2.msra.mxu0 0.0
    %3917 = vmatprep.subr.mxu0 0.0
    %3918 = vmatpush2.msra.mxu0 0.0
    %3919 = vmatprep.subr.mxu0 0.0
    %3920 = vmatpush2.msra.mxu0 0.0
    %3921 = vmatprep.subr.mxu0 0.0
    %3922 = vmatpush2.msra.mxu0 0.0
    %3923 = vmatprep.subr.mxu0 0.0
    %3924 = vmatpush2.msra.mxu0 0.0
    %3925 = vmatprep.subr.mxu0 0.0
    %3926 = vmatpush2.msra.mxu0 0.0
    %3927 = vmatprep.subr.mxu0 0.0
    %3928 = vmatpush2.msra.mxu0 0.0
    %3929 = vmatprep.subr.mxu0 0.0
    %3930 = vmatpush2.msra.mxu0 0.0
    %3931 = vmatprep.subr.mxu0 0.0
    %3932 = vmatpush2.msra.mxu0 0.0
    %3933 = vmatprep.subr.mxu0 0.0
    %3934 = vmatpush2.msra.mxu0 0.0
    %3935 = vmatprep.subr.mxu0 0.0
    %3936 = vmatpush2.msra.mxu0 0.0
    %3937 = vmatprep.subr.mxu0 0.0
    %3938 = vmatpush2.msra.mxu0 0.0
    %3939 = vmatprep.mubr.f32.mxu0 0.0
    %v3940 = vand.u32 %v3578, 4294901760
    %v3941 = vsub.f32 %v3578, %v3940
    %3942 = vmatmul.mubr.f32.gmra.mxu0 %v3941
    %v3943 = vpop.f32.mrf.mxu0
    %v3944 = vadd.f32 %v3840, %v3943
    %v3945 = vpop.f32.mrf.mxu0
    %3946 = vdwg.mxu0
    %3947 = vmatprep.subr.mxu0 0.0
    %v3948 = vand.u32 %v3595, 4294901760
    %3949 = vmatpush1.msra.mxu0 %v3948
    %3950 = vmatprep.subr.mxu0 0.0
    %v3951 = vand.u32 %v3594, 4294901760
    %3952 = vmatpush1.msra.mxu0 %v3951
    %3953 = vmatprep.subr.mxu0 0.0
    %v3954 = vand.u32 %v3593, 4294901760
    %3955 = vmatpush1.msra.mxu0 %v3954
    %3956 = vmatprep.subr.mxu0 0.0
    %v3957 = vand.u32 %v3592, 4294901760
    %3958 = vmatpush1.msra.mxu0 %v3957
    %3959 = vmatprep.subr.mxu0 0.0
    %v3960 = vand.u32 %v3591, 4294901760
    %3961 = vmatpush1.msra.mxu0 %v3960
    %3962 = vmatprep.subr.mxu0 0.0
    %v3963 = vand.u32 %v3590, 4294901760
    %3964 = vmatpush1.msra.mxu0 %v3963
    %3965 = vmatprep.subr.mxu0 0.0
    %v3966 = vand.u32 %v3589, 4294901760
    %3967 = vmatpush1.msra.mxu0 %v3966
    %3968 = vmatprep.subr.mxu0 0.0
    %v3969 = vand.u32 %v3588, 4294901760
    %3970 = vmatpush1.msra.mxu0 %v3969
    %3971 = vmatprep.subr.mxu0 0.0
    %v3972 = vand.u32 %v3587, 4294901760
    %3973 = vmatpush1.msra.mxu0 %v3972
    %3974 = vmatprep.subr.mxu0 0.0
    %v3975 = vand.u32 %v3586, 4294901760
    %3976 = vmatpush1.msra.mxu0 %v3975
    %3977 = vmatprep.subr.mxu0 0.0
    %v3978 = vand.u32 %v3585, 4294901760
    %3979 = vmatpush1.msra.mxu0 %v3978
    %3980 = vmatprep.subr.mxu0 0.0
    %v3981 = vand.u32 %v3584, 4294901760
    %3982 = vmatpush1.msra.mxu0 %v3981
    %3983 = vmatprep.subr.mxu0 0.0
    %v3984 = vand.u32 %v3583, 4294901760
    %3985 = vmatpush1.msra.mxu0 %v3984
    %3986 = vmatprep.subr.mxu0 0.0
    %v3987 = vand.u32 %v3582, 4294901760
    %3988 = vmatpush1.msra.mxu0 %v3987
    %3989 = vmatprep.subr.mxu0 0.0
    %v3990 = vand.u32 %v3581, 4294901760
    %3991 = vmatpush1.msra.mxu0 %v3990
    %3992 = vmatprep.subr.mxu0 0.0
    %v3993 = vand.u32 %v3580, 4294901760
    %3994 = vmatpush1.msra.mxu0 %v3993
    %3995 = vmatprep.subr.mxu0 0.0
    %3996 = vmatpush2.msra.mxu0 0.0
    %3997 = vmatprep.subr.mxu0 0.0
    %3998 = vmatpush2.msra.mxu0 0.0
    %3999 = vmatprep.subr.mxu0 0.0
    %4000 = vmatpush2.msra.mxu0 0.0
    %4001 = vmatprep.subr.mxu0 0.0
    %4002 = vmatpush2.msra.mxu0 0.0
    %4003 = vmatprep.subr.mxu0 0.0
    %4004 = vmatpush2.msra.mxu0 0.0
    %4005 = vmatprep.subr.mxu0 0.0
    %4006 = vmatpush2.msra.mxu0 0.0
    %4007 = vmatprep.subr.mxu0 0.0
    %4008 = vmatpush2.msra.mxu0 0.0
    %4009 = vmatprep.subr.mxu0 0.0
    %4010 = vmatpush2.msra.mxu0 0.0
    %4011 = vmatprep.subr.mxu0 0.0
    %4012 = vmatpush2.msra.mxu0 0.0
    %4013 = vmatprep.subr.mxu0 0.0
    %4014 = vmatpush2.msra.mxu0 0.0
    %4015 = vmatprep.subr.mxu0 0.0
    %4016 = vmatpush2.msra.mxu0 0.0
    %4017 = vmatprep.subr.mxu0 0.0
    %4018 = vmatpush2.msra.mxu0 0.0
    %4019 = vmatprep.subr.mxu0 0.0
    %4020 = vmatpush2.msra.mxu0 0.0
    %4021 = vmatprep.subr.mxu0 0.0
    %4022 = vmatpush2.msra.mxu0 0.0
    %4023 = vmatprep.subr.mxu0 0.0
    %4024 = vmatpush2.msra.mxu0 0.0
    %4025 = vmatprep.subr.mxu0 0.0
    %4026 = vmatpush2.msra.mxu0 0.0
    %4027 = vmatprep.mubr.f32.mxu0 0.0
    %v4028 = vand.u32 %v3578, 4294901760
    %v4029 = vsub.f32 %v3578, %v4028
    %v4030 = vand.u32 %v4029, 4294901760
    %4031 = vmatmul.mubr.f32.gmra.mxu0 %v4030
    %v4032 = vpop.f32.mrf.mxu0
    %v4033 = vadd.f32 %v3944, %v4032
    %v4034 = vpop.f32.mrf.mxu0
    %4035 = vdwg.mxu0
    %4036 = vmatprep.subr.mxu0 0.0
    %v4037 = vand.u32 %v3595, 4294901760
    %v4038 = vsub.f32 %v3595, %v4037
    %v4039 = vand.u32 %v4038, 4294901760
    %4040 = vmatpush1.msra.mxu0 %v4039
    %4041 = vmatprep.subr.mxu0 0.0
    %v4042 = vand.u32 %v3594, 4294901760
    %v4043 = vsub.f32 %v3594, %v4042
    %v4044 = vand.u32 %v4043, 4294901760
    %4045 = vmatpush1.msra.mxu0 %v4044
    %4046 = vmatprep.subr.mxu0 0.0
    %v4047 = vand.u32 %v3593, 4294901760
    %v4048 = vsub.f32 %v3593, %v4047
    %v4049 = vand.u32 %v4048, 4294901760
    %4050 = vmatpush1.msra.mxu0 %v4049
    %4051 = vmatprep.subr.mxu0 0.0
    %v4052 = vand.u32 %v3592, 4294901760
    %v4053 = vsub.f32 %v3592, %v4052
    %v4054 = vand.u32 %v4053, 4294901760
    %4055 = vmatpush1.msra.mxu0 %v4054
    %4056 = vmatprep.subr.mxu0 0.0
    %v4057 = vand.u32 %v3591, 4294901760
    %v4058 = vsub.f32 %v3591, %v4057
    %v4059 = vand.u32 %v4058, 4294901760
    %4060 = vmatpush1.msra.mxu0 %v4059
    %4061 = vmatprep.subr.mxu0 0.0
    %v4062 = vand.u32 %v3590, 4294901760
    %v4063 = vsub.f32 %v3590, %v4062
    %v4064 = vand.u32 %v4063, 4294901760
    %4065 = vmatpush1.msra.mxu0 %v4064
    %4066 = vmatprep.subr.mxu0 0.0
    %v4067 = vand.u32 %v3589, 4294901760
    %v4068 = vsub.f32 %v3589, %v4067
    %v4069 = vand.u32 %v4068, 4294901760
    %4070 = vmatpush1.msra.mxu0 %v4069
    %4071 = vmatprep.subr.mxu0 0.0
    %v4072 = vand.u32 %v3588, 4294901760
    %v4073 = vsub.f32 %v3588, %v4072
    %v4074 = vand.u32 %v4073, 4294901760
    %4075 = vmatpush1.msra.mxu0 %v4074
    %4076 = vmatprep.subr.mxu0 0.0
    %v4077 = vand.u32 %v3587, 4294901760
    %v4078 = vsub.f32 %v3587, %v4077
    %v4079 = vand.u32 %v4078, 4294901760
    %4080 = vmatpush1.msra.mxu0 %v4079
    %4081 = vmatprep.subr.mxu0 0.0
    %v4082 = vand.u32 %v3586, 4294901760
    %v4083 = vsub.f32 %v3586, %v4082
    %v4084 = vand.u32 %v4083, 4294901760
    %4085 = vmatpush1.msra.mxu0 %v4084
    %4086 = vmatprep.subr.mxu0 0.0
    %v4087 = vand.u32 %v3585, 4294901760
    %v4088 = vsub.f32 %v3585, %v4087
    %v4089 = vand.u32 %v4088, 4294901760
    %4090 = vmatpush1.msra.mxu0 %v4089
    %4091 = vmatprep.subr.mxu0 0.0
    %v4092 = vand.u32 %v3584, 4294901760
    %v4093 = vsub.f32 %v3584, %v4092
    %v4094 = vand.u32 %v4093, 4294901760
    %4095 = vmatpush1.msra.mxu0 %v4094
    %4096 = vmatprep.subr.mxu0 0.0
    %v4097 = vand.u32 %v3583, 4294901760
    %v4098 = vsub.f32 %v3583, %v4097
    %v4099 = vand.u32 %v4098, 4294901760
    %4100 = vmatpush1.msra.mxu0 %v4099
    %4101 = vmatprep.subr.mxu0 0.0
    %v4102 = vand.u32 %v3582, 4294901760
    %v4103 = vsub.f32 %v3582, %v4102
    %v4104 = vand.u32 %v4103, 4294901760
    %4105 = vmatpush1.msra.mxu0 %v4104
    %4106 = vmatprep.subr.mxu0 0.0
    %v4107 = vand.u32 %v3581, 4294901760
    %v4108 = vsub.f32 %v3581, %v4107
    %v4109 = vand.u32 %v4108, 4294901760
    %4110 = vmatpush1.msra.mxu0 %v4109
    %4111 = vmatprep.subr.mxu0 0.0
    %v4112 = vand.u32 %v3580, 4294901760
    %v4113 = vsub.f32 %v3580, %v4112
    %v4114 = vand.u32 %v4113, 4294901760
    %4115 = vmatpush1.msra.mxu0 %v4114
    %4116 = vmatprep.subr.mxu0 0.0
    %4117 = vmatpush2.msra.mxu0 0.0
    %4118 = vmatprep.subr.mxu0 0.0
    %4119 = vmatpush2.msra.mxu0 0.0
    %4120 = vmatprep.subr.mxu0 0.0
    %4121 = vmatpush2.msra.mxu0 0.0
    %4122 = vmatprep.subr.mxu0 0.0
    %4123 = vmatpush2.msra.mxu0 0.0
    %4124 = vmatprep.subr.mxu0 0.0
    %4125 = vmatpush2.msra.mxu0 0.0
    %4126 = vmatprep.subr.mxu0 0.0
    %4127 = vmatpush2.msra.mxu0 0.0
    %4128 = vmatprep.subr.mxu0 0.0
    %4129 = vmatpush2.msra.mxu0 0.0
    %4130 = vmatprep.subr.mxu0 0.0
    %4131 = vmatpush2.msra.mxu0 0.0
    %4132 = vmatprep.subr.mxu0 0.0
    %4133 = vmatpush2.msra.mxu0 0.0
    %4134 = vmatprep.subr.mxu0 0.0
    %4135 = vmatpush2.msra.mxu0 0.0
    %4136 = vmatprep.subr.mxu0 0.0
    %4137 = vmatpush2.msra.mxu0 0.0
    %4138 = vmatprep.subr.mxu0 0.0
    %4139 = vmatpush2.msra.mxu0 0.0
    %4140 = vmatprep.subr.mxu0 0.0
    %4141 = vmatpush2.msra.mxu0 0.0
    %4142 = vmatprep.subr.mxu0 0.0
    %4143 = vmatpush2.msra.mxu0 0.0
    %4144 = vmatprep.subr.mxu0 0.0
    %4145 = vmatpush2.msra.mxu0 0.0
    %4146 = vmatprep.subr.mxu0 0.0
    %4147 = vmatpush2.msra.mxu0 0.0
    %4148 = vmatprep.mubr.f32.mxu0 0.0
    %v4149 = vand.u32 %v3578, 4294901760
    %4150 = vmatmul.mubr.f32.gmra.mxu0 %v4149
    %v4151 = vpop.f32.mrf.mxu0
    %v4152 = vadd.f32 %v4033, %v4151
    %v4153 = vpop.f32.mrf.mxu0
    %4154 = vdwg.mxu0
    %4155 = vmatprep.subr.mxu0 0.0
    %v4156 = vand.u32 %v3595, 4294901760
    %4157 = vmatpush1.msra.mxu0 %v4156
    %4158 = vmatprep.subr.mxu0 0.0
    %v4159 = vand.u32 %v3594, 4294901760
    %4160 = vmatpush1.msra.mxu0 %v4159
    %4161 = vmatprep.subr.mxu0 0.0
    %v4162 = vand.u32 %v3593, 4294901760
    %4163 = vmatpush1.msra.mxu0 %v4162
    %4164 = vmatprep.subr.mxu0 0.0
    %v4165 = vand.u32 %v3592, 4294901760
    %4166 = vmatpush1.msra.mxu0 %v4165
    %4167 = vmatprep.subr.mxu0 0.0
    %v4168 = vand.u32 %v3591, 4294901760
    %4169 = vmatpush1.msra.mxu0 %v4168
    %4170 = vmatprep.subr.mxu0 0.0
    %v4171 = vand.u32 %v3590, 4294901760
    %4172 = vmatpush1.msra.mxu0 %v4171
    %4173 = vmatprep.subr.mxu0 0.0
    %v4174 = vand.u32 %v3589, 4294901760
    %4175 = vmatpush1.msra.mxu0 %v4174
    %4176 = vmatprep.subr.mxu0 0.0
    %v4177 = vand.u32 %v3588, 4294901760
    %4178 = vmatpush1.msra.mxu0 %v4177
    %4179 = vmatprep.subr.mxu0 0.0
    %v4180 = vand.u32 %v3587, 4294901760
    %4181 = vmatpush1.msra.mxu0 %v4180
    %4182 = vmatprep.subr.mxu0 0.0
    %v4183 = vand.u32 %v3586, 4294901760
    %4184 = vmatpush1.msra.mxu0 %v4183
    %4185 = vmatprep.subr.mxu0 0.0
    %v4186 = vand.u32 %v3585, 4294901760
    %4187 = vmatpush1.msra.mxu0 %v4186
    %4188 = vmatprep.subr.mxu0 0.0
    %v4189 = vand.u32 %v3584, 4294901760
    %4190 = vmatpush1.msra.mxu0 %v4189
    %4191 = vmatprep.subr.mxu0 0.0
    %v4192 = vand.u32 %v3583, 4294901760
    %4193 = vmatpush1.msra.mxu0 %v4192
    %4194 = vmatprep.subr.mxu0 0.0
    %v4195 = vand.u32 %v3582, 4294901760
    %4196 = vmatpush1.msra.mxu0 %v4195
    %4197 = vmatprep.subr.mxu0 0.0
    %v4198 = vand.u32 %v3581, 4294901760
    %4199 = vmatpush1.msra.mxu0 %v4198
    %4200 = vmatprep.subr.mxu0 0.0
    %v4201 = vand.u32 %v3580, 4294901760
    %4202 = vmatpush1.msra.mxu0 %v4201
    %4203 = vmatprep.subr.mxu0 0.0
    %4204 = vmatpush2.msra.mxu0 0.0
    %4205 = vmatprep.subr.mxu0 0.0
    %4206 = vmatpush2.msra.mxu0 0.0
    %4207 = vmatprep.subr.mxu0 0.0
    %4208 = vmatpush2.msra.mxu0 0.0
    %4209 = vmatprep.subr.mxu0 0.0
    %4210 = vmatpush2.msra.mxu0 0.0
    %4211 = vmatprep.subr.mxu0 0.0
    %4212 = vmatpush2.msra.mxu0 0.0
    %4213 = vmatprep.subr.mxu0 0.0
    %4214 = vmatpush2.msra.mxu0 0.0
    %4215 = vmatprep.subr.mxu0 0.0
    %4216 = vmatpush2.msra.mxu0 0.0
    %4217 = vmatprep.subr.mxu0 0.0
    %4218 = vmatpush2.msra.mxu0 0.0
    %4219 = vmatprep.subr.mxu0 0.0
    %4220 = vmatpush2.msra.mxu0 0.0
    %4221 = vmatprep.subr.mxu0 0.0
    %4222 = vmatpush2.msra.mxu0 0.0
    %4223 = vmatprep.subr.mxu0 0.0
    %4224 = vmatpush2.msra.mxu0 0.0
    %4225 = vmatprep.subr.mxu0 0.0
    %4226 = vmatpush2.msra.mxu0 0.0
    %4227 = vmatprep.subr.mxu0 0.0
    %4228 = vmatpush2.msra.mxu0 0.0
    %4229 = vmatprep.subr.mxu0 0.0
    %4230 = vmatpush2.msra.mxu0 0.0
    %4231 = vmatprep.subr.mxu0 0.0
    %4232 = vmatpush2.msra.mxu0 0.0
    %4233 = vmatprep.subr.mxu0 0.0
    %4234 = vmatpush2.msra.mxu0 0.0
    %4235 = vmatprep.mubr.f32.mxu0 0.0
    %v4236 = vand.u32 %v3578, 4294901760
    %4237 = vmatmul.mubr.f32.gmra.mxu0 %v4236
    %v4238 = vpop.f32.mrf.mxu0
    %v4239 = vadd.f32 %v4152, %v4238
    %v4240 = vpop.f32.mrf.mxu0
    %4241 = vdwg.mxu0
    %v4242 = vmax.f32 %v4239, 0.0
    %s4243 = scalar_lea.vmem [#allocation5], 768
    %v4244 = vld [vmem:[%s4243] sm:$0xff]
    %v4245 = vld [vmem:[%s4243 + $0x8] sm:$0xff]
    %v4246 = vld [vmem:[%s4243 + $0x10] sm:$0xff]
    %v4247 = vld [vmem:[%s4243 + $0x18] sm:$0xff]
    %v4248 = vld [vmem:[%s4243 + $0x20] sm:$0xff]
    %v4249 = vld [vmem:[%s4243 + $0x28] sm:$0xff]
    %v4250 = vld [vmem:[%s4243 + $0x30] sm:$0xff]
    %v4251 = vld [vmem:[%s4243 + $0x38] sm:$0xff]
    %v4252 = vld [vmem:[%s4243 + $0x40] sm:$0xff]
    %v4253 = vld [vmem:[%s4243 + $0x48] sm:$0xff]
    %v4254 = vld [vmem:[%s4243 + $0x50] sm:$0xff]
    %v4255 = vld [vmem:[%s4243 + $0x58] sm:$0xff]
    %v4256 = vld [vmem:[%s4243 + $0x60] sm:$0xff]
    %v4257 = vld [vmem:[%s4243 + $0x68] sm:$0xff]
    %v4258 = vld [vmem:[%s4243 + $0x70] sm:$0xff]
    %v4259 = vld [vmem:[%s4243 + $0x78] sm:$0xff]
    %v4260 = vld [vmem:[#allocation7 + $0x4] sm:$0x1]
    %v4261 = vlaneseq
    %v4262 = vshrl.u32 %v4261, 7
    %v4263 = vsub.s32 0, %v4262
    %v4264 = vrot.slane %v4260, %v4263
    %4265 = vmatprep.subr.mxu0 0.0
    %v4266 = vand.u32 %v4259, 4294901760
    %4267 = vmatpush1.msra.mxu0 %v4266
    %4268 = vmatprep.subr.mxu0 0.0
    %v4269 = vand.u32 %v4258, 4294901760
    %4270 = vmatpush1.msra.mxu0 %v4269
    %4271 = vmatprep.subr.mxu0 0.0
    %v4272 = vand.u32 %v4257, 4294901760
    %4273 = vmatpush1.msra.mxu0 %v4272
    %4274 = vmatprep.subr.mxu0 0.0
    %v4275 = vand.u32 %v4256, 4294901760
    %4276 = vmatpush1.msra.mxu0 %v4275
    %4277 = vmatprep.subr.mxu0 0.0
    %v4278 = vand.u32 %v4255, 4294901760
    %4279 = vmatpush1.msra.mxu0 %v4278
    %4280 = vmatprep.subr.mxu0 0.0
    %v4281 = vand.u32 %v4254, 4294901760
    %4282 = vmatpush1.msra.mxu0 %v4281
    %4283 = vmatprep.subr.mxu0 0.0
    %v4284 = vand.u32 %v4253, 4294901760
    %4285 = vmatpush1.msra.mxu0 %v4284
    %4286 = vmatprep.subr.mxu0 0.0
    %v4287 = vand.u32 %v4252, 4294901760
    %4288 = vmatpush1.msra.mxu0 %v4287
    %4289 = vmatprep.subr.mxu0 0.0
    %v4290 = vand.u32 %v4251, 4294901760
    %4291 = vmatpush1.msra.mxu0 %v4290
    %4292 = vmatprep.subr.mxu0 0.0
    %v4293 = vand.u32 %v4250, 4294901760
    %4294 = vmatpush1.msra.mxu0 %v4293
    %4295 = vmatprep.subr.mxu0 0.0
    %v4296 = vand.u32 %v4249, 4294901760
    %4297 = vmatpush1.msra.mxu0 %v4296
    %4298 = vmatprep.subr.mxu0 0.0
    %v4299 = vand.u32 %v4248, 4294901760
    %4300 = vmatpush1.msra.mxu0 %v4299
    %4301 = vmatprep.subr.mxu0 0.0
    %v4302 = vand.u32 %v4247, 4294901760
    %4303 = vmatpush1.msra.mxu0 %v4302
    %4304 = vmatprep.subr.mxu0 0.0
    %v4305 = vand.u32 %v4246, 4294901760
    %4306 = vmatpush1.msra.mxu0 %v4305
    %4307 = vmatprep.subr.mxu0 0.0
    %v4308 = vand.u32 %v4245, 4294901760
    %4309 = vmatpush1.msra.mxu0 %v4308
    %4310 = vmatprep.subr.mxu0 0.0
    %v4311 = vand.u32 %v4244, 4294901760
    %4312 = vmatpush1.msra.mxu0 %v4311
    %4313 = vmatprep.subr.mxu0 0.0
    %4314 = vmatpush2.msra.mxu0 0.0
    %4315 = vmatprep.subr.mxu0 0.0
    %4316 = vmatpush2.msra.mxu0 0.0
    %4317 = vmatprep.subr.mxu0 0.0
    %4318 = vmatpush2.msra.mxu0 0.0
    %4319 = vmatprep.subr.mxu0 0.0
    %4320 = vmatpush2.msra.mxu0 0.0
    %4321 = vmatprep.subr.mxu0 0.0
    %4322 = vmatpush2.msra.mxu0 0.0
    %4323 = vmatprep.subr.mxu0 0.0
    %4324 = vmatpush2.msra.mxu0 0.0
    %4325 = vmatprep.subr.mxu0 0.0
    %4326 = vmatpush2.msra.mxu0 0.0
    %4327 = vmatprep.subr.mxu0 0.0
    %4328 = vmatpush2.msra.mxu0 0.0
    %4329 = vmatprep.subr.mxu0 0.0
    %4330 = vmatpush2.msra.mxu0 0.0
    %4331 = vmatprep.subr.mxu0 0.0
    %4332 = vmatpush2.msra.mxu0 0.0
    %4333 = vmatprep.subr.mxu0 0.0
    %4334 = vmatpush2.msra.mxu0 0.0
    %4335 = vmatprep.subr.mxu0 0.0
    %4336 = vmatpush2.msra.mxu0 0.0
    %4337 = vmatprep.subr.mxu0 0.0
    %4338 = vmatpush2.msra.mxu0 0.0
    %4339 = vmatprep.subr.mxu0 0.0
    %4340 = vmatpush2.msra.mxu0 0.0
    %4341 = vmatprep.subr.mxu0 0.0
    %4342 = vmatpush2.msra.mxu0 0.0
    %4343 = vmatprep.subr.mxu0 0.0
    %4344 = vmatpush2.msra.mxu0 0.0
    %4345 = vmatprep.mubr.f32.mxu0 0.0
    %v4346 = vand.u32 %v4242, 4294901760
    %v4347 = vsub.f32 %v4242, %v4346
    %v4348 = vand.u32 %v4347, 4294901760
    %v4349 = vsub.f32 %v4347, %v4348
    %v4350 = vand.u32 %v4349, 4294901760
    %4351 = vmatmul.mubr.f32.gmra.mxu0 %v4350
    %v4352 = vpop.f32.mrf.mxu0
    %v4353 = vadd.f32 %v4264, %v4352
    %v4354 = vpop.f32.mrf.mxu0
    %4355 = vdwg.mxu0
    %4356 = vmatprep.subr.mxu0 0.0
    %v4357 = vand.u32 %v4259, 4294901760
    %v4358 = vsub.f32 %v4259, %v4357
    %v4359 = vand.u32 %v4358, 4294901760
    %v4360 = vsub.f32 %v4358, %v4359
    %v4361 = vand.u32 %v4360, 4294901760
    %4362 = vmatpush1.msra.mxu0 %v4361
    %4363 = vmatprep.subr.mxu0 0.0
    %v4364 = vand.u32 %v4258, 4294901760
    %v4365 = vsub.f32 %v4258, %v4364
    %v4366 = vand.u32 %v4365, 4294901760
    %v4367 = vsub.f32 %v4365, %v4366
    %v4368 = vand.u32 %v4367, 4294901760
    %4369 = vmatpush1.msra.mxu0 %v4368
    %4370 = vmatprep.subr.mxu0 0.0
    %v4371 = vand.u32 %v4257, 4294901760
    %v4372 = vsub.f32 %v4257, %v4371
    %v4373 = vand.u32 %v4372, 4294901760
    %v4374 = vsub.f32 %v4372, %v4373
    %v4375 = vand.u32 %v4374, 4294901760
    %4376 = vmatpush1.msra.mxu0 %v4375
    %4377 = vmatprep.subr.mxu0 0.0
    %v4378 = vand.u32 %v4256, 4294901760
    %v4379 = vsub.f32 %v4256, %v4378
    %v4380 = vand.u32 %v4379, 4294901760
    %v4381 = vsub.f32 %v4379, %v4380
    %v4382 = vand.u32 %v4381, 4294901760
    %4383 = vmatpush1.msra.mxu0 %v4382
    %4384 = vmatprep.subr.mxu0 0.0
    %v4385 = vand.u32 %v4255, 4294901760
    %v4386 = vsub.f32 %v4255, %v4385
    %v4387 = vand.u32 %v4386, 4294901760
    %v4388 = vsub.f32 %v4386, %v4387
    %v4389 = vand.u32 %v4388, 4294901760
    %4390 = vmatpush1.msra.mxu0 %v4389
    %4391 = vmatprep.subr.mxu0 0.0
    %v4392 = vand.u32 %v4254, 4294901760
    %v4393 = vsub.f32 %v4254, %v4392
    %v4394 = vand.u32 %v4393, 4294901760
    %v4395 = vsub.f32 %v4393, %v4394
    %v4396 = vand.u32 %v4395, 4294901760
    %4397 = vmatpush1.msra.mxu0 %v4396
    %4398 = vmatprep.subr.mxu0 0.0
    %v4399 = vand.u32 %v4253, 4294901760
    %v4400 = vsub.f32 %v4253, %v4399
    %v4401 = vand.u32 %v4400, 4294901760
    %v4402 = vsub.f32 %v4400, %v4401
    %v4403 = vand.u32 %v4402, 4294901760
    %4404 = vmatpush1.msra.mxu0 %v4403
    %4405 = vmatprep.subr.mxu0 0.0
    %v4406 = vand.u32 %v4252, 4294901760
    %v4407 = vsub.f32 %v4252, %v4406
    %v4408 = vand.u32 %v4407, 4294901760
    %v4409 = vsub.f32 %v4407, %v4408
    %v4410 = vand.u32 %v4409, 4294901760
    %4411 = vmatpush1.msra.mxu0 %v4410
    %4412 = vmatprep.subr.mxu0 0.0
    %v4413 = vand.u32 %v4251, 4294901760
    %v4414 = vsub.f32 %v4251, %v4413
    %v4415 = vand.u32 %v4414, 4294901760
    %v4416 = vsub.f32 %v4414, %v4415
    %v4417 = vand.u32 %v4416, 4294901760
    %4418 = vmatpush1.msra.mxu0 %v4417
    %4419 = vmatprep.subr.mxu0 0.0
    %v4420 = vand.u32 %v4250, 4294901760
    %v4421 = vsub.f32 %v4250, %v4420
    %v4422 = vand.u32 %v4421, 4294901760
    %v4423 = vsub.f32 %v4421, %v4422
    %v4424 = vand.u32 %v4423, 4294901760
    %4425 = vmatpush1.msra.mxu0 %v4424
    %4426 = vmatprep.subr.mxu0 0.0
    %v4427 = vand.u32 %v4249, 4294901760
    %v4428 = vsub.f32 %v4249, %v4427
    %v4429 = vand.u32 %v4428, 4294901760
    %v4430 = vsub.f32 %v4428, %v4429
    %v4431 = vand.u32 %v4430, 4294901760
    %4432 = vmatpush1.msra.mxu0 %v4431
    %4433 = vmatprep.subr.mxu0 0.0
    %v4434 = vand.u32 %v4248, 4294901760
    %v4435 = vsub.f32 %v4248, %v4434
    %v4436 = vand.u32 %v4435, 4294901760
    %v4437 = vsub.f32 %v4435, %v4436
    %v4438 = vand.u32 %v4437, 4294901760
    %4439 = vmatpush1.msra.mxu0 %v4438
    %4440 = vmatprep.subr.mxu0 0.0
    %v4441 = vand.u32 %v4247, 4294901760
    %v4442 = vsub.f32 %v4247, %v4441
    %v4443 = vand.u32 %v4442, 4294901760
    %v4444 = vsub.f32 %v4442, %v4443
    %v4445 = vand.u32 %v4444, 4294901760
    %4446 = vmatpush1.msra.mxu0 %v4445
    %4447 = vmatprep.subr.mxu0 0.0
    %v4448 = vand.u32 %v4246, 4294901760
    %v4449 = vsub.f32 %v4246, %v4448
    %v4450 = vand.u32 %v4449, 4294901760
    %v4451 = vsub.f32 %v4449, %v4450
    %v4452 = vand.u32 %v4451, 4294901760
    %4453 = vmatpush1.msra.mxu0 %v4452
    %4454 = vmatprep.subr.mxu0 0.0
    %v4455 = vand.u32 %v4245, 4294901760
    %v4456 = vsub.f32 %v4245, %v4455
    %v4457 = vand.u32 %v4456, 4294901760
    %v4458 = vsub.f32 %v4456, %v4457
    %v4459 = vand.u32 %v4458, 4294901760
    %4460 = vmatpush1.msra.mxu0 %v4459
    %4461 = vmatprep.subr.mxu0 0.0
    %v4462 = vand.u32 %v4244, 4294901760
    %v4463 = vsub.f32 %v4244, %v4462
    %v4464 = vand.u32 %v4463, 4294901760
    %v4465 = vsub.f32 %v4463, %v4464
    %v4466 = vand.u32 %v4465, 4294901760
    %4467 = vmatpush1.msra.mxu0 %v4466
    %4468 = vmatprep.subr.mxu0 0.0
    %4469 = vmatpush2.msra.mxu0 0.0
    %4470 = vmatprep.subr.mxu0 0.0
    %4471 = vmatpush2.msra.mxu0 0.0
    %4472 = vmatprep.subr.mxu0 0.0
    %4473 = vmatpush2.msra.mxu0 0.0
    %4474 = vmatprep.subr.mxu0 0.0
    %4475 = vmatpush2.msra.mxu0 0.0
    %4476 = vmatprep.subr.mxu0 0.0
    %4477 = vmatpush2.msra.mxu0 0.0
    %4478 = vmatprep.subr.mxu0 0.0
    %4479 = vmatpush2.msra.mxu0 0.0
    %4480 = vmatprep.subr.mxu0 0.0
    %4481 = vmatpush2.msra.mxu0 0.0
    %4482 = vmatprep.subr.mxu0 0.0
    %4483 = vmatpush2.msra.mxu0 0.0
    %4484 = vmatprep.subr.mxu0 0.0
    %4485 = vmatpush2.msra.mxu0 0.0
    %4486 = vmatprep.subr.mxu0 0.0
    %4487 = vmatpush2.msra.mxu0 0.0
    %4488 = vmatprep.subr.mxu0 0.0
    %4489 = vmatpush2.msra.mxu0 0.0
    %4490 = vmatprep.subr.mxu0 0.0
    %4491 = vmatpush2.msra.mxu0 0.0
    %4492 = vmatprep.subr.mxu0 0.0
    %4493 = vmatpush2.msra.mxu0 0.0
    %4494 = vmatprep.subr.mxu0 0.0
    %4495 = vmatpush2.msra.mxu0 0.0
    %4496 = vmatprep.subr.mxu0 0.0
    %4497 = vmatpush2.msra.mxu0 0.0
    %4498 = vmatprep.subr.mxu0 0.0
    %4499 = vmatpush2.msra.mxu0 0.0
    %4500 = vmatprep.mubr.f32.mxu0 0.0
    %v4501 = vand.u32 %v4242, 4294901760
    %4502 = vmatmul.mubr.f32.gmra.mxu0 %v4501
    %v4503 = vpop.f32.mrf.mxu0
    %v4504 = vadd.f32 %v4353, %v4503
    %v4505 = vpop.f32.mrf.mxu0
    %4506 = vdwg.mxu0
    %4507 = vmatprep.subr.mxu0 0.0
    %v4508 = vand.u32 %v4259, 4294901760
    %v4509 = vsub.f32 %v4259, %v4508
    %4510 = vmatpush1.msra.mxu0 %v4509
    %4511 = vmatprep.subr.mxu0 0.0
    %v4512 = vand.u32 %v4258, 4294901760
    %v4513 = vsub.f32 %v4258, %v4512
    %4514 = vmatpush1.msra.mxu0 %v4513
    %4515 = vmatprep.subr.mxu0 0.0
    %v4516 = vand.u32 %v4257, 4294901760
    %v4517 = vsub.f32 %v4257, %v4516
    %4518 = vmatpush1.msra.mxu0 %v4517
    %4519 = vmatprep.subr.mxu0 0.0
    %v4520 = vand.u32 %v4256, 4294901760
    %v4521 = vsub.f32 %v4256, %v4520
    %4522 = vmatpush1.msra.mxu0 %v4521
    %4523 = vmatprep.subr.mxu0 0.0
    %v4524 = vand.u32 %v4255, 4294901760
    %v4525 = vsub.f32 %v4255, %v4524
    %4526 = vmatpush1.msra.mxu0 %v4525
    %4527 = vmatprep.subr.mxu0 0.0
    %v4528 = vand.u32 %v4254, 4294901760
    %v4529 = vsub.f32 %v4254, %v4528
    %4530 = vmatpush1.msra.mxu0 %v4529
    %4531 = vmatprep.subr.mxu0 0.0
    %v4532 = vand.u32 %v4253, 4294901760
    %v4533 = vsub.f32 %v4253, %v4532
    %4534 = vmatpush1.msra.mxu0 %v4533
    %4535 = vmatprep.subr.mxu0 0.0
    %v4536 = vand.u32 %v4252, 4294901760
    %v4537 = vsub.f32 %v4252, %v4536
    %4538 = vmatpush1.msra.mxu0 %v4537
    %4539 = vmatprep.subr.mxu0 0.0
    %v4540 = vand.u32 %v4251, 4294901760
    %v4541 = vsub.f32 %v4251, %v4540
    %4542 = vmatpush1.msra.mxu0 %v4541
    %4543 = vmatprep.subr.mxu0 0.0
    %v4544 = vand.u32 %v4250, 4294901760
    %v4545 = vsub.f32 %v4250, %v4544
    %4546 = vmatpush1.msra.mxu0 %v4545
    %4547 = vmatprep.subr.mxu0 0.0
    %v4548 = vand.u32 %v4249, 4294901760
    %v4549 = vsub.f32 %v4249, %v4548
    %4550 = vmatpush1.msra.mxu0 %v4549
    %4551 = vmatprep.subr.mxu0 0.0
    %v4552 = vand.u32 %v4248, 4294901760
    %v4553 = vsub.f32 %v4248, %v4552
    %4554 = vmatpush1.msra.mxu0 %v4553
    %4555 = vmatprep.subr.mxu0 0.0
    %v4556 = vand.u32 %v4247, 4294901760
    %v4557 = vsub.f32 %v4247, %v4556
    %4558 = vmatpush1.msra.mxu0 %v4557
    %4559 = vmatprep.subr.mxu0 0.0
    %v4560 = vand.u32 %v4246, 4294901760
    %v4561 = vsub.f32 %v4246, %v4560
    %4562 = vmatpush1.msra.mxu0 %v4561
    %4563 = vmatprep.subr.mxu0 0.0
    %v4564 = vand.u32 %v4245, 4294901760
    %v4565 = vsub.f32 %v4245, %v4564
    %4566 = vmatpush1.msra.mxu0 %v4565
    %4567 = vmatprep.subr.mxu0 0.0
    %v4568 = vand.u32 %v4244, 4294901760
    %v4569 = vsub.f32 %v4244, %v4568
    %4570 = vmatpush1.msra.mxu0 %v4569
    %4571 = vmatprep.subr.mxu0 0.0
    %4572 = vmatpush2.msra.mxu0 0.0
    %4573 = vmatprep.subr.mxu0 0.0
    %4574 = vmatpush2.msra.mxu0 0.0
    %4575 = vmatprep.subr.mxu0 0.0
    %4576 = vmatpush2.msra.mxu0 0.0
    %4577 = vmatprep.subr.mxu0 0.0
    %4578 = vmatpush2.msra.mxu0 0.0
    %4579 = vmatprep.subr.mxu0 0.0
    %4580 = vmatpush2.msra.mxu0 0.0
    %4581 = vmatprep.subr.mxu0 0.0
    %4582 = vmatpush2.msra.mxu0 0.0
    %4583 = vmatprep.subr.mxu0 0.0
    %4584 = vmatpush2.msra.mxu0 0.0
    %4585 = vmatprep.subr.mxu0 0.0
    %4586 = vmatpush2.msra.mxu0 0.0
    %4587 = vmatprep.subr.mxu0 0.0
    %4588 = vmatpush2.msra.mxu0 0.0
    %4589 = vmatprep.subr.mxu0 0.0
    %4590 = vmatpush2.msra.mxu0 0.0
    %4591 = vmatprep.subr.mxu0 0.0
    %4592 = vmatpush2.msra.mxu0 0.0
    %4593 = vmatprep.subr.mxu0 0.0
    %4594 = vmatpush2.msra.mxu0 0.0
    %4595 = vmatprep.subr.mxu0 0.0
    %4596 = vmatpush2.msra.mxu0 0.0
    %4597 = vmatprep.subr.mxu0 0.0
    %4598 = vmatpush2.msra.mxu0 0.0
    %4599 = vmatprep.subr.mxu0 0.0
    %4600 = vmatpush2.msra.mxu0 0.0
    %4601 = vmatprep.subr.mxu0 0.0
    %4602 = vmatpush2.msra.mxu0 0.0
    %4603 = vmatprep.mubr.f32.mxu0 0.0
    %v4604 = vand.u32 %v4242, 4294901760
    %v4605 = vsub.f32 %v4242, %v4604
    %4606 = vmatmul.mubr.f32.gmra.mxu0 %v4605
    %v4607 = vpop.f32.mrf.mxu0
    %v4608 = vadd.f32 %v4504, %v4607
    %v4609 = vpop.f32.mrf.mxu0
    %4610 = vdwg.mxu0
    %4611 = vmatprep.subr.mxu0 0.0
    %v4612 = vand.u32 %v4259, 4294901760
    %4613 = vmatpush1.msra.mxu0 %v4612
    %4614 = vmatprep.subr.mxu0 0.0
    %v4615 = vand.u32 %v4258, 4294901760
    %4616 = vmatpush1.msra.mxu0 %v4615
    %4617 = vmatprep.subr.mxu0 0.0
    %v4618 = vand.u32 %v4257, 4294901760
    %4619 = vmatpush1.msra.mxu0 %v4618
    %4620 = vmatprep.subr.mxu0 0.0
    %v4621 = vand.u32 %v4256, 4294901760
    %4622 = vmatpush1.msra.mxu0 %v4621
    %4623 = vmatprep.subr.mxu0 0.0
    %v4624 = vand.u32 %v4255, 4294901760
    %4625 = vmatpush1.msra.mxu0 %v4624
    %4626 = vmatprep.subr.mxu0 0.0
    %v4627 = vand.u32 %v4254, 4294901760
    %4628 = vmatpush1.msra.mxu0 %v4627
    %4629 = vmatprep.subr.mxu0 0.0
    %v4630 = vand.u32 %v4253, 4294901760
    %4631 = vmatpush1.msra.mxu0 %v4630
    %4632 = vmatprep.subr.mxu0 0.0
    %v4633 = vand.u32 %v4252, 4294901760
    %4634 = vmatpush1.msra.mxu0 %v4633
    %4635 = vmatprep.subr.mxu0 0.0
    %v4636 = vand.u32 %v4251, 4294901760
    %4637 = vmatpush1.msra.mxu0 %v4636
    %4638 = vmatprep.subr.mxu0 0.0
    %v4639 = vand.u32 %v4250, 4294901760
    %4640 = vmatpush1.msra.mxu0 %v4639
    %4641 = vmatprep.subr.mxu0 0.0
    %v4642 = vand.u32 %v4249, 4294901760
    %4643 = vmatpush1.msra.mxu0 %v4642
    %4644 = vmatprep.subr.mxu0 0.0
    %v4645 = vand.u32 %v4248, 4294901760
    %4646 = vmatpush1.msra.mxu0 %v4645
    %4647 = vmatprep.subr.mxu0 0.0
    %v4648 = vand.u32 %v4247, 4294901760
    %4649 = vmatpush1.msra.mxu0 %v4648
    %4650 = vmatprep.subr.mxu0 0.0
    %v4651 = vand.u32 %v4246, 4294901760
    %4652 = vmatpush1.msra.mxu0 %v4651
    %4653 = vmatprep.subr.mxu0 0.0
    %v4654 = vand.u32 %v4245, 4294901760
    %4655 = vmatpush1.msra.mxu0 %v4654
    %4656 = vmatprep.subr.mxu0 0.0
    %v4657 = vand.u32 %v4244, 4294901760
    %4658 = vmatpush1.msra.mxu0 %v4657
    %4659 = vmatprep.subr.mxu0 0.0
    %4660 = vmatpush2.msra.mxu0 0.0
    %4661 = vmatprep.subr.mxu0 0.0
    %4662 = vmatpush2.msra.mxu0 0.0
    %4663 = vmatprep.subr.mxu0 0.0
    %4664 = vmatpush2.msra.mxu0 0.0
    %4665 = vmatprep.subr.mxu0 0.0
    %4666 = vmatpush2.msra.mxu0 0.0
    %4667 = vmatprep.subr.mxu0 0.0
    %4668 = vmatpush2.msra.mxu0 0.0
    %4669 = vmatprep.subr.mxu0 0.0
    %4670 = vmatpush2.msra.mxu0 0.0
    %4671 = vmatprep.subr.mxu0 0.0
    %4672 = vmatpush2.msra.mxu0 0.0
    %4673 = vmatprep.subr.mxu0 0.0
    %4674 = vmatpush2.msra.mxu0 0.0
    %4675 = vmatprep.subr.mxu0 0.0
    %4676 = vmatpush2.msra.mxu0 0.0
    %4677 = vmatprep.subr.mxu0 0.0
    %4678 = vmatpush2.msra.mxu0 0.0
    %4679 = vmatprep.subr.mxu0 0.0
    %4680 = vmatpush2.msra.mxu0 0.0
    %4681 = vmatprep.subr.mxu0 0.0
    %4682 = vmatpush2.msra.mxu0 0.0
    %4683 = vmatprep.subr.mxu0 0.0
    %4684 = vmatpush2.msra.mxu0 0.0
    %4685 = vmatprep.subr.mxu0 0.0
    %4686 = vmatpush2.msra.mxu0 0.0
    %4687 = vmatprep.subr.mxu0 0.0
    %4688 = vmatpush2.msra.mxu0 0.0
    %4689 = vmatprep.subr.mxu0 0.0
    %4690 = vmatpush2.msra.mxu0 0.0
    %4691 = vmatprep.mubr.f32.mxu0 0.0
    %v4692 = vand.u32 %v4242, 4294901760
    %v4693 = vsub.f32 %v4242, %v4692
    %v4694 = vand.u32 %v4693, 4294901760
    %4695 = vmatmul.mubr.f32.gmra.mxu0 %v4694
    %v4696 = vpop.f32.mrf.mxu0
    %v4697 = vadd.f32 %v4608, %v4696
    %v4698 = vpop.f32.mrf.mxu0
    %4699 = vdwg.mxu0
    %4700 = vmatprep.subr.mxu0 0.0
    %v4701 = vand.u32 %v4259, 4294901760
    %v4702 = vsub.f32 %v4259, %v4701
    %v4703 = vand.u32 %v4702, 4294901760
    %4704 = vmatpush1.msra.mxu0 %v4703
    %4705 = vmatprep.subr.mxu0 0.0
    %v4706 = vand.u32 %v4258, 4294901760
    %v4707 = vsub.f32 %v4258, %v4706
    %v4708 = vand.u32 %v4707, 4294901760
    %4709 = vmatpush1.msra.mxu0 %v4708
    %4710 = vmatprep.subr.mxu0 0.0
    %v4711 = vand.u32 %v4257, 4294901760
    %v4712 = vsub.f32 %v4257, %v4711
    %v4713 = vand.u32 %v4712, 4294901760
    %4714 = vmatpush1.msra.mxu0 %v4713
    %4715 = vmatprep.subr.mxu0 0.0
    %v4716 = vand.u32 %v4256, 4294901760
    %v4717 = vsub.f32 %v4256, %v4716
    %v4718 = vand.u32 %v4717, 4294901760
    %4719 = vmatpush1.msra.mxu0 %v4718
    %4720 = vmatprep.subr.mxu0 0.0
    %v4721 = vand.u32 %v4255, 4294901760
    %v4722 = vsub.f32 %v4255, %v4721
    %v4723 = vand.u32 %v4722, 4294901760
    %4724 = vmatpush1.msra.mxu0 %v4723
    %4725 = vmatprep.subr.mxu0 0.0
    %v4726 = vand.u32 %v4254, 4294901760
    %v4727 = vsub.f32 %v4254, %v4726
    %v4728 = vand.u32 %v4727, 4294901760
    %4729 = vmatpush1.msra.mxu0 %v4728
    %4730 = vmatprep.subr.mxu0 0.0
    %v4731 = vand.u32 %v4253, 4294901760
    %v4732 = vsub.f32 %v4253, %v4731
    %v4733 = vand.u32 %v4732, 4294901760
    %4734 = vmatpush1.msra.mxu0 %v4733
    %4735 = vmatprep.subr.mxu0 0.0
    %v4736 = vand.u32 %v4252, 4294901760
    %v4737 = vsub.f32 %v4252, %v4736
    %v4738 = vand.u32 %v4737, 4294901760
    %4739 = vmatpush1.msra.mxu0 %v4738
    %4740 = vmatprep.subr.mxu0 0.0
    %v4741 = vand.u32 %v4251, 4294901760
    %v4742 = vsub.f32 %v4251, %v4741
    %v4743 = vand.u32 %v4742, 4294901760
    %4744 = vmatpush1.msra.mxu0 %v4743
    %4745 = vmatprep.subr.mxu0 0.0
    %v4746 = vand.u32 %v4250, 4294901760
    %v4747 = vsub.f32 %v4250, %v4746
    %v4748 = vand.u32 %v4747, 4294901760
    %4749 = vmatpush1.msra.mxu0 %v4748
    %4750 = vmatprep.subr.mxu0 0.0
    %v4751 = vand.u32 %v4249, 4294901760
    %v4752 = vsub.f32 %v4249, %v4751
    %v4753 = vand.u32 %v4752, 4294901760
    %4754 = vmatpush1.msra.mxu0 %v4753
    %4755 = vmatprep.subr.mxu0 0.0
    %v4756 = vand.u32 %v4248, 4294901760
    %v4757 = vsub.f32 %v4248, %v4756
    %v4758 = vand.u32 %v4757, 4294901760
    %4759 = vmatpush1.msra.mxu0 %v4758
    %4760 = vmatprep.subr.mxu0 0.0
    %v4761 = vand.u32 %v4247, 4294901760
    %v4762 = vsub.f32 %v4247, %v4761
    %v4763 = vand.u32 %v4762, 4294901760
    %4764 = vmatpush1.msra.mxu0 %v4763
    %4765 = vmatprep.subr.mxu0 0.0
    %v4766 = vand.u32 %v4246, 4294901760
    %v4767 = vsub.f32 %v4246, %v4766
    %v4768 = vand.u32 %v4767, 4294901760
    %4769 = vmatpush1.msra.mxu0 %v4768
    %4770 = vmatprep.subr.mxu0 0.0
    %v4771 = vand.u32 %v4245, 4294901760
    %v4772 = vsub.f32 %v4245, %v4771
    %v4773 = vand.u32 %v4772, 4294901760
    %4774 = vmatpush1.msra.mxu0 %v4773
    %4775 = vmatprep.subr.mxu0 0.0
    %v4776 = vand.u32 %v4244, 4294901760
    %v4777 = vsub.f32 %v4244, %v4776
    %v4778 = vand.u32 %v4777, 4294901760
    %4779 = vmatpush1.msra.mxu0 %v4778
    %4780 = vmatprep.subr.mxu0 0.0
    %4781 = vmatpush2.msra.mxu0 0.0
    %4782 = vmatprep.subr.mxu0 0.0
    %4783 = vmatpush2.msra.mxu0 0.0
    %4784 = vmatprep.subr.mxu0 0.0
    %4785 = vmatpush2.msra.mxu0 0.0
    %4786 = vmatprep.subr.mxu0 0.0
    %4787 = vmatpush2.msra.mxu0 0.0
    %4788 = vmatprep.subr.mxu0 0.0
    %4789 = vmatpush2.msra.mxu0 0.0
    %4790 = vmatprep.subr.mxu0 0.0
    %4791 = vmatpush2.msra.mxu0 0.0
    %4792 = vmatprep.subr.mxu0 0.0
    %4793 = vmatpush2.msra.mxu0 0.0
    %4794 = vmatprep.subr.mxu0 0.0
    %4795 = vmatpush2.msra.mxu0 0.0
    %4796 = vmatprep.subr.mxu0 0.0
    %4797 = vmatpush2.msra.mxu0 0.0
    %4798 = vmatprep.subr.mxu0 0.0
    %4799 = vmatpush2.msra.mxu0 0.0
    %4800 = vmatprep.subr.mxu0 0.0
    %4801 = vmatpush2.msra.mxu0 0.0
    %4802 = vmatprep.subr.mxu0 0.0
    %4803 = vmatpush2.msra.mxu0 0.0
    %4804 = vmatprep.subr.mxu0 0.0
    %4805 = vmatpush2.msra.mxu0 0.0
    %4806 = vmatprep.subr.mxu0 0.0
    %4807 = vmatpush2.msra.mxu0 0.0
    %4808 = vmatprep.subr.mxu0 0.0
    %4809 = vmatpush2.msra.mxu0 0.0
    %4810 = vmatprep.subr.mxu0 0.0
    %4811 = vmatpush2.msra.mxu0 0.0
    %4812 = vmatprep.mubr.f32.mxu0 0.0
    %v4813 = vand.u32 %v4242, 4294901760
    %4814 = vmatmul.mubr.f32.gmra.mxu0 %v4813
    %v4815 = vpop.f32.mrf.mxu0
    %v4816 = vadd.f32 %v4697, %v4815
    %v4817 = vpop.f32.mrf.mxu0
    %4818 = vdwg.mxu0
    %4819 = vmatprep.subr.mxu0 0.0
    %v4820 = vand.u32 %v4259, 4294901760
    %4821 = vmatpush1.msra.mxu0 %v4820
    %4822 = vmatprep.subr.mxu0 0.0
    %v4823 = vand.u32 %v4258, 4294901760
    %4824 = vmatpush1.msra.mxu0 %v4823
    %4825 = vmatprep.subr.mxu0 0.0
    %v4826 = vand.u32 %v4257, 4294901760
    %4827 = vmatpush1.msra.mxu0 %v4826
    %4828 = vmatprep.subr.mxu0 0.0
    %v4829 = vand.u32 %v4256, 4294901760
    %4830 = vmatpush1.msra.mxu0 %v4829
    %4831 = vmatprep.subr.mxu0 0.0
    %v4832 = vand.u32 %v4255, 4294901760
    %4833 = vmatpush1.msra.mxu0 %v4832
    %4834 = vmatprep.subr.mxu0 0.0
    %v4835 = vand.u32 %v4254, 4294901760
    %4836 = vmatpush1.msra.mxu0 %v4835
    %4837 = vmatprep.subr.mxu0 0.0
    %v4838 = vand.u32 %v4253, 4294901760
    %4839 = vmatpush1.msra.mxu0 %v4838
    %4840 = vmatprep.subr.mxu0 0.0
    %v4841 = vand.u32 %v4252, 4294901760
    %4842 = vmatpush1.msra.mxu0 %v4841
    %4843 = vmatprep.subr.mxu0 0.0
    %v4844 = vand.u32 %v4251, 4294901760
    %4845 = vmatpush1.msra.mxu0 %v4844
    %4846 = vmatprep.subr.mxu0 0.0
    %v4847 = vand.u32 %v4250, 4294901760
    %4848 = vmatpush1.msra.mxu0 %v4847
    %4849 = vmatprep.subr.mxu0 0.0
    %v4850 = vand.u32 %v4249, 4294901760
    %4851 = vmatpush1.msra.mxu0 %v4850
    %4852 = vmatprep.subr.mxu0 0.0
    %v4853 = vand.u32 %v4248, 4294901760
    %4854 = vmatpush1.msra.mxu0 %v4853
    %4855 = vmatprep.subr.mxu0 0.0
    %v4856 = vand.u32 %v4247, 4294901760
    %4857 = vmatpush1.msra.mxu0 %v4856
    %4858 = vmatprep.subr.mxu0 0.0
    %v4859 = vand.u32 %v4246, 4294901760
    %4860 = vmatpush1.msra.mxu0 %v4859
    %4861 = vmatprep.subr.mxu0 0.0
    %v4862 = vand.u32 %v4245, 4294901760
    %4863 = vmatpush1.msra.mxu0 %v4862
    %4864 = vmatprep.subr.mxu0 0.0
    %v4865 = vand.u32 %v4244, 4294901760
    %4866 = vmatpush1.msra.mxu0 %v4865
    %4867 = vmatprep.subr.mxu0 0.0
    %4868 = vmatpush2.msra.mxu0 0.0
    %4869 = vmatprep.subr.mxu0 0.0
    %4870 = vmatpush2.msra.mxu0 0.0
    %4871 = vmatprep.subr.mxu0 0.0
    %4872 = vmatpush2.msra.mxu0 0.0
    %4873 = vmatprep.subr.mxu0 0.0
    %4874 = vmatpush2.msra.mxu0 0.0
    %4875 = vmatprep.subr.mxu0 0.0
    %4876 = vmatpush2.msra.mxu0 0.0
    %4877 = vmatprep.subr.mxu0 0.0
    %4878 = vmatpush2.msra.mxu0 0.0
    %4879 = vmatprep.subr.mxu0 0.0
    %4880 = vmatpush2.msra.mxu0 0.0
    %4881 = vmatprep.subr.mxu0 0.0
    %4882 = vmatpush2.msra.mxu0 0.0
    %4883 = vmatprep.subr.mxu0 0.0
    %4884 = vmatpush2.msra.mxu0 0.0
    %4885 = vmatprep.subr.mxu0 0.0
    %4886 = vmatpush2.msra.mxu0 0.0
    %4887 = vmatprep.subr.mxu0 0.0
    %4888 = vmatpush2.msra.mxu0 0.0
    %4889 = vmatprep.subr.mxu0 0.0
    %4890 = vmatpush2.msra.mxu0 0.0
    %4891 = vmatprep.subr.mxu0 0.0
    %4892 = vmatpush2.msra.mxu0 0.0
    %4893 = vmatprep.subr.mxu0 0.0
    %4894 = vmatpush2.msra.mxu0 0.0
    %4895 = vmatprep.subr.mxu0 0.0
    %4896 = vmatpush2.msra.mxu0 0.0
    %4897 = vmatprep.subr.mxu0 0.0
    %4898 = vmatpush2.msra.mxu0 0.0
    %4899 = vmatprep.mubr.f32.mxu0 0.0
    %v4900 = vand.u32 %v4242, 4294901760
    %4901 = vmatmul.mubr.f32.gmra.mxu0 %v4900
    %v4902 = vpop.f32.mrf.mxu0
    %v4903 = vadd.f32 %v4816, %v4902
    %v4904 = vpop.f32.mrf.mxu0
    %4905 = vdwg.mxu0
    %4906 = vst [vmem:[#allocation8] sm:$0xff] %v4903
    // Predicated region
    $region26: #{tpu_custom_call.1} parent=1 // pred_check
      _
    $region27: #{tpu_custom_call.1} parent=1 // pred_check_branch
      %4908 = sbr.rel (0) target = $region29
    $region28: #{tpu_custom_call.1} parent=1 // pred_region
      %s4910 = ssub.s32 128, 128
      %4911 = vsyncadd [#allocation4], %s4910
      %s4913 = sshll.u32 [#allocation8], 4
      %s4914 = int_to_ptr.vmem [resolvable:$true] %s4913
      %4916 = dma.vmem_to_hbm [thread:$0]  %s4914, 128, %s3, [#allocation4]
    $region29: #{tpu_custom_call.1} parent=1 // pred_fallthru
      _
    // Predicated region
    $region30: #{tpu_custom_call.1} parent=1 // pred_check
      _
    $region31: #{tpu_custom_call.1} parent=1 // pred_check_branch
      %4918 = sbr.rel (0) target = $region33
    $region32: #{tpu_custom_call.1} parent=1 // pred_region
      %4919 = dma.done [#allocation4], 128
    $region33: #{tpu_custom_call.1} parent=1 // pred_fallthru
      _
    %4920 = vsyncpa [#allocation3], 1
    %4921 = vsyncpa [#allocation6], 1
    %4922 = vsyncpa [#allocation4], 1

</llo_original>
